<compile_context>
chip_gen: v7x
topology: tpu7x:2x2x1
jax: 0.10.0
libtpu: 0.0.40
codegen_flags: <defaults>
</compile_context>

<pallas_src>
import functools

import numpy as np
import jax
import jax.numpy as jnp
from jax.experimental import pallas as pl
from jax.experimental.pallas import tpu as pltpu

# -----------------------------------------------------------------------------
# Configuration, mirroring:
#   Autoencoder(dimension=3, reps=1,
#               encoder_layers=[[1,4],[4,8],[8,16]],
#               decoder_layers=[[8,32],[4,16],[1,8]],
#               unet=True, use_sparsify=False)
# -----------------------------------------------------------------------------
DIMENSION = 3
REPS = 1
LEAKINESS = 0.0                      # LeakyReLU(0) == ReLU
ENCODER_LAYERS = [[1, 4], [4, 8], [8, 16]]
DECODER_LAYERS = [[8, 32], [4, 16], [1, 8]]   # [n_out, n_in]; n_in includes the concat
BATCH = 2
SPATIAL = 8
KVOL = 2 ** DIMENSION                # 2x2x2 kernel volume of stride-2 (de)convs
CPAD = 16                            # channel pad = bf16 sublane quantum (>= 16 ch)


# -----------------------------------------------------------------------------
# Octree (Morton) voxel ordering: the 8 children of every stride-2 parent are
# contiguous, so stride-2 (de)convolutions become contiguous / stride-8 rows.
# -----------------------------------------------------------------------------
def _octree_maps(spatial):
    levels = int(np.log2(spatial))
    v = np.arange(spatial ** 3)
    z = v // (spatial * spatial)
    y = (v // spatial) % spatial
    x = v % spatial
    m = np.zeros_like(v)
    for b in range(levels - 1, -1, -1):
        m = m * 8 + (((z >> b) & 1) * 4 + ((y >> b) & 1) * 2 + ((x >> b) & 1))
    v_of_m = np.argsort(m)   # voxel index for each octree rank
    m_of_v = m               # octree rank for each voxel index
    return m_of_v, v_of_m


# -----------------------------------------------------------------------------
# Fused Pallas kernel (whole forward pass, one sample per grid step)
# -----------------------------------------------------------------------------
def _relu(x):
    return jnp.maximum(x, 0.0)       # LEAKINESS == 0.0


def _dot(a, w):
    # bf16 MXU operands, f32 accumulation.
    return jnp.dot(a.astype(jnp.bfloat16), w, preferred_element_type=jnp.float32)


def _fused_autoencoder_kernel(x_ref, w0_ref, wc0_ref, wsq_ref, wcv_ref,
                              wda_ref, wdb_ref, o_ref, *scratch,
                              n_enc, n_dec, reps):
    """Encoder -> U-Net Decoder -> Sigmoid for one sample, entirely in VMEM."""
    res_scr = scratch[:n_enc - 1]          # encoder conv gather buffers
    dec_scr = scratch[n_enc - 1:]          # intermediate decoder buffers

    # ----------------- stage 0 (c_in = 1): packed (parents, 8) layout -------
    a = x_ref[0]                                        # (R1, KVOL) f32
    for r in range(reps):
        wn = w0_ref[0:1, 3 * r + 0:3 * r + 1]           # (1,1), broadcasts
        w1 = w0_ref[0:1, 3 * r + 1:3 * r + 2]
        w2 = w0_ref[0:1, 3 * r + 2:3 * r + 3]
        a = a * wn + _relu(_relu(a) * w1) * w2          # scalar resnet, f32 VPU
    # stride-2 conv: the octree packing IS the patch layout -> one K=8 dot.
    act = jnp.dot(_relu(a), wc0_ref[...],
                  preferred_element_type=jnp.float32)   # (R1, CPAD), f32
    enc_outs = [act]

    # ----------------- stages 1 .. n_enc-1 ----------------------------------
    for s in range(1, n_enc):
        base = (s - 1) * 3 * reps
        for r in range(reps):
            wn = wsq_ref[base + 3 * r + 0]
            w1 = wsq_ref[base + 3 * r + 1]
            w2 = wsq_ref[base + 3 * r + 2]
            act = _dot(act, wn) + _dot(_relu(_dot(_relu(act), w1)), w2)
        rs = res_scr[s - 1]
        rs[...] = _relu(act)                            # LeakyReLU(0) before conv
        r_out = rs.shape[0] // KVOL
        wc_s = wcv_ref[s - 1]                           # (KVOL, CPAD, CPAD)
        acc = None
        for k in range(KVOL):                           # 8 taps, stride-8 rows
            idx = pl.ds(k, r_out, stride=KVOL) if r_out > 1 else pl.ds(k, 1)
            part = _dot(rs[idx, :], wc_s[k])
            acc = part if acc is None else acc + part
        act = acc
        enc_outs.append(act)

    # ----------------- U-Net decoder (split-weight SparseConcatenate) -------
    dec = enc_outs[-1]                                  # latent (1, CPAD)
    for i in range(n_dec):
        skip = enc_outs[n_enc - 1 - i]
        last = i == n_dec - 1
        if last:
            wt, wb = wdb_ref[0], wdb_ref[1]             # (CPAD, KVOL*c_out)
            y = _dot(_relu(dec), wt) + _dot(_relu(skip), wb)
            o_ref[0] = jax.nn.sigmoid(y)                # packed, no padded lanes
        else:
            wt, wb = wda_ref[2 * i], wda_ref[2 * i + 1]  # (CPAD, KVOL*CPAD)
            y = _dot(_relu(dec), wt) + _dot(_relu(skip), wb)
            dst = dec_scr[i]
            rows = dec.shape[0]
            for k in range(KVOL):                        # child k -> row 8p+k
                idx = pl.ds(k, rows, stride=KVOL) if rows > 1 else pl.ds(k, 1)
                dst[idx, :] = y[:, k * CPAD:(k + 1) * CPAD]
            dec = dst[...]


# -----------------------------------------------------------------------------
# Weight preparation (done once, outside the kernel path).
# Only pad channels to 16 (bf16 sublane quantum); coalesce into 6 small slabs.
# -----------------------------------------------------------------------------
def prepare_weights(params):
    enc, dec = params["encoder"], params["decoder"]

    # stage-0 (c_in = 1) resnet weights are scalars -> (1, 3*REPS) f32
    s0 = []
    for (wn, w1, w2) in enc[0]["resnet"]:
        s0 += [wn.reshape(()), w1.reshape(()), w2.reshape(())]
    w0 = jnp.stack(s0).reshape(1, 3 * REPS).astype(jnp.float32)

    # stage-0 conv: (KVOL*1, c_out) -> (KVOL, CPAD), kept f32 (tiny, accurate)
    c_out0 = ENCODER_LAYERS[0][1]
    wc0 = jnp.pad(enc[0]["conv_w"],
                  ((0, 0), (0, CPAD - c_out0))).astype(jnp.float32)

    # stages >= 1: resnet (c,c) -> (CPAD,CPAD); conv -> (KVOL,CPAD,CPAD)
    sq, cv = [], []
    for s in range(1, len(ENCODER_LAYERS)):
        c_in, c_out = ENCODER_LAYERS[s]
        for (wn, w1, w2) in enc[s]["resnet"]:
            for m in (wn, w1, w2):
                sq.append(jnp.pad(m, ((0, CPAD - c_in), (0, CPAD - c_in))))
        w = enc[s]["conv_w"].reshape(KVOL, c_in, c_out)
        cv.append(jnp.pad(w, ((0, 0), (0, CPAD - c_in), (0, CPAD - c_out))))
    w_sq = jnp.stack(sq).astype(jnp.bfloat16)
    w_cv = jnp.stack(cv).astype(jnp.bfloat16)

    # decoder deconv halves (split-weight concat).  Intermediate blocks keep
    # 16-lane tap blocks; the final block keeps its real c_out so the output
    # slab carries no padded lanes.
    c_dec = ENCODER_LAYERS[-1][1]
    da, db = [], []
    for i, blk in enumerate(dec):
        n_out, n_in = DECODER_LAYERS[i]
        c_skip = n_in - c_dec
        last = i == len(dec) - 1
        n_pad = n_out if last else CPAD
        for rows, c_part in ((slice(0, c_dec), c_dec),
                             (slice(c_dec, n_in), c_skip)):
            wh = blk["deconv_w"][rows].reshape(c_part, KVOL, n_out)
            wh = jnp.pad(wh, ((0, CPAD - c_part), (0, 0), (0, n_pad - n_out)))
            (db if last else da).append(wh.reshape(CPAD, KVOL * n_pad))
        c_dec = n_out
    w_da = jnp.stack(da).astype(jnp.bfloat16)
    w_db = jnp.stack(db).astype(jnp.bfloat16)
    return (w0, wc0, w_sq, w_cv, w_da, w_db)


# -----------------------------------------------------------------------------
# Forward wrapper: one pallas_call, batch grid ("parallel" for v7x megacore).
# -----------------------------------------------------------------------------
def autoencoder_forward(x_ncdhw, weights):
    w0, wc0, w_sq, w_cv, w_da, w_db = weights
    n, c_in, d, h, w = x_ncdhw.shape
    assert c_in == ENCODER_LAYERS[0][0] == 1
    voxels = d * h * w
    r1 = voxels // KVOL
    m_of_v, v_of_m = _octree_maps(d)

    # NCDHW -> per-sample octree order, packed (parents, 8 children): the only
    # layout plumbing, done once in the wrapper.
    x = jnp.transpose(x_ncdhw, (0, 2, 3, 4, 1)).reshape(n, voxels)
    x = x[:, v_of_m].reshape(n, r1, KVOL)

    n_enc, n_dec = len(ENCODER_LAYERS), len(DECODER_LAYERS)
    c_out_f = DECODER_LAYERS[-1][0]

    scratch = []
    rows = r1
    for _ in range(n_enc - 1):                      # encoder conv gather bufs
        scratch.append(pltpu.VMEM((rows, CPAD), jnp.float32))
        rows //= KVOL
    for i in range(n_dec - 1):                      # intermediate decoder bufs
        scratch.append(
            pltpu.VMEM((voxels // KVOL ** (n_enc - 1 - i), CPAD), jnp.float32))

    const2 = lambda b: (0, 0)
    const3 = lambda b: (0, 0, 0)
    const4 = lambda b: (0, 0, 0, 0)

    out_oct = pl.pallas_call(
        functools.partial(_fused_autoencoder_kernel,
                          n_enc=n_enc, n_dec=n_dec, reps=REPS),
        out_shape=jax.ShapeDtypeStruct((n, r1, KVOL * c_out_f), jnp.float32),
        grid_spec=pltpu.PrefetchScalarGridSpec(
            num_scalar_prefetch=0,
            grid=(n,),
            in_specs=[
                pl.BlockSpec((1, r1, KVOL), lambda b: (b, 0, 0)),
                pl.BlockSpec(w0.shape, const2),      # stage-0 resnet scalars
                pl.BlockSpec(wc0.shape, const2),     # stage-0 conv (f32)
                pl.BlockSpec(w_sq.shape, const3),    # resnet weights, stages>=1
                pl.BlockSpec(w_cv.shape, const4),    # conv taps, stages>=1
                pl.BlockSpec(w_da.shape, const3),    # deconv halves, blocks<last
                pl.BlockSpec(w_db.shape, const3),    # deconv halves, last block
            ],
            out_specs=pl.BlockSpec((1, r1, KVOL * c_out_f), lambda b: (b, 0, 0)),
            scratch_shapes=scratch,
        ),
        compiler_params=pltpu.CompilerParams(
            dimension_semantics=("parallel",)),
    )(x, w0, wc0, w_sq, w_cv, w_da, w_db)

    # Octree-packed rows -> NCDHW.
    out = out_oct.reshape(n, voxels, c_out_f)[:, m_of_v, :]
    out = out.reshape(n, d, h, w, c_out_f)
    return jnp.transpose(out, (0, 4, 1, 2, 3))


# -----------------------------------------------------------------------------
# Deterministic parameter init (identical to the dense-equivalent module)
# -----------------------------------------------------------------------------
def init_params(key):
    params = {"encoder": [], "decoder": []}
    c_in = 1
    for layer in ENCODER_LAYERS:
        blk = {"resnet": []}
        for _ in range(REPS):
            key, k1, k2, k3 = jax.random.split(key, 4)
            blk["resnet"].append((
                0.2 * jax.random.normal(k1, (c_in, c_in), jnp.float32),  # NetworkInNetwork
                0.2 * jax.random.normal(k2, (c_in, c_in), jnp.float32),  # SubmanifoldConv k=1
                0.2 * jax.random.normal(k3, (c_in, c_in), jnp.float32),  # SubmanifoldConv k=1
            ))
        c_out = layer[1]
        key, kc = jax.random.split(key)
        blk["conv_w"] = 0.2 * jax.random.normal(kc, (KVOL * c_in, c_out), jnp.float32)
        params["encoder"].append(blk)
        c_in = c_out
    for layer in DECODER_LAYERS:
        n_out, n_in = layer[0], layer[1]
        key, kd = jax.random.split(key)
        params["decoder"].append(
            {"deconv_w": 0.2 * jax.random.normal(kd, (n_in, KVOL * n_out), jnp.float32)})
    return params


# -----------------------------------------------------------------------------
# Pure-JAX f32 reference (dense equivalent of the module) for validation.
# -----------------------------------------------------------------------------
def _reference_forward(x_ncdhw, params):
    def relu(v):
        return jnp.maximum(v, 0.0)

    cur = jnp.transpose(x_ncdhw, (0, 2, 3, 4, 1))
    enc_feats = [cur]
    for blk in params["encoder"]:
        rows = cur.reshape(-1, cur.shape[-1])
        for (wn, w1, w2) in blk["resnet"]:
            rows = rows @ wn + relu(relu(rows) @ w1) @ w2
        cur = rows.reshape(cur.shape[:-1] + (rows.shape[-1],))
        nn, d_, h_, w_, c_ = cur.shape
        p = cur.reshape(nn, d_ // 2, 2, h_ // 2, 2, w_ // 2, 2, c_)
        p = jnp.transpose(p, (0, 1, 3, 5, 2, 4, 6, 7)).reshape(-1, KVOL * c_)
        o = relu(p) @ blk["conv_w"]
        cur = o.reshape(nn, d_ // 2, h_ // 2, w_ // 2, -1)
        enc_feats.append(cur)
    latent = cur
    skips = (enc_feats[:-1] + [latent])[::-1]
    dec = latent
    for i, blk in enumerate(params["decoder"]):
        cat = jnp.concatenate([dec, skips[i]], axis=-1)
        rows = relu(cat.reshape(-1, cat.shape[-1])) @ blk["deconv_w"]
        if i == len(params["decoder"]) - 1:
            rows = jax.nn.sigmoid(rows)
        nn, d_, h_, w_ = cat.shape[:4]
        c_o = blk["deconv_w"].shape[1] // KVOL
        y = rows.reshape(nn, d_, h_, w_, 2, 2, 2, c_o)
        y = jnp.transpose(y, (0, 1, 4, 2, 5, 3, 6, 7))
        dec = y.reshape(nn, 2 * d_, 2 * h_, 2 * w_, c_o)
    return jnp.transpose(dec, (0, 4, 1, 2, 3))


if __name__ == "__main__":
    key = jax.random.PRNGKey(0)
    pkey, xkey = jax.random.split(key)
    params = init_params(pkey)
    # Dense-equivalent input: batch=2, channels=1, spatial=8^3 (NCDHW).
    x = jax.random.normal(xkey, (BATCH, 1, SPATIAL, SPATIAL, SPATIAL), jnp.float32)

    flat_w = prepare_weights(params)       # pad to 16 / split / cast once
    fwd = jax.jit(autoencoder_forward)
    x_hat = fwd(x, flat_w)
    jax.block_until_ready(x_hat)

    assert x_hat.shape == (BATCH, 1, SPATIAL, SPATIAL, SPATIAL), x_hat.shape
    assert bool(jnp.all(jnp.isfinite(x_hat)))
    assert bool(jnp.all((x_hat >= 0.0) & (x_hat <= 1.0)))

    # Numerical check vs pure-JAX f32 reference (tol covers bf16 MXU operands).
    ref = _reference_forward(x, params)
    max_err = float(jnp.max(jnp.abs(x_hat - ref)))
    assert max_err < 5e-2, f"max |err| vs reference = {max_err}"

    print("KERNEL_OK")
</pallas_src>

<mosaic_0001>
module attributes {stable_mosaic.version = 11 : i64} {
  func.func @_fused_autoencoder_kernel(%arg0: i32, %arg1: memref<1x64x8xf32, #tpu.memory_space<vmem>>, %arg2: memref<1x3xf32, #tpu.memory_space<vmem>>, %arg3: memref<8x16xf32, #tpu.memory_space<vmem>>, %arg4: memref<6x16x16xbf16, #tpu.memory_space<vmem>>, %arg5: memref<2x8x16x16xbf16, #tpu.memory_space<vmem>>, %arg6: memref<4x16x128xbf16, #tpu.memory_space<vmem>>, %arg7: memref<2x16x8xbf16, #tpu.memory_space<vmem>>, %arg8: memref<1x64x8xf32, #tpu.memory_space<vmem>>, %arg9: memref<64x16xf32, #tpu.memory_space<vmem>>, %arg10: memref<8x16xf32, #tpu.memory_space<vmem>>, %arg11: memref<8x16xf32, #tpu.memory_space<vmem>>, %arg12: memref<64x16xf32, #tpu.memory_space<vmem>>) attributes {dimension_semantics = [#tpu.dimension_semantics<parallel>], iteration_bounds = array<i64: 2>, scalar_prefetch = 0 : i64, scratch_operands = 4 : i64, tpu.core_type = #tpu.core_type<tc>, window_params = [{transform_indices = @transform_0, window_bounds = array<i64: 1, 64, 8>}, {pipeline_mode = #tpu.pipeline_mode<synchronous>, transform_indices = @transform_1, window_bounds = array<i64: 1, 3>}, {pipeline_mode = #tpu.pipeline_mode<synchronous>, transform_indices = @transform_2, window_bounds = array<i64: 8, 16>}, {pipeline_mode = #tpu.pipeline_mode<synchronous>, transform_indices = @transform_3, window_bounds = array<i64: 6, 16, 16>}, {pipeline_mode = #tpu.pipeline_mode<synchronous>, transform_indices = @transform_4, window_bounds = array<i64: 2, 8, 16, 16>}, {pipeline_mode = #tpu.pipeline_mode<synchronous>, transform_indices = @transform_5, window_bounds = array<i64: 4, 16, 128>}, {pipeline_mode = #tpu.pipeline_mode<synchronous>, transform_indices = @transform_6, window_bounds = array<i64: 2, 16, 8>}, {transform_indices = @transform_7, window_bounds = array<i64: 1, 64, 8>}]} {
    %c0 = arith.constant 0 : index
    %c0_0 = arith.constant 0 : index
    %c0_1 = arith.constant 0 : index
    %0 = vector.load %arg1[%c0, %c0_0, %c0_1] : memref<1x64x8xf32, #tpu.memory_space<vmem>>, vector<1x64x8xf32>
    %1 = vector.shape_cast %0 : vector<1x64x8xf32> to vector<64x8xf32>
    %c0_2 = arith.constant 0 : index
    %c0_3 = arith.constant 0 : index
    %2 = vector.load %arg2[%c0_2, %c0_3] : memref<1x3xf32, #tpu.memory_space<vmem>>, vector<1x1xf32>
    %c0_4 = arith.constant 0 : index
    %c1 = arith.constant 1 : index
    %3 = vector.load %arg2[%c0_4, %c1] : memref<1x3xf32, #tpu.memory_space<vmem>>, vector<1x1xf32>
    %c0_5 = arith.constant 0 : index
    %c2 = arith.constant 2 : index
    %4 = vector.load %arg2[%c0_5, %c2] : memref<1x3xf32, #tpu.memory_space<vmem>>, vector<1x1xf32>
    %5 = vector.broadcast %2 : vector<1x1xf32> to vector<64x8xf32>
    %6 = arith.mulf %1, %5 : vector<64x8xf32>
    %cst = arith.constant 0.000000e+00 : f32
    %7 = vector.broadcast %cst : f32 to vector<64x8xf32>
    %8 = arith.maximumf %1, %7 : vector<64x8xf32>
    %9 = vector.broadcast %3 : vector<1x1xf32> to vector<64x8xf32>
    %10 = arith.mulf %8, %9 : vector<64x8xf32>
    %cst_6 = arith.constant 0.000000e+00 : f32
    %11 = vector.broadcast %cst_6 : f32 to vector<64x8xf32>
    %12 = arith.maximumf %10, %11 : vector<64x8xf32>
    %13 = vector.broadcast %4 : vector<1x1xf32> to vector<64x8xf32>
    %14 = arith.mulf %12, %13 : vector<64x8xf32>
    %15 = arith.addf %6, %14 : vector<64x8xf32>
    %cst_7 = arith.constant 0.000000e+00 : f32
    %16 = vector.broadcast %cst_7 : f32 to vector<64x8xf32>
    %17 = arith.maximumf %15, %16 : vector<64x8xf32>
    %c0_8 = arith.constant 0 : index
    %c0_9 = arith.constant 0 : index
    %18 = vector.load %arg3[%c0_8, %c0_9] : memref<8x16xf32, #tpu.memory_space<vmem>>, vector<8x16xf32>
    %cst_10 = arith.constant dense<0.000000e+00> : vector<64x16xf32>
    %19 = tpu.matmul %17, %18, %cst_10 {dimension_numbers = #tpu.dot_dimension_numbers<[1], [0], [0], [1], [0, 0, 1, 1], [], []>} : vector<64x8xf32>, vector<8x16xf32>, vector<64x16xf32> -> vector<64x16xf32>
    %c0_11 = arith.constant 0 : index
    %c0_12 = arith.constant 0 : index
    %c0_13 = arith.constant 0 : index
    %20 = vector.load %arg4[%c0_11, %c0_12, %c0_13] : memref<6x16x16xbf16, #tpu.memory_space<vmem>>, vector<1x16x16xbf16>
    %21 = vector.shape_cast %20 : vector<1x16x16xbf16> to vector<16x16xbf16>
    %c1_14 = arith.constant 1 : index
    %c0_15 = arith.constant 0 : index
    %c0_16 = arith.constant 0 : index
    %22 = vector.load %arg4[%c1_14, %c0_15, %c0_16] : memref<6x16x16xbf16, #tpu.memory_space<vmem>>, vector<1x16x16xbf16>
    %23 = vector.shape_cast %22 : vector<1x16x16xbf16> to vector<16x16xbf16>
    %c2_17 = arith.constant 2 : index
    %c0_18 = arith.constant 0 : index
    %c0_19 = arith.constant 0 : index
    %24 = vector.load %arg4[%c2_17, %c0_18, %c0_19] : memref<6x16x16xbf16, #tpu.memory_space<vmem>>, vector<1x16x16xbf16>
    %25 = vector.shape_cast %24 : vector<1x16x16xbf16> to vector<16x16xbf16>
    %26 = arith.truncf %19 : vector<64x16xf32> to vector<64x16xbf16>
    %cst_20 = arith.constant dense<0.000000e+00> : vector<64x16xf32>
    %27 = tpu.matmul %26, %21, %cst_20 {dimension_numbers = #tpu.dot_dimension_numbers<[1], [0], [0], [1], [0, 0, 1, 1], [], []>} : vector<64x16xbf16>, vector<16x16xbf16>, vector<64x16xf32> -> vector<64x16xf32>
    %cst_21 = arith.constant 0.000000e+00 : f32
    %28 = vector.broadcast %cst_21 : f32 to vector<64x16xf32>
    %29 = arith.maximumf %19, %28 : vector<64x16xf32>
    %30 = arith.truncf %29 : vector<64x16xf32> to vector<64x16xbf16>
    %cst_22 = arith.constant dense<0.000000e+00> : vector<64x16xf32>
    %31 = tpu.matmul %30, %23, %cst_22 {dimension_numbers = #tpu.dot_dimension_numbers<[1], [0], [0], [1], [0, 0, 1, 1], [], []>} : vector<64x16xbf16>, vector<16x16xbf16>, vector<64x16xf32> -> vector<64x16xf32>
    %cst_23 = arith.constant 0.000000e+00 : f32
    %32 = vector.broadcast %cst_23 : f32 to vector<64x16xf32>
    %33 = arith.maximumf %31, %32 : vector<64x16xf32>
    %34 = arith.truncf %33 : vector<64x16xf32> to vector<64x16xbf16>
    %cst_24 = arith.constant dense<0.000000e+00> : vector<64x16xf32>
    %35 = tpu.matmul %34, %25, %cst_24 {dimension_numbers = #tpu.dot_dimension_numbers<[1], [0], [0], [1], [0, 0, 1, 1], [], []>} : vector<64x16xbf16>, vector<16x16xbf16>, vector<64x16xf32> -> vector<64x16xf32>
    %36 = arith.addf %27, %35 : vector<64x16xf32>
    %cst_25 = arith.constant 0.000000e+00 : f32
    %37 = vector.broadcast %cst_25 : f32 to vector<64x16xf32>
    %38 = arith.maximumf %36, %37 : vector<64x16xf32>
    %c0_26 = arith.constant 0 : index
    %c0_27 = arith.constant 0 : index
    %39 = vector.load %arg9[%c0_26, %c0_27] : memref<64x16xf32, #tpu.memory_space<vmem>>, vector<64x16xf32>
    tpu.vector_store %arg9[%c0_26, %c0_27], %38 {strides = array<i32>} : memref<64x16xf32, #tpu.memory_space<vmem>>, vector<64x16xf32>,
    %c0_28 = arith.constant 0 : index
    %c0_29 = arith.constant 0 : index
    %c0_30 = arith.constant 0 : index
    %c0_31 = arith.constant 0 : index
    %40 = vector.load %arg5[%c0_28, %c0_29, %c0_30, %c0_31] : memref<2x8x16x16xbf16, #tpu.memory_space<vmem>>, vector<1x8x16x16xbf16>
    %41 = vector.shape_cast %40 : vector<1x8x16x16xbf16> to vector<8x16x16xbf16>
    %c0_32 = arith.constant 0 : index
    %c0_33 = arith.constant 0 : index
    %42 = tpu.strided_load %arg9[%c0_32, %c0_33] {strides = array<i32: 8, 1>} : memref<64x16xf32, #tpu.memory_space<vmem>>, vector<8x16xf32>
    %43 = vector.extract_strided_slice %41 {offsets = [0, 0, 0], sizes = [1, 16, 16], strides = [1, 1, 1]} : vector<8x16x16xbf16> to vector<1x16x16xbf16>
    %44 = vector.shape_cast %43 : vector<1x16x16xbf16> to vector<16x16xbf16>
    %45 = arith.truncf %42 : vector<8x16xf32> to vector<8x16xbf16>
    %cst_34 = arith.constant dense<0.000000e+00> : vector<8x16xf32>
    %46 = tpu.matmul %45, %44, %cst_34 {dimension_numbers = #tpu.dot_dimension_numbers<[1], [0], [0], [1], [0, 0, 1, 1], [], []>} : vector<8x16xbf16>, vector<16x16xbf16>, vector<8x16xf32> -> vector<8x16xf32>
    %c1_35 = arith.constant 1 : index
    %c0_36 = arith.constant 0 : index
    %47 = tpu.strided_load %arg9[%c1_35, %c0_36] {strides = array<i32: 8, 1>} : memref<64x16xf32, #tpu.memory_space<vmem>>, vector<8x16xf32>
    %48 = vector.extract_strided_slice %41 {offsets = [1, 0, 0], sizes = [1, 16, 16], strides = [1, 1, 1]} : vector<8x16x16xbf16> to vector<1x16x16xbf16>
    %49 = vector.shape_cast %48 : vector<1x16x16xbf16> to vector<16x16xbf16>
    %50 = arith.truncf %47 : vector<8x16xf32> to vector<8x16xbf16>
    %cst_37 = arith.constant dense<0.000000e+00> : vector<8x16xf32>
    %51 = tpu.matmul %50, %49, %cst_37 {dimension_numbers = #tpu.dot_dimension_numbers<[1], [0], [0], [1], [0, 0, 1, 1], [], []>} : vector<8x16xbf16>, vector<16x16xbf16>, vector<8x16xf32> -> vector<8x16xf32>
    %52 = arith.addf %46, %51 : vector<8x16xf32>
    %c2_38 = arith.constant 2 : index
    %c0_39 = arith.constant 0 : index
    %53 = tpu.strided_load %arg9[%c2_38, %c0_39] {strides = array<i32: 8, 1>} : memref<64x16xf32, #tpu.memory_space<vmem>>, vector<8x16xf32>
    %54 = vector.extract_strided_slice %41 {offsets = [2, 0, 0], sizes = [1, 16, 16], strides = [1, 1, 1]} : vector<8x16x16xbf16> to vector<1x16x16xbf16>
    %55 = vector.shape_cast %54 : vector<1x16x16xbf16> to vector<16x16xbf16>
    %56 = arith.truncf %53 : vector<8x16xf32> to vector<8x16xbf16>
    %cst_40 = arith.constant dense<0.000000e+00> : vector<8x16xf32>
    %57 = tpu.matmul %56, %55, %cst_40 {dimension_numbers = #tpu.dot_dimension_numbers<[1], [0], [0], [1], [0, 0, 1, 1], [], []>} : vector<8x16xbf16>, vector<16x16xbf16>, vector<8x16xf32> -> vector<8x16xf32>
    %58 = arith.addf %52, %57 : vector<8x16xf32>
    %c3 = arith.constant 3 : index
    %c0_41 = arith.constant 0 : index
    %59 = tpu.strided_load %arg9[%c3, %c0_41] {strides = array<i32: 8, 1>} : memref<64x16xf32, #tpu.memory_space<vmem>>, vector<8x16xf32>
    %60 = vector.extract_strided_slice %41 {offsets = [3, 0, 0], sizes = [1, 16, 16], strides = [1, 1, 1]} : vector<8x16x16xbf16> to vector<1x16x16xbf16>
    %61 = vector.shape_cast %60 : vector<1x16x16xbf16> to vector<16x16xbf16>
    %62 = arith.truncf %59 : vector<8x16xf32> to vector<8x16xbf16>
    %cst_42 = arith.constant dense<0.000000e+00> : vector<8x16xf32>
    %63 = tpu.matmul %62, %61, %cst_42 {dimension_numbers = #tpu.dot_dimension_numbers<[1], [0], [0], [1], [0, 0, 1, 1], [], []>} : vector<8x16xbf16>, vector<16x16xbf16>, vector<8x16xf32> -> vector<8x16xf32>
    %64 = arith.addf %58, %63 : vector<8x16xf32>
    %c4 = arith.constant 4 : index
    %c0_43 = arith.constant 0 : index
    %65 = tpu.strided_load %arg9[%c4, %c0_43] {strides = array<i32: 8, 1>} : memref<64x16xf32, #tpu.memory_space<vmem>>, vector<8x16xf32>
    %66 = vector.extract_strided_slice %41 {offsets = [4, 0, 0], sizes = [1, 16, 16], strides = [1, 1, 1]} : vector<8x16x16xbf16> to vector<1x16x16xbf16>
    %67 = vector.shape_cast %66 : vector<1x16x16xbf16> to vector<16x16xbf16>
    %68 = arith.truncf %65 : vector<8x16xf32> to vector<8x16xbf16>
    %cst_44 = arith.constant dense<0.000000e+00> : vector<8x16xf32>
    %69 = tpu.matmul %68, %67, %cst_44 {dimension_numbers = #tpu.dot_dimension_numbers<[1], [0], [0], [1], [0, 0, 1, 1], [], []>} : vector<8x16xbf16>, vector<16x16xbf16>, vector<8x16xf32> -> vector<8x16xf32>
    %70 = arith.addf %64, %69 : vector<8x16xf32>
    %c5 = arith.constant 5 : index
    %c0_45 = arith.constant 0 : index
    %71 = tpu.strided_load %arg9[%c5, %c0_45] {strides = array<i32: 8, 1>} : memref<64x16xf32, #tpu.memory_space<vmem>>, vector<8x16xf32>
    %72 = vector.extract_strided_slice %41 {offsets = [5, 0, 0], sizes = [1, 16, 16], strides = [1, 1, 1]} : vector<8x16x16xbf16> to vector<1x16x16xbf16>
    %73 = vector.shape_cast %72 : vector<1x16x16xbf16> to vector<16x16xbf16>
    %74 = arith.truncf %71 : vector<8x16xf32> to vector<8x16xbf16>
    %cst_46 = arith.constant dense<0.000000e+00> : vector<8x16xf32>
    %75 = tpu.matmul %74, %73, %cst_46 {dimension_numbers = #tpu.dot_dimension_numbers<[1], [0], [0], [1], [0, 0, 1, 1], [], []>} : vector<8x16xbf16>, vector<16x16xbf16>, vector<8x16xf32> -> vector<8x16xf32>
    %76 = arith.addf %70, %75 : vector<8x16xf32>
    %c6 = arith.constant 6 : index
    %c0_47 = arith.constant 0 : index
    %77 = tpu.strided_load %arg9[%c6, %c0_47] {strides = array<i32: 8, 1>} : memref<64x16xf32, #tpu.memory_space<vmem>>, vector<8x16xf32>
    %78 = vector.extract_strided_slice %41 {offsets = [6, 0, 0], sizes = [1, 16, 16], strides = [1, 1, 1]} : vector<8x16x16xbf16> to vector<1x16x16xbf16>
    %79 = vector.shape_cast %78 : vector<1x16x16xbf16> to vector<16x16xbf16>
    %80 = arith.truncf %77 : vector<8x16xf32> to vector<8x16xbf16>
    %cst_48 = arith.constant dense<0.000000e+00> : vector<8x16xf32>
    %81 = tpu.matmul %80, %79, %cst_48 {dimension_numbers = #tpu.dot_dimension_numbers<[1], [0], [0], [1], [0, 0, 1, 1], [], []>} : vector<8x16xbf16>, vector<16x16xbf16>, vector<8x16xf32> -> vector<8x16xf32>
    %82 = arith.addf %76, %81 : vector<8x16xf32>
    %c7 = arith.constant 7 : index
    %c0_49 = arith.constant 0 : index
    %83 = tpu.strided_load %arg9[%c7, %c0_49] {strides = array<i32: 8, 1>} : memref<64x16xf32, #tpu.memory_space<vmem>>, vector<8x16xf32>
    %84 = vector.extract_strided_slice %41 {offsets = [7, 0, 0], sizes = [1, 16, 16], strides = [1, 1, 1]} : vector<8x16x16xbf16> to vector<1x16x16xbf16>
    %85 = vector.shape_cast %84 : vector<1x16x16xbf16> to vector<16x16xbf16>
    %86 = arith.truncf %83 : vector<8x16xf32> to vector<8x16xbf16>
    %cst_50 = arith.constant dense<0.000000e+00> : vector<8x16xf32>
    %87 = tpu.matmul %86, %85, %cst_50 {dimension_numbers = #tpu.dot_dimension_numbers<[1], [0], [0], [1], [0, 0, 1, 1], [], []>} : vector<8x16xbf16>, vector<16x16xbf16>, vector<8x16xf32> -> vector<8x16xf32>
    %88 = arith.addf %82, %87 : vector<8x16xf32>
    %c3_51 = arith.constant 3 : index
    %c0_52 = arith.constant 0 : index
    %c0_53 = arith.constant 0 : index
    %89 = vector.load %arg4[%c3_51, %c0_52, %c0_53] : memref<6x16x16xbf16, #tpu.memory_space<vmem>>, vector<1x16x16xbf16>
    %90 = vector.shape_cast %89 : vector<1x16x16xbf16> to vector<16x16xbf16>
    %c4_54 = arith.constant 4 : index
    %c0_55 = arith.constant 0 : index
    %c0_56 = arith.constant 0 : index
    %91 = vector.load %arg4[%c4_54, %c0_55, %c0_56] : memref<6x16x16xbf16, #tpu.memory_space<vmem>>, vector<1x16x16xbf16>
    %92 = vector.shape_cast %91 : vector<1x16x16xbf16> to vector<16x16xbf16>
    %c5_57 = arith.constant 5 : index
    %c0_58 = arith.constant 0 : index
    %c0_59 = arith.constant 0 : index
    %93 = vector.load %arg4[%c5_57, %c0_58, %c0_59] : memref<6x16x16xbf16, #tpu.memory_space<vmem>>, vector<1x16x16xbf16>
    %94 = vector.shape_cast %93 : vector<1x16x16xbf16> to vector<16x16xbf16>
    %95 = arith.truncf %88 : vector<8x16xf32> to vector<8x16xbf16>
    %cst_60 = arith.constant dense<0.000000e+00> : vector<8x16xf32>
    %96 = tpu.matmul %95, %90, %cst_60 {dimension_numbers = #tpu.dot_dimension_numbers<[1], [0], [0], [1], [0, 0, 1, 1], [], []>} : vector<8x16xbf16>, vector<16x16xbf16>, vector<8x16xf32> -> vector<8x16xf32>
    %cst_61 = arith.constant 0.000000e+00 : f32
    %97 = vector.broadcast %cst_61 : f32 to vector<8x16xf32>
    %98 = arith.maximumf %88, %97 : vector<8x16xf32>
    %99 = arith.truncf %98 : vector<8x16xf32> to vector<8x16xbf16>
    %cst_62 = arith.constant dense<0.000000e+00> : vector<8x16xf32>
    %100 = tpu.matmul %99, %92, %cst_62 {dimension_numbers = #tpu.dot_dimension_numbers<[1], [0], [0], [1], [0, 0, 1, 1], [], []>} : vector<8x16xbf16>, vector<16x16xbf16>, vector<8x16xf32> -> vector<8x16xf32>
    %cst_63 = arith.constant 0.000000e+00 : f32
    %101 = vector.broadcast %cst_63 : f32 to vector<8x16xf32>
    %102 = arith.maximumf %100, %101 : vector<8x16xf32>
    %103 = arith.truncf %102 : vector<8x16xf32> to vector<8x16xbf16>
    %cst_64 = arith.constant dense<0.000000e+00> : vector<8x16xf32>
    %104 = tpu.matmul %103, %94, %cst_64 {dimension_numbers = #tpu.dot_dimension_numbers<[1], [0], [0], [1], [0, 0, 1, 1], [], []>} : vector<8x16xbf16>, vector<16x16xbf16>, vector<8x16xf32> -> vector<8x16xf32>
    %105 = arith.addf %96, %104 : vector<8x16xf32>
    %cst_65 = arith.constant 0.000000e+00 : f32
    %106 = vector.broadcast %cst_65 : f32 to vector<8x16xf32>
    %107 = arith.maximumf %105, %106 : vector<8x16xf32>
    %c0_66 = arith.constant 0 : index
    %c0_67 = arith.constant 0 : index
    %108 = vector.load %arg10[%c0_66, %c0_67] : memref<8x16xf32, #tpu.memory_space<vmem>>, vector<8x16xf32>
    tpu.vector_store %arg10[%c0_66, %c0_67], %107 {strides = array<i32>} : memref<8x16xf32, #tpu.memory_space<vmem>>, vector<8x16xf32>,
    %c1_68 = arith.constant 1 : index
    %c0_69 = arith.constant 0 : index
    %c0_70 = arith.constant 0 : index
    %c0_71 = arith.constant 0 : index
    %109 = vector.load %arg5[%c1_68, %c0_69, %c0_70, %c0_71] : memref<2x8x16x16xbf16, #tpu.memory_space<vmem>>, vector<1x8x16x16xbf16>
    %110 = vector.shape_cast %109 : vector<1x8x16x16xbf16> to vector<8x16x16xbf16>
    %c0_72 = arith.constant 0 : index
    %c0_73 = arith.constant 0 : index
    %111 = vector.load %arg10[%c0_72, %c0_73] : memref<8x16xf32, #tpu.memory_space<vmem>>, vector<1x16xf32>
    %112 = vector.extract_strided_slice %110 {offsets = [0, 0, 0], sizes = [1, 16, 16], strides = [1, 1, 1]} : vector<8x16x16xbf16> to vector<1x16x16xbf16>
    %113 = vector.shape_cast %112 : vector<1x16x16xbf16> to vector<16x16xbf16>
    %114 = arith.truncf %111 : vector<1x16xf32> to vector<1x16xbf16>
    %cst_74 = arith.constant dense<0.000000e+00> : vector<1x16xf32>
    %115 = tpu.matmul %114, %113, %cst_74 {dimension_numbers = #tpu.dot_dimension_numbers<[1], [0], [0], [1], [0, 0, 1, 1], [], []>} : vector<1x16xbf16>, vector<16x16xbf16>, vector<1x16xf32> -> vector<1x16xf32>
    %c1_75 = arith.constant 1 : index
    %c0_76 = arith.constant 0 : index
    %116 = vector.load %arg10[%c1_75, %c0_76] : memref<8x16xf32, #tpu.memory_space<vmem>>, vector<1x16xf32>
    %117 = vector.extract_strided_slice %110 {offsets = [1, 0, 0], sizes = [1, 16, 16], strides = [1, 1, 1]} : vector<8x16x16xbf16> to vector<1x16x16xbf16>
    %118 = vector.shape_cast %117 : vector<1x16x16xbf16> to vector<16x16xbf16>
    %119 = arith.truncf %116 : vector<1x16xf32> to vector<1x16xbf16>
    %cst_77 = arith.constant dense<0.000000e+00> : vector<1x16xf32>
    %120 = tpu.matmul %119, %118, %cst_77 {dimension_numbers = #tpu.dot_dimension_numbers<[1], [0], [0], [1], [0, 0, 1, 1], [], []>} : vector<1x16xbf16>, vector<16x16xbf16>, vector<1x16xf32> -> vector<1x16xf32>
    %121 = arith.addf %115, %120 : vector<1x16xf32>
    %c2_78 = arith.constant 2 : index
    %c0_79 = arith.constant 0 : index
    %122 = vector.load %arg10[%c2_78, %c0_79] : memref<8x16xf32, #tpu.memory_space<vmem>>, vector<1x16xf32>
    %123 = vector.extract_strided_slice %110 {offsets = [2, 0, 0], sizes = [1, 16, 16], strides = [1, 1, 1]} : vector<8x16x16xbf16> to vector<1x16x16xbf16>
    %124 = vector.shape_cast %123 : vector<1x16x16xbf16> to vector<16x16xbf16>
    %125 = arith.truncf %122 : vector<1x16xf32> to vector<1x16xbf16>
    %cst_80 = arith.constant dense<0.000000e+00> : vector<1x16xf32>
    %126 = tpu.matmul %125, %124, %cst_80 {dimension_numbers = #tpu.dot_dimension_numbers<[1], [0], [0], [1], [0, 0, 1, 1], [], []>} : vector<1x16xbf16>, vector<16x16xbf16>, vector<1x16xf32> -> vector<1x16xf32>
    %127 = arith.addf %121, %126 : vector<1x16xf32>
    %c3_81 = arith.constant 3 : index
    %c0_82 = arith.constant 0 : index
    %128 = vector.load %arg10[%c3_81, %c0_82] : memref<8x16xf32, #tpu.memory_space<vmem>>, vector<1x16xf32>
    %129 = vector.extract_strided_slice %110 {offsets = [3, 0, 0], sizes = [1, 16, 16], strides = [1, 1, 1]} : vector<8x16x16xbf16> to vector<1x16x16xbf16>
    %130 = vector.shape_cast %129 : vector<1x16x16xbf16> to vector<16x16xbf16>
    %131 = arith.truncf %128 : vector<1x16xf32> to vector<1x16xbf16>
    %cst_83 = arith.constant dense<0.000000e+00> : vector<1x16xf32>
    %132 = tpu.matmul %131, %130, %cst_83 {dimension_numbers = #tpu.dot_dimension_numbers<[1], [0], [0], [1], [0, 0, 1, 1], [], []>} : vector<1x16xbf16>, vector<16x16xbf16>, vector<1x16xf32> -> vector<1x16xf32>
    %133 = arith.addf %127, %132 : vector<1x16xf32>
    %c4_84 = arith.constant 4 : index
    %c0_85 = arith.constant 0 : index
    %134 = vector.load %arg10[%c4_84, %c0_85] : memref<8x16xf32, #tpu.memory_space<vmem>>, vector<1x16xf32>
    %135 = vector.extract_strided_slice %110 {offsets = [4, 0, 0], sizes = [1, 16, 16], strides = [1, 1, 1]} : vector<8x16x16xbf16> to vector<1x16x16xbf16>
    %136 = vector.shape_cast %135 : vector<1x16x16xbf16> to vector<16x16xbf16>
    %137 = arith.truncf %134 : vector<1x16xf32> to vector<1x16xbf16>
    %cst_86 = arith.constant dense<0.000000e+00> : vector<1x16xf32>
    %138 = tpu.matmul %137, %136, %cst_86 {dimension_numbers = #tpu.dot_dimension_numbers<[1], [0], [0], [1], [0, 0, 1, 1], [], []>} : vector<1x16xbf16>, vector<16x16xbf16>, vector<1x16xf32> -> vector<1x16xf32>
    %139 = arith.addf %133, %138 : vector<1x16xf32>
    %c5_87 = arith.constant 5 : index
    %c0_88 = arith.constant 0 : index
    %140 = vector.load %arg10[%c5_87, %c0_88] : memref<8x16xf32, #tpu.memory_space<vmem>>, vector<1x16xf32>
    %141 = vector.extract_strided_slice %110 {offsets = [5, 0, 0], sizes = [1, 16, 16], strides = [1, 1, 1]} : vector<8x16x16xbf16> to vector<1x16x16xbf16>
    %142 = vector.shape_cast %141 : vector<1x16x16xbf16> to vector<16x16xbf16>
    %143 = arith.truncf %140 : vector<1x16xf32> to vector<1x16xbf16>
    %cst_89 = arith.constant dense<0.000000e+00> : vector<1x16xf32>
    %144 = tpu.matmul %143, %142, %cst_89 {dimension_numbers = #tpu.dot_dimension_numbers<[1], [0], [0], [1], [0, 0, 1, 1], [], []>} : vector<1x16xbf16>, vector<16x16xbf16>, vector<1x16xf32> -> vector<1x16xf32>
    %145 = arith.addf %139, %144 : vector<1x16xf32>
    %c6_90 = arith.constant 6 : index
    %c0_91 = arith.constant 0 : index
    %146 = vector.load %arg10[%c6_90, %c0_91] : memref<8x16xf32, #tpu.memory_space<vmem>>, vector<1x16xf32>
    %147 = vector.extract_strided_slice %110 {offsets = [6, 0, 0], sizes = [1, 16, 16], strides = [1, 1, 1]} : vector<8x16x16xbf16> to vector<1x16x16xbf16>
    %148 = vector.shape_cast %147 : vector<1x16x16xbf16> to vector<16x16xbf16>
    %149 = arith.truncf %146 : vector<1x16xf32> to vector<1x16xbf16>
    %cst_92 = arith.constant dense<0.000000e+00> : vector<1x16xf32>
    %150 = tpu.matmul %149, %148, %cst_92 {dimension_numbers = #tpu.dot_dimension_numbers<[1], [0], [0], [1], [0, 0, 1, 1], [], []>} : vector<1x16xbf16>, vector<16x16xbf16>, vector<1x16xf32> -> vector<1x16xf32>
    %151 = arith.addf %145, %150 : vector<1x16xf32>
    %c7_93 = arith.constant 7 : index
    %c0_94 = arith.constant 0 : index
    %152 = vector.load %arg10[%c7_93, %c0_94] : memref<8x16xf32, #tpu.memory_space<vmem>>, vector<1x16xf32>
    %153 = vector.extract_strided_slice %110 {offsets = [7, 0, 0], sizes = [1, 16, 16], strides = [1, 1, 1]} : vector<8x16x16xbf16> to vector<1x16x16xbf16>
    %154 = vector.shape_cast %153 : vector<1x16x16xbf16> to vector<16x16xbf16>
    %155 = arith.truncf %152 : vector<1x16xf32> to vector<1x16xbf16>
    %cst_95 = arith.constant dense<0.000000e+00> : vector<1x16xf32>
    %156 = tpu.matmul %155, %154, %cst_95 {dimension_numbers = #tpu.dot_dimension_numbers<[1], [0], [0], [1], [0, 0, 1, 1], [], []>} : vector<1x16xbf16>, vector<16x16xbf16>, vector<1x16xf32> -> vector<1x16xf32>
    %157 = arith.addf %151, %156 : vector<1x16xf32>
    %c0_96 = arith.constant 0 : index
    %c0_97 = arith.constant 0 : index
    %c0_98 = arith.constant 0 : index
    %158 = vector.load %arg6[%c0_96, %c0_97, %c0_98] : memref<4x16x128xbf16, #tpu.memory_space<vmem>>, vector<1x16x128xbf16>
    %159 = vector.shape_cast %158 : vector<1x16x128xbf16> to vector<16x128xbf16>
    %c1_99 = arith.constant 1 : index
    %c0_100 = arith.constant 0 : index
    %c0_101 = arith.constant 0 : index
    %160 = vector.load %arg6[%c1_99, %c0_100, %c0_101] : memref<4x16x128xbf16, #tpu.memory_space<vmem>>, vector<1x16x128xbf16>
    %161 = vector.shape_cast %160 : vector<1x16x128xbf16> to vector<16x128xbf16>
    %cst_102 = arith.constant 0.000000e+00 : f32
    %162 = vector.broadcast %cst_102 : f32 to vector<1x16xf32>
    %163 = arith.maximumf %157, %162 : vector<1x16xf32>
    %164 = arith.truncf %163 : vector<1x16xf32> to vector<1x16xbf16>
    %cst_103 = arith.constant dense<0.000000e+00> : vector<1x128xf32>
    %165 = tpu.matmul %164, %159, %cst_103 {dimension_numbers = #tpu.dot_dimension_numbers<[1], [0], [0], [1], [0, 0, 1, 1], [], []>} : vector<1x16xbf16>, vector<16x128xbf16>, vector<1x128xf32> -> vector<1x128xf32>
    %cst_104 = arith.constant 0.000000e+00 : f32
    %166 = vector.broadcast %cst_104 : f32 to vector<1x16xf32>
    %167 = arith.maximumf %157, %166 : vector<1x16xf32>
    %168 = arith.truncf %167 : vector<1x16xf32> to vector<1x16xbf16>
    %cst_105 = arith.constant dense<0.000000e+00> : vector<1x128xf32>
    %169 = tpu.matmul %168, %161, %cst_105 {dimension_numbers = #tpu.dot_dimension_numbers<[1], [0], [0], [1], [0, 0, 1, 1], [], []>} : vector<1x16xbf16>, vector<16x128xbf16>, vector<1x128xf32> -> vector<1x128xf32>
    %170 = arith.addf %165, %169 : vector<1x128xf32>
    %171 = vector.extract_strided_slice %170 {offsets = [0, 0], sizes = [1, 16], strides = [1, 1]} : vector<1x128xf32> to vector<1x16xf32>
    %c0_106 = arith.constant 0 : index
    %c0_107 = arith.constant 0 : index
    %172 = vector.load %arg11[%c0_106, %c0_107] : memref<8x16xf32, #tpu.memory_space<vmem>>, vector<1x16xf32>
    tpu.vector_store %arg11[%c0_106, %c0_107], %171 {strides = array<i32>} : memref<8x16xf32, #tpu.memory_space<vmem>>, vector<1x16xf32>,
    %173 = vector.extract_strided_slice %170 {offsets = [0, 16], sizes = [1, 16], strides = [1, 1]} : vector<1x128xf32> to vector<1x16xf32>
    %c1_108 = arith.constant 1 : index
    %c0_109 = arith.constant 0 : index
    %174 = vector.load %arg11[%c1_108, %c0_109] : memref<8x16xf32, #tpu.memory_space<vmem>>, vector<1x16xf32>
    tpu.vector_store %arg11[%c1_108, %c0_109], %173 {strides = array<i32>} : memref<8x16xf32, #tpu.memory_space<vmem>>, vector<1x16xf32>,
    %175 = vector.extract_strided_slice %170 {offsets = [0, 32], sizes = [1, 16], strides = [1, 1]} : vector<1x128xf32> to vector<1x16xf32>
    %c2_110 = arith.constant 2 : index
    %c0_111 = arith.constant 0 : index
    %176 = vector.load %arg11[%c2_110, %c0_111] : memref<8x16xf32, #tpu.memory_space<vmem>>, vector<1x16xf32>
    tpu.vector_store %arg11[%c2_110, %c0_111], %175 {strides = array<i32>} : memref<8x16xf32, #tpu.memory_space<vmem>>, vector<1x16xf32>,
    %177 = vector.extract_strided_slice %170 {offsets = [0, 48], sizes = [1, 16], strides = [1, 1]} : vector<1x128xf32> to vector<1x16xf32>
    %c3_112 = arith.constant 3 : index
    %c0_113 = arith.constant 0 : index
    %178 = vector.load %arg11[%c3_112, %c0_113] : memref<8x16xf32, #tpu.memory_space<vmem>>, vector<1x16xf32>
    tpu.vector_store %arg11[%c3_112, %c0_113], %177 {strides = array<i32>} : memref<8x16xf32, #tpu.memory_space<vmem>>, vector<1x16xf32>,
    %179 = vector.extract_strided_slice %170 {offsets = [0, 64], sizes = [1, 16], strides = [1, 1]} : vector<1x128xf32> to vector<1x16xf32>
    %c4_114 = arith.constant 4 : index
    %c0_115 = arith.constant 0 : index
    %180 = vector.load %arg11[%c4_114, %c0_115] : memref<8x16xf32, #tpu.memory_space<vmem>>, vector<1x16xf32>
    tpu.vector_store %arg11[%c4_114, %c0_115], %179 {strides = array<i32>} : memref<8x16xf32, #tpu.memory_space<vmem>>, vector<1x16xf32>,
    %181 = vector.extract_strided_slice %170 {offsets = [0, 80], sizes = [1, 16], strides = [1, 1]} : vector<1x128xf32> to vector<1x16xf32>
    %c5_116 = arith.constant 5 : index
    %c0_117 = arith.constant 0 : index
    %182 = vector.load %arg11[%c5_116, %c0_117] : memref<8x16xf32, #tpu.memory_space<vmem>>, vector<1x16xf32>
    tpu.vector_store %arg11[%c5_116, %c0_117], %181 {strides = array<i32>} : memref<8x16xf32, #tpu.memory_space<vmem>>, vector<1x16xf32>,
    %183 = vector.extract_strided_slice %170 {offsets = [0, 96], sizes = [1, 16], strides = [1, 1]} : vector<1x128xf32> to vector<1x16xf32>
    %c6_118 = arith.constant 6 : index
    %c0_119 = arith.constant 0 : index
    %184 = vector.load %arg11[%c6_118, %c0_119] : memref<8x16xf32, #tpu.memory_space<vmem>>, vector<1x16xf32>
    tpu.vector_store %arg11[%c6_118, %c0_119], %183 {strides = array<i32>} : memref<8x16xf32, #tpu.memory_space<vmem>>, vector<1x16xf32>,
    %185 = vector.extract_strided_slice %170 {offsets = [0, 112], sizes = [1, 16], strides = [1, 1]} : vector<1x128xf32> to vector<1x16xf32>
    %c7_120 = arith.constant 7 : index
    %c0_121 = arith.constant 0 : index
    %186 = vector.load %arg11[%c7_120, %c0_121] : memref<8x16xf32, #tpu.memory_space<vmem>>, vector<1x16xf32>
    tpu.vector_store %arg11[%c7_120, %c0_121], %185 {strides = array<i32>} : memref<8x16xf32, #tpu.memory_space<vmem>>, vector<1x16xf32>,
    %c0_122 = arith.constant 0 : index
    %c0_123 = arith.constant 0 : index
    %187 = vector.load %arg11[%c0_122, %c0_123] : memref<8x16xf32, #tpu.memory_space<vmem>>, vector<8x16xf32>
    %c2_124 = arith.constant 2 : index
    %c0_125 = arith.constant 0 : index
    %c0_126 = arith.constant 0 : index
    %188 = vector.load %arg6[%c2_124, %c0_125, %c0_126] : memref<4x16x128xbf16, #tpu.memory_space<vmem>>, vector<1x16x128xbf16>
    %189 = vector.shape_cast %188 : vector<1x16x128xbf16> to vector<16x128xbf16>
    %c3_127 = arith.constant 3 : index
    %c0_128 = arith.constant 0 : index
    %c0_129 = arith.constant 0 : index
    %190 = vector.load %arg6[%c3_127, %c0_128, %c0_129] : memref<4x16x128xbf16, #tpu.memory_space<vmem>>, vector<1x16x128xbf16>
    %191 = vector.shape_cast %190 : vector<1x16x128xbf16> to vector<16x128xbf16>
    %cst_130 = arith.constant 0.000000e+00 : f32
    %192 = vector.broadcast %cst_130 : f32 to vector<8x16xf32>
    %193 = arith.maximumf %187, %192 : vector<8x16xf32>
    %194 = arith.truncf %193 : vector<8x16xf32> to vector<8x16xbf16>
    %cst_131 = arith.constant dense<0.000000e+00> : vector<8x128xf32>
    %195 = tpu.matmul %194, %189, %cst_131 {dimension_numbers = #tpu.dot_dimension_numbers<[1], [0], [0], [1], [0, 0, 1, 1], [], []>} : vector<8x16xbf16>, vector<16x128xbf16>, vector<8x128xf32> -> vector<8x128xf32>
    %cst_132 = arith.constant 0.000000e+00 : f32
    %196 = vector.broadcast %cst_132 : f32 to vector<8x16xf32>
    %197 = arith.maximumf %88, %196 : vector<8x16xf32>
    %198 = arith.truncf %197 : vector<8x16xf32> to vector<8x16xbf16>
    %cst_133 = arith.constant dense<0.000000e+00> : vector<8x128xf32>
    %199 = tpu.matmul %198, %191, %cst_133 {dimension_numbers = #tpu.dot_dimension_numbers<[1], [0], [0], [1], [0, 0, 1, 1], [], []>} : vector<8x16xbf16>, vector<16x128xbf16>, vector<8x128xf32> -> vector<8x128xf32>
    %200 = arith.addf %195, %199 : vector<8x128xf32>
    %201 = vector.extract_strided_slice %200 {offsets = [0, 0], sizes = [8, 16], strides = [1, 1]} : vector<8x128xf32> to vector<8x16xf32>
    %c0_134 = arith.constant 0 : index
    %c0_135 = arith.constant 0 : index
    %202 = tpu.strided_load %arg12[%c0_134, %c0_135] {strides = array<i32: 8, 1>} : memref<64x16xf32, #tpu.memory_space<vmem>>, vector<8x16xf32>
    tpu.strided_store %arg12[%c0_134, %c0_135], %201 {strides = array<i32: 8, 1>} : memref<64x16xf32, #tpu.memory_space<vmem>>, vector<8x16xf32>
    %203 = vector.extract_strided_slice %200 {offsets = [0, 16], sizes = [8, 16], strides = [1, 1]} : vector<8x128xf32> to vector<8x16xf32>
    %c1_136 = arith.constant 1 : index
    %c0_137 = arith.constant 0 : index
    %204 = tpu.strided_load %arg12[%c1_136, %c0_137] {strides = array<i32: 8, 1>} : memref<64x16xf32, #tpu.memory_space<vmem>>, vector<8x16xf32>
    tpu.strided_store %arg12[%c1_136, %c0_137], %203 {strides = array<i32: 8, 1>} : memref<64x16xf32, #tpu.memory_space<vmem>>, vector<8x16xf32>
    %205 = vector.extract_strided_slice %200 {offsets = [0, 32], sizes = [8, 16], strides = [1, 1]} : vector<8x128xf32> to vector<8x16xf32>
    %c2_138 = arith.constant 2 : index
    %c0_139 = arith.constant 0 : index
    %206 = tpu.strided_load %arg12[%c2_138, %c0_139] {strides = array<i32: 8, 1>} : memref<64x16xf32, #tpu.memory_space<vmem>>, vector<8x16xf32>
    tpu.strided_store %arg12[%c2_138, %c0_139], %205 {strides = array<i32: 8, 1>} : memref<64x16xf32, #tpu.memory_space<vmem>>, vector<8x16xf32>
    %207 = vector.extract_strided_slice %200 {offsets = [0, 48], sizes = [8, 16], strides = [1, 1]} : vector<8x128xf32> to vector<8x16xf32>
    %c3_140 = arith.constant 3 : index
    %c0_141 = arith.constant 0 : index
    %208 = tpu.strided_load %arg12[%c3_140, %c0_141] {strides = array<i32: 8, 1>} : memref<64x16xf32, #tpu.memory_space<vmem>>, vector<8x16xf32>
    tpu.strided_store %arg12[%c3_140, %c0_141], %207 {strides = array<i32: 8, 1>} : memref<64x16xf32, #tpu.memory_space<vmem>>, vector<8x16xf32>
    %209 = vector.extract_strided_slice %200 {offsets = [0, 64], sizes = [8, 16], strides = [1, 1]} : vector<8x128xf32> to vector<8x16xf32>
    %c4_142 = arith.constant 4 : index
    %c0_143 = arith.constant 0 : index
    %210 = tpu.strided_load %arg12[%c4_142, %c0_143] {strides = array<i32: 8, 1>} : memref<64x16xf32, #tpu.memory_space<vmem>>, vector<8x16xf32>
    tpu.strided_store %arg12[%c4_142, %c0_143], %209 {strides = array<i32: 8, 1>} : memref<64x16xf32, #tpu.memory_space<vmem>>, vector<8x16xf32>
    %211 = vector.extract_strided_slice %200 {offsets = [0, 80], sizes = [8, 16], strides = [1, 1]} : vector<8x128xf32> to vector<8x16xf32>
    %c5_144 = arith.constant 5 : index
    %c0_145 = arith.constant 0 : index
    %212 = tpu.strided_load %arg12[%c5_144, %c0_145] {strides = array<i32: 8, 1>} : memref<64x16xf32, #tpu.memory_space<vmem>>, vector<8x16xf32>
    tpu.strided_store %arg12[%c5_144, %c0_145], %211 {strides = array<i32: 8, 1>} : memref<64x16xf32, #tpu.memory_space<vmem>>, vector<8x16xf32>
    %213 = vector.extract_strided_slice %200 {offsets = [0, 96], sizes = [8, 16], strides = [1, 1]} : vector<8x128xf32> to vector<8x16xf32>
    %c6_146 = arith.constant 6 : index
    %c0_147 = arith.constant 0 : index
    %214 = tpu.strided_load %arg12[%c6_146, %c0_147] {strides = array<i32: 8, 1>} : memref<64x16xf32, #tpu.memory_space<vmem>>, vector<8x16xf32>
    tpu.strided_store %arg12[%c6_146, %c0_147], %213 {strides = array<i32: 8, 1>} : memref<64x16xf32, #tpu.memory_space<vmem>>, vector<8x16xf32>
    %215 = vector.extract_strided_slice %200 {offsets = [0, 112], sizes = [8, 16], strides = [1, 1]} : vector<8x128xf32> to vector<8x16xf32>
    %c7_148 = arith.constant 7 : index
    %c0_149 = arith.constant 0 : index
    %216 = tpu.strided_load %arg12[%c7_148, %c0_149] {strides = array<i32: 8, 1>} : memref<64x16xf32, #tpu.memory_space<vmem>>, vector<8x16xf32>
    tpu.strided_store %arg12[%c7_148, %c0_149], %215 {strides = array<i32: 8, 1>} : memref<64x16xf32, #tpu.memory_space<vmem>>, vector<8x16xf32>
    %c0_150 = arith.constant 0 : index
    %c0_151 = arith.constant 0 : index
    %217 = vector.load %arg12[%c0_150, %c0_151] : memref<64x16xf32, #tpu.memory_space<vmem>>, vector<64x16xf32>
    %c0_152 = arith.constant 0 : index
    %c0_153 = arith.constant 0 : index
    %c0_154 = arith.constant 0 : index
    %218 = vector.load %arg7[%c0_152, %c0_153, %c0_154] : memref<2x16x8xbf16, #tpu.memory_space<vmem>>, vector<1x16x8xbf16>
    %219 = vector.shape_cast %218 : vector<1x16x8xbf16> to vector<16x8xbf16>
    %c1_155 = arith.constant 1 : index
    %c0_156 = arith.constant 0 : index
    %c0_157 = arith.constant 0 : index
    %220 = vector.load %arg7[%c1_155, %c0_156, %c0_157] : memref<2x16x8xbf16, #tpu.memory_space<vmem>>, vector<1x16x8xbf16>
    %221 = vector.shape_cast %220 : vector<1x16x8xbf16> to vector<16x8xbf16>
    %cst_158 = arith.constant 0.000000e+00 : f32
    %222 = vector.broadcast %cst_158 : f32 to vector<64x16xf32>
    %223 = arith.maximumf %217, %222 : vector<64x16xf32>
    %224 = arith.truncf %223 : vector<64x16xf32> to vector<64x16xbf16>
    %cst_159 = arith.constant dense<0.000000e+00> : vector<64x8xf32>
    %225 = tpu.matmul %224, %219, %cst_159 {dimension_numbers = #tpu.dot_dimension_numbers<[1], [0], [0], [1], [0, 0, 1, 1], [], []>} : vector<64x16xbf16>, vector<16x8xbf16>, vector<64x8xf32> -> vector<64x8xf32>
    %cst_160 = arith.constant 0.000000e+00 : f32
    %226 = vector.broadcast %cst_160 : f32 to vector<64x16xf32>
    %227 = arith.maximumf %19, %226 : vector<64x16xf32>
    %228 = arith.truncf %227 : vector<64x16xf32> to vector<64x16xbf16>
    %cst_161 = arith.constant dense<0.000000e+00> : vector<64x8xf32>
    %229 = tpu.matmul %228, %221, %cst_161 {dimension_numbers = #tpu.dot_dimension_numbers<[1], [0], [0], [1], [0, 0, 1, 1], [], []>} : vector<64x16xbf16>, vector<16x8xbf16>, vector<64x8xf32> -> vector<64x8xf32>
    %230 = arith.addf %225, %229 : vector<64x8xf32>
    %231 = arith.negf %230 : vector<64x8xf32>
    %232 = math.exp %231 : vector<64x8xf32>
    %cst_162 = arith.constant 1.000000e+00 : f32
    %233 = vector.broadcast %cst_162 : f32 to vector<64x8xf32>
    %234 = arith.addf %233, %232 : vector<64x8xf32>
    %235 = arith.divf %233, %234 : vector<64x8xf32>
    %c0_163 = arith.constant 0 : index
    %c0_164 = arith.constant 0 : index
    %c0_165 = arith.constant 0 : index
    %236 = vector.load %arg8[%c0_163, %c0_164, %c0_165] : memref<1x64x8xf32, #tpu.memory_space<vmem>>, vector<1x64x8xf32>
    %237 = vector.shape_cast %236 : vector<1x64x8xf32> to vector<64x8xf32>
    %238 = vector.shape_cast %235 : vector<64x8xf32> to vector<1x64x8xf32>
    tpu.vector_store %arg8[%c0_163, %c0_164, %c0_165], %238 {strides = array<i32>} : memref<1x64x8xf32, #tpu.memory_space<vmem>>, vector<1x64x8xf32>,
    return
  }
  func.func @transform_0(%arg0: i32) -> (i32, i32, i32) {
    %c0_i32 = arith.constant 0 : i32
    %c0_i32_0 = arith.constant 0 : i32
    %c0_i32_1 = arith.constant 0 : i32
    return %arg0, %c0_i32, %c0_i32_0 : i32, i32, i32
  }
  func.func @transform_1(%arg0: i32) -> (i32, i32) {
    %c0_i32 = arith.constant 0 : i32
    %c0_i32_0 = arith.constant 0 : i32
    %c0_i32_1 = arith.constant 0 : i32
    return %c0_i32, %c0_i32_0 : i32, i32
  }
  func.func @transform_2(%arg0: i32) -> (i32, i32) {
    %c0_i32 = arith.constant 0 : i32
    %c0_i32_0 = arith.constant 0 : i32
    %c0_i32_1 = arith.constant 0 : i32
    return %c0_i32, %c0_i32_0 : i32, i32
  }
  func.func @transform_3(%arg0: i32) -> (i32, i32, i32) {
    %c0_i32 = arith.constant 0 : i32
    %c0_i32_0 = arith.constant 0 : i32
    %c0_i32_1 = arith.constant 0 : i32
    %c0_i32_2 = arith.constant 0 : i32
    return %c0_i32, %c0_i32_0, %c0_i32_1 : i32, i32, i32
  }
  func.func @transform_4(%arg0: i32) -> (i32, i32, i32, i32) {
    %c0_i32 = arith.constant 0 : i32
    %c0_i32_0 = arith.constant 0 : i32
    %c0_i32_1 = arith.constant 0 : i32
    %c0_i32_2 = arith.constant 0 : i32
    %c0_i32_3 = arith.constant 0 : i32
    return %c0_i32, %c0_i32_0, %c0_i32_1, %c0_i32_2 : i32, i32, i32, i32
  }
  func.func @transform_5(%arg0: i32) -> (i32, i32, i32) {
    %c0_i32 = arith.constant 0 : i32
    %c0_i32_0 = arith.constant 0 : i32
    %c0_i32_1 = arith.constant 0 : i32
    %c0_i32_2 = arith.constant 0 : i32
    return %c0_i32, %c0_i32_0, %c0_i32_1 : i32, i32, i32
  }
  func.func @transform_6(%arg0: i32) -> (i32, i32, i32) {
    %c0_i32 = arith.constant 0 : i32
    %c0_i32_0 = arith.constant 0 : i32
    %c0_i32_1 = arith.constant 0 : i32
    %c0_i32_2 = arith.constant 0 : i32
    return %c0_i32, %c0_i32_0, %c0_i32_1 : i32, i32, i32
  }
  func.func @transform_7(%arg0: i32) -> (i32, i32, i32) {
    %c0_i32 = arith.constant 0 : i32
    %c0_i32_0 = arith.constant 0 : i32
    %c0_i32_1 = arith.constant 0 : i32
    return %arg0, %c0_i32, %c0_i32_0 : i32, i32, i32
  }
}

</mosaic_0001>

<llo_original>
// kernel: autoencoder_forward.1
$region0: #{autoencoder_forward.1}
  #allocation0 [shape = 'u32[]', space=smem, size = 0x4, offset = 0x4, fixed_abs, tag = 'smem constant byte address 0x4 - core index']
  #allocation1 [shape = 'u32[144,128]{1,0:T(1,128)}', space=vmem, size = 0x12000, scoped, tag = 'internal scratch']
  #allocation2 [shape = 'f32[64,16]{1,0:T(8,128)}', space=vmem, size = 0x8000, scoped, tag = 'scratch operand']
  #allocation3 [shape = 'f32[8,16]{1,0:T(8,128)}', space=vmem, size = 0x1000, scoped, tag = 'scratch operand']
  #allocation4 [shape = 'f32[8,16]{1,0:T(8,128)}', space=vmem, size = 0x1000, scoped, tag = 'scratch operand']
  #allocation5 [shape = 'f32[64,16]{1,0:T(8,128)}', space=vmem, size = 0x8000, scoped, tag = 'scratch operand']
  %s0 = inlined_call_operand.vmem [shape: f32[2,64,8], index: 0, kind: input, shape index: {}]
  %s1 = inlined_call_operand.vmem [shape: f32[1,3], index: 1, kind: input, shape index: {}]
  %s2 = inlined_call_operand.vmem [shape: f32[8,16], index: 2, kind: input, shape index: {}]
  %s3 = inlined_call_operand.vmem [shape: bf16[6,16,16], index: 3, kind: input, shape index: {}]
  %s4 = inlined_call_operand.vmem [shape: bf16[2,8,16,16], index: 4, kind: input, shape index: {}]
  %s5 = inlined_call_operand.vmem [shape: bf16[4,16,128], index: 5, kind: input, shape index: {}]
  %s6 = inlined_call_operand.vmem [shape: bf16[2,16,8], index: 6, kind: input, shape index: {}]
  %s7 = inlined_call_operand.vmem [shape: f32[2,64,8], index: 7, kind: output, shape index: {}]
  %s8 = sld [smem:[#allocation0]]
  $region61: #{autoencoder_forward.1} parent=0
    _
  %s10 = ssub.s32 1, %s8
  %s11 = scalar_select 0, %s10, %s8
  loop: start=0, step=1, limit=4
  $region2: #{autoencoder_forward.1} parent=0 // loop_pre_header
    _
  $region3: #{autoencoder_forward.1} parent=0 // loop_header
    %s13 = sphi 0, %s17
    %p14 = scmp.ge.s32.totalorder %s13, 4
    %s23 = sphi 0, %s25
    %s26 = sphi 0, %s23
    %s27 = sphi 0, %s26
    %s43 = sphi 0, %s27
    %s47 = sphi 0, %s47
    %s49 = sphi 0, %s47
    %s50 = sphi 0, %s49
    %s64 = sphi 0, %s50
    %s68 = sphi 0, %s68
    %s70 = sphi 0, %s68
    %s71 = sphi 0, %s70
    %s85 = sphi 0, %s71
    %s89 = sphi 0, %s89
    %s91 = sphi 0, %s89
    %s92 = sphi 0, %s91
    %s106 = sphi 0, %s92
    %s110 = sphi 0, %s110
    %s112 = sphi 0, %s110
    %s113 = sphi 0, %s112
    %s127 = sphi 0, %s113
    %s131 = sphi 0, %s131
    %s133 = sphi 0, %s131
    %s134 = sphi 0, %s133
    %s148 = sphi 0, %s134
    %s152 = sphi 0, %s152
    %s154 = sphi 0, %s152
    %s155 = sphi 0, %s154
    %s169 = sphi 0, %s155
    %s175 = sphi 0, %s177
    %s178 = sphi 0, %s175
    %s179 = sphi 0, %s178
    %s195 = sphi 0, %s179
  $region4: #{autoencoder_forward.1} parent=0 // loop_header_branch
    %16 = sbr.rel (%p14) target = $region8
  $region5: #{autoencoder_forward.1} parent=0 // loop_body
    %s18 = ssub.s32 %s13, 1
    %s19 = ssub.s32 %s13, 2
    %s20 = sadd.s32 %s13, 1
    %s21 = ssub.s32 %s13, %s20
    %p22 = scmp.eq.s32.totalorder %s21, 0
    %s24 = sadd.s32 %s23, 1
    %s25 = scalar_select %p22, %s23, %s24
    %p28 = pneg %p22
    %p29 = scmp.eq.s32.totalorder %s13, 1
    %p30 = por %p28, %p29
    %p31 = scmp.ne.s32.totalorder %s23, %s26
    %p32 = scmp.eq.s32.totalorder %s13, 0
    %p33 = por %p31, %p32
    %p34 = scmp.ne.s32.totalorder %s23, %s26
    %p35 = scmp.eq.s32.totalorder %s18, 1
    %p36 = por %p34, %p35
    %p37 = scmp.ne.s32.totalorder %s26, %s27
    %p38 = scmp.eq.s32.totalorder %s18, 0
    %p39 = por %p37, %p38
    %p40 = scmp.ne.s32.totalorder %s26, %s27
    %p41 = scmp.eq.s32.totalorder %s19, 1
    %p42 = por %p40, %p41
    %p44 = scmp.ne.s32.totalorder %s27, %s43
    %p45 = scmp.eq.s32.totalorder %s19, 0
    %p46 = por %p44, %p45
    %s48 = sadd.s32 %s47, 1
    %p51 = scmp.eq.s32.totalorder %s13, 1
    %p52 = scmp.ne.s32.totalorder %s47, %s49
    %p53 = scmp.eq.s32.totalorder %s13, 0
    %p54 = por %p52, %p53
    %p55 = scmp.ne.s32.totalorder %s47, %s49
    %p56 = scmp.eq.s32.totalorder %s18, 1
    %p57 = por %p55, %p56
    %p58 = scmp.ne.s32.totalorder %s49, %s50
    %p59 = scmp.eq.s32.totalorder %s18, 0
    %p60 = por %p58, %p59
    %p61 = scmp.ne.s32.totalorder %s49, %s50
    %p62 = scmp.eq.s32.totalorder %s19, 1
    %p63 = por %p61, %p62
    %p65 = scmp.ne.s32.totalorder %s50, %s64
    %p66 = scmp.eq.s32.totalorder %s19, 0
    %p67 = por %p65, %p66
    %s69 = sadd.s32 %s68, 1
    %p72 = scmp.eq.s32.totalorder %s13, 1
    %p73 = scmp.ne.s32.totalorder %s68, %s70
    %p74 = scmp.eq.s32.totalorder %s13, 0
    %p75 = por %p73, %p74
    %p76 = scmp.ne.s32.totalorder %s68, %s70
    %p77 = scmp.eq.s32.totalorder %s18, 1
    %p78 = por %p76, %p77
    %p79 = scmp.ne.s32.totalorder %s70, %s71
    %p80 = scmp.eq.s32.totalorder %s18, 0
    %p81 = por %p79, %p80
    %p82 = scmp.ne.s32.totalorder %s70, %s71
    %p83 = scmp.eq.s32.totalorder %s19, 1
    %p84 = por %p82, %p83
    %p86 = scmp.ne.s32.totalorder %s71, %s85
    %p87 = scmp.eq.s32.totalorder %s19, 0
    %p88 = por %p86, %p87
    %s90 = sadd.s32 %s89, 1
    %p93 = scmp.eq.s32.totalorder %s13, 1
    %p94 = scmp.ne.s32.totalorder %s89, %s91
    %p95 = scmp.eq.s32.totalorder %s13, 0
    %p96 = por %p94, %p95
    %p97 = scmp.ne.s32.totalorder %s89, %s91
    %p98 = scmp.eq.s32.totalorder %s18, 1
    %p99 = por %p97, %p98
    %p100 = scmp.ne.s32.totalorder %s91, %s92
    %p101 = scmp.eq.s32.totalorder %s18, 0
    %p102 = por %p100, %p101
    %p103 = scmp.ne.s32.totalorder %s91, %s92
    %p104 = scmp.eq.s32.totalorder %s19, 1
    %p105 = por %p103, %p104
    %p107 = scmp.ne.s32.totalorder %s92, %s106
    %p108 = scmp.eq.s32.totalorder %s19, 0
    %p109 = por %p107, %p108
    %s111 = sadd.s32 %s110, 1
    %p114 = scmp.eq.s32.totalorder %s13, 1
    %p115 = scmp.ne.s32.totalorder %s110, %s112
    %p116 = scmp.eq.s32.totalorder %s13, 0
    %p117 = por %p115, %p116
    %p118 = scmp.ne.s32.totalorder %s110, %s112
    %p119 = scmp.eq.s32.totalorder %s18, 1
    %p120 = por %p118, %p119
    %p121 = scmp.ne.s32.totalorder %s112, %s113
    %p122 = scmp.eq.s32.totalorder %s18, 0
    %p123 = por %p121, %p122
    %p124 = scmp.ne.s32.totalorder %s112, %s113
    %p125 = scmp.eq.s32.totalorder %s19, 1
    %p126 = por %p124, %p125
    %p128 = scmp.ne.s32.totalorder %s113, %s127
    %p129 = scmp.eq.s32.totalorder %s19, 0
    %p130 = por %p128, %p129
    %s132 = sadd.s32 %s131, 1
    %p135 = scmp.eq.s32.totalorder %s13, 1
    %p136 = scmp.ne.s32.totalorder %s131, %s133
    %p137 = scmp.eq.s32.totalorder %s13, 0
    %p138 = por %p136, %p137
    %p139 = scmp.ne.s32.totalorder %s131, %s133
    %p140 = scmp.eq.s32.totalorder %s18, 1
    %p141 = por %p139, %p140
    %p142 = scmp.ne.s32.totalorder %s133, %s134
    %p143 = scmp.eq.s32.totalorder %s18, 0
    %p144 = por %p142, %p143
    %p145 = scmp.ne.s32.totalorder %s133, %s134
    %p146 = scmp.eq.s32.totalorder %s19, 1
    %p147 = por %p145, %p146
    %p149 = scmp.ne.s32.totalorder %s134, %s148
    %p150 = scmp.eq.s32.totalorder %s19, 0
    %p151 = por %p149, %p150
    %s153 = sadd.s32 %s152, 1
    %p156 = scmp.eq.s32.totalorder %s13, 1
    %p157 = scmp.ne.s32.totalorder %s152, %s154
    %p158 = scmp.eq.s32.totalorder %s13, 0
    %p159 = por %p157, %p158
    %p160 = scmp.ne.s32.totalorder %s152, %s154
    %p161 = scmp.eq.s32.totalorder %s18, 1
    %p162 = por %p160, %p161
    %p163 = scmp.ne.s32.totalorder %s154, %s155
    %p164 = scmp.eq.s32.totalorder %s18, 0
    %p165 = por %p163, %p164
    %p166 = scmp.ne.s32.totalorder %s154, %s155
    %p167 = scmp.eq.s32.totalorder %s19, 1
    %p168 = por %p166, %p167
    %p170 = scmp.ne.s32.totalorder %s155, %s169
    %p171 = scmp.eq.s32.totalorder %s19, 0
    %p172 = por %p170, %p171
    %s173 = ssub.s32 %s13, %s20
    %p174 = scmp.eq.s32.totalorder %s173, 0
    %s176 = sadd.s32 %s175, 1
    %s177 = scalar_select %p174, %s175, %s176
    %p180 = pneg %p174
    %p181 = scmp.eq.s32.totalorder %s13, 1
    %p182 = por %p180, %p181
    %p183 = scmp.ne.s32.totalorder %s175, %s178
    %p184 = scmp.eq.s32.totalorder %s13, 0
    %p185 = por %p183, %p184
    %p186 = scmp.ne.s32.totalorder %s175, %s178
    %p187 = scmp.eq.s32.totalorder %s18, 1
    %p188 = por %p186, %p187
    %p189 = scmp.ne.s32.totalorder %s178, %s179
    %p190 = scmp.eq.s32.totalorder %s18, 0
    %p191 = por %p189, %p190
    %p192 = scmp.ne.s32.totalorder %s178, %s179
    %p193 = scmp.eq.s32.totalorder %s19, 1
    %p194 = por %p192, %p193
    %p196 = scmp.ne.s32.totalorder %s179, %s195
    %p197 = scmp.eq.s32.totalorder %s19, 0
    %p198 = por %p196, %p197
    %p199 = scmp.le.s32.totalorder 1, %s13
    %p200 = scmp.lt.s32.totalorder %s13, 3
    %p201 = pnand %p199, %p200
    %p202 = pneg %p201
    // Predicated region
    $region9: #{autoencoder_forward.1} parent=5 // pred_check
      _
    $region10: #{autoencoder_forward.1} parent=5 // pred_check_branch
      %204 = sbr.rel (%p201) target = $region12
    $region11: #{autoencoder_forward.1} parent=5 // pred_region
      %s205 = ssub.s32 %s13, 1
      // Predicated region
      $region13: #{autoencoder_forward.1} parent=11 // pred_check
        %p206 = pneg %p60
      $region14: #{autoencoder_forward.1} parent=11 // pred_check_branch
        %208 = sbr.rel (%p206) target = $region16
      $region15: #{autoencoder_forward.1} parent=11 // pred_region
        _
      $region16: #{autoencoder_forward.1} parent=11 // pred_fallthru
        _
      // Predicated region
      $region17: #{autoencoder_forward.1} parent=11 // pred_check
        %p209 = pneg %p81
      $region18: #{autoencoder_forward.1} parent=11 // pred_check_branch
        %211 = sbr.rel (%p209) target = $region20
      $region19: #{autoencoder_forward.1} parent=11 // pred_region
        _
      $region20: #{autoencoder_forward.1} parent=11 // pred_fallthru
        _
      // Predicated region
      $region21: #{autoencoder_forward.1} parent=11 // pred_check
        %p212 = pneg %p102
      $region22: #{autoencoder_forward.1} parent=11 // pred_check_branch
        %214 = sbr.rel (%p212) target = $region24
      $region23: #{autoencoder_forward.1} parent=11 // pred_region
        _
      $region24: #{autoencoder_forward.1} parent=11 // pred_fallthru
        _
      // Predicated region
      $region25: #{autoencoder_forward.1} parent=11 // pred_check
        %p215 = pneg %p123
      $region26: #{autoencoder_forward.1} parent=11 // pred_check_branch
        %217 = sbr.rel (%p215) target = $region28
      $region27: #{autoencoder_forward.1} parent=11 // pred_region
        _
      $region28: #{autoencoder_forward.1} parent=11 // pred_fallthru
        _
      // Predicated region
      $region29: #{autoencoder_forward.1} parent=11 // pred_check
        %p218 = pneg %p144
      $region30: #{autoencoder_forward.1} parent=11 // pred_check_branch
        %220 = sbr.rel (%p218) target = $region32
      $region31: #{autoencoder_forward.1} parent=11 // pred_region
        _
      $region32: #{autoencoder_forward.1} parent=11 // pred_fallthru
        _
      // Predicated region
      $region33: #{autoencoder_forward.1} parent=11 // pred_check
        %p221 = pneg %p165
      $region34: #{autoencoder_forward.1} parent=11 // pred_check_branch
        %223 = sbr.rel (%p221) target = $region36
      $region35: #{autoencoder_forward.1} parent=11 // pred_region
        _
      $region36: #{autoencoder_forward.1} parent=11 // pred_fallthru
        _
    $region12: #{autoencoder_forward.1} parent=5 // pred_fallthru
      _
    %p224 = scmp.lt.s32.totalorder %s13, 2
    // Predicated region
    $region37: #{autoencoder_forward.1} parent=5 // pred_check
      %p225 = pneg %p224
    $region38: #{autoencoder_forward.1} parent=5 // pred_check_branch
      %227 = sbr.rel (%p225) target = $region40
    $region39: #{autoencoder_forward.1} parent=5 // pred_region
      // Predicated region
      $region41: #{autoencoder_forward.1} parent=39 // pred_check
        %p228 = pneg %p33
      $region42: #{autoencoder_forward.1} parent=39 // pred_check_branch
        %230 = sbr.rel (%p228) target = $region44
      $region43: #{autoencoder_forward.1} parent=39 // pred_region
        %p231 = scmp.lt.s32.totalorder %s13, 1
        %s232 = scalar_select %p231, %s13, 1
        %s233 = smul.addr %s232, 8
        %s234 = smul.addr %s233, 8
        %s235 = scalar_lea.vmem %s0, %s234
      $region44: #{autoencoder_forward.1} parent=39 // pred_fallthru
        _
    $region40: #{autoencoder_forward.1} parent=5 // pred_fallthru
      _
    %p236 = scmp.le.s32.totalorder 1, %s13
    %p237 = scmp.lt.s32.totalorder %s13, 3
    %p238 = pnand %p236, %p237
    %p239 = pneg %p238
    // Predicated region
    $region45: #{autoencoder_forward.1} parent=5 // pred_check
      _
    $region46: #{autoencoder_forward.1} parent=5 // pred_check_branch
      %241 = sbr.rel (%p238) target = $region48
    $region47: #{autoencoder_forward.1} parent=5 // pred_region
      %s242 = ssub.s32 %s13, 1
      %p243 = scmp.lt.s32.totalorder %s18, 1
      %s244 = scalar_select %p243, %s18, 1
      %s245 = smul.addr %s244, 8
      %s246 = smul.addr %s245, 8
      %s247 = scalar_lea.vmem %s0, %s246
      %p248 = pneg %p39
      %p249 = pneg %p36
      %p250 = pneg %p60
      %p251 = pneg %p57
      %p252 = pneg %p81
      %p253 = pneg %p78
      %p254 = pneg %p102
      %p255 = pneg %p99
      %p256 = pneg %p123
      %p257 = pneg %p120
      %p258 = pneg %p144
      %p259 = pneg %p141
      %p260 = pneg %p165
      %p261 = pneg %p162
      %p262 = pneg %p191
      %p263 = pneg %p188
      %p264 = scmp.lt.s32.totalorder %s18, 1
      %s265 = scalar_select %p264, %s18, 1
      %s266 = smul.addr %s265, 8
      %s267 = smul.addr %s266, 8
      %s268 = scalar_lea.vmem %s7, %s267
      %p269 = scmp.lt.s32.totalorder %s18, 1
      %s270 = scalar_select %p269, %s18, 1
      %s271 = smul.addr %s270, 8
      %s272 = smul.addr %s271, 8
      %s273 = scalar_lea.vmem %s0, %s272
      %p274 = scmp.lt.s32.totalorder %s18, 1
      %s275 = scalar_select %p274, %s18, 1
      %s276 = smul.addr %s275, 8
      %s277 = smul.addr %s276, 8
      %s278 = scalar_lea.vmem %s7, %s277
      %v280 = vld [vmem:[%s273] sm:$0xff]
      %v281 = vld [vmem:[%s273 + $0x8] sm:$0xff]
      %v282 = vld [vmem:[%s273 + $0x10] sm:$0xff]
      %v283 = vld [vmem:[%s273 + $0x18] sm:$0xff]
      %v284 = vld [vmem:[%s273 + $0x20] sm:$0xff]
      %v285 = vld [vmem:[%s273 + $0x28] sm:$0xff]
      %v286 = vld [vmem:[%s273 + $0x30] sm:$0xff]
      %v287 = vld [vmem:[%s273 + $0x38] sm:$0xff]
      %v288 = vld [vmem:[%s1] sm:$0x1]
      %v290 = vlaneseq
      %v291 = vshrl.u32 %v290, 7
      %v292 = vsub.s32 0, %v291
      %v293 = vrot.slane %v288, %v292
      %294 = vset.pattern.permute.xlu0 0
      %295 = vperm.xlu0 %294, %v293
      %v296 = vpop.permute.xlu0 %295
      %v298 = vmul.f32 %v280, %v296
      %v299 = vmul.f32 %v281, %v296
      %v300 = vmul.f32 %v282, %v296
      %v301 = vmul.f32 %v283, %v296
      %v302 = vmul.f32 %v284, %v296
      %v303 = vmul.f32 %v285, %v296
      %v304 = vmul.f32 %v286, %v296
      %v305 = vmul.f32 %v287, %v296
      %v306 = vmax.f32 %v280, 0.0
      %v307 = vmax.f32 %v281, 0.0
      %v308 = vmax.f32 %v282, 0.0
      %v309 = vmax.f32 %v283, 0.0
      %v310 = vmax.f32 %v284, 0.0
      %v311 = vmax.f32 %v285, 0.0
      %v312 = vmax.f32 %v286, 0.0
      %v313 = vmax.f32 %v287, 0.0
      %314 = vset.pattern.permute.xlu0 1
      %315 = vperm.xlu0 %314, %v293
      %v316 = vpop.permute.xlu0 %315
      %v318 = vmul.f32 %v306, %v316
      %v319 = vmul.f32 %v307, %v316
      %v320 = vmul.f32 %v308, %v316
      %v321 = vmul.f32 %v309, %v316
      %v322 = vmul.f32 %v310, %v316
      %v323 = vmul.f32 %v311, %v316
      %v324 = vmul.f32 %v312, %v316
      %v325 = vmul.f32 %v313, %v316
      %v326 = vmax.f32 %v318, 0.0
      %v327 = vmax.f32 %v319, 0.0
      %v328 = vmax.f32 %v320, 0.0
      %v329 = vmax.f32 %v321, 0.0
      %v330 = vmax.f32 %v322, 0.0
      %v331 = vmax.f32 %v323, 0.0
      %v332 = vmax.f32 %v324, 0.0
      %v333 = vmax.f32 %v325, 0.0
      %334 = vset.pattern.permute.xlu0 2
      %335 = vperm.xlu0 %334, %v293
      %v336 = vpop.permute.xlu0 %335
      %v338 = vmul.f32 %v326, %v336
      %v339 = vmul.f32 %v327, %v336
      %v340 = vmul.f32 %v328, %v336
      %v341 = vmul.f32 %v329, %v336
      %v342 = vmul.f32 %v330, %v336
      %v343 = vmul.f32 %v331, %v336
      %v344 = vmul.f32 %v332, %v336
      %v345 = vmul.f32 %v333, %v336
      %v346 = vadd.f32 %v298, %v338
      %v347 = vadd.f32 %v299, %v339
      %v348 = vadd.f32 %v300, %v340
      %v349 = vadd.f32 %v301, %v341
      %v350 = vadd.f32 %v302, %v342
      %v351 = vadd.f32 %v303, %v343
      %v352 = vadd.f32 %v304, %v344
      %v353 = vadd.f32 %v305, %v345
      %v354 = vmax.f32 %v346, 0.0
      %v355 = vmax.f32 %v347, 0.0
      %v356 = vmax.f32 %v348, 0.0
      %v357 = vmax.f32 %v349, 0.0
      %v358 = vmax.f32 %v350, 0.0
      %v359 = vmax.f32 %v351, 0.0
      %v360 = vmax.f32 %v352, 0.0
      %v361 = vmax.f32 %v353, 0.0
      %v362 = vld [vmem:[%s2] sm:$0xff]
      %vm363 = vcmask 64512
      %v365 = vsel %vm363, %v354, 0
      %v368 = vsel %vm363, %v355, 0
      %v371 = vsel %vm363, %v356, 0
      %v374 = vsel %vm363, %v357, 0
      %v377 = vsel %vm363, %v358, 0
      %v380 = vsel %vm363, %v359, 0
      %v383 = vsel %vm363, %v360, 0
      %v386 = vsel %vm363, %v361, 0
      %388 = vmatprep.subr.mxu0 0.0
      %389 = vmatpush1.msra.mxu0 %v362
      %390 = vmatprep.subr.mxu0 0.0
      %391 = vmatpush1.msra.mxu0 0.0
      %392 = vmatprep.subr.mxu0 0.0
      %393 = vmatpush1.msra.mxu0 0.0
      %394 = vmatprep.subr.mxu0 0.0
      %395 = vmatpush1.msra.mxu0 0.0
      %396 = vmatprep.subr.mxu0 0.0
      %397 = vmatpush1.msra.mxu0 0.0
      %398 = vmatprep.subr.mxu0 0.0
      %399 = vmatpush1.msra.mxu0 0.0
      %400 = vmatprep.subr.mxu0 0.0
      %401 = vmatpush1.msra.mxu0 0.0
      %402 = vmatprep.subr.mxu0 0.0
      %403 = vmatpush1.msra.mxu0 0.0
      %404 = vmatprep.subr.mxu0 0.0
      %405 = vmatpush1.msra.mxu0 0.0
      %406 = vmatprep.subr.mxu0 0.0
      %407 = vmatpush1.msra.mxu0 0.0
      %408 = vmatprep.subr.mxu0 0.0
      %409 = vmatpush1.msra.mxu0 0.0
      %410 = vmatprep.subr.mxu0 0.0
      %411 = vmatpush1.msra.mxu0 0.0
      %412 = vmatprep.subr.mxu0 0.0
      %413 = vmatpush1.msra.mxu0 0.0
      %414 = vmatprep.subr.mxu0 0.0
      %415 = vmatpush1.msra.mxu0 0.0
      %416 = vmatprep.subr.mxu0 0.0
      %417 = vmatpush1.msra.mxu0 0.0
      %418 = vmatprep.subr.mxu0 0.0
      %419 = vmatpush1.msra.mxu0 0.0
      %420 = vmatprep.subr.mxu0 0.0
      %421 = vmatpush1.msra.mxu0 0.0
      %422 = vmatprep.subr.mxu0 0.0
      %423 = vmatpush1.msra.mxu0 0.0
      %424 = vmatprep.subr.mxu0 0.0
      %425 = vmatpush1.msra.mxu0 0.0
      %426 = vmatprep.subr.mxu0 0.0
      %427 = vmatpush1.msra.mxu0 0.0
      %428 = vmatprep.subr.mxu0 0.0
      %429 = vmatpush1.msra.mxu0 0.0
      %430 = vmatprep.subr.mxu0 0.0
      %431 = vmatpush1.msra.mxu0 0.0
      %432 = vmatprep.subr.mxu0 0.0
      %433 = vmatpush1.msra.mxu0 0.0
      %434 = vmatprep.subr.mxu0 0.0
      %435 = vmatpush1.msra.mxu0 0.0
      %436 = vmatprep.subr.mxu0 0.0
      %437 = vmatpush1.msra.mxu0 0.0
      %438 = vmatprep.subr.mxu0 0.0
      %439 = vmatpush1.msra.mxu0 0.0
      %440 = vmatprep.subr.mxu0 0.0
      %441 = vmatpush1.msra.mxu0 0.0
      %442 = vmatprep.subr.mxu0 0.0
      %443 = vmatpush1.msra.mxu0 0.0
      %444 = vmatprep.subr.mxu0 0.0
      %445 = vmatpush1.msra.mxu0 0.0
      %446 = vmatprep.subr.mxu0 0.0
      %447 = vmatpush1.msra.mxu0 0.0
      %448 = vmatprep.subr.mxu0 0.0
      %449 = vmatpush1.msra.mxu0 0.0
      %450 = vmatprep.subr.mxu0 0.0
      %451 = vmatpush1.msra.mxu0 0.0
      %452 = vmatprep.mubr.f32.mxu0 0.0
      %453 = vmatmul.mubr.f32.gmra.mrb[0].mxu0 %v365
      %v454 = vpop.f32.mrb[0].mxu0
      %v455 = vadd.f32 0.0, %v454
      %v456 = vpop.f32.mrb[0].mxu0
      %457 = vmatprep.mubr.f32.mxu0 0.0
      %458 = vmatmul.mubr.f32.gmra.mrb[0].mxu0 %v368
      %v459 = vpop.f32.mrb[0].mxu0
      %v460 = vadd.f32 0.0, %v459
      %v461 = vpop.f32.mrb[0].mxu0
      %462 = vmatprep.mubr.f32.mxu0 0.0
      %463 = vmatmul.mubr.f32.gmra.mrb[0].mxu0 %v371
      %v464 = vpop.f32.mrb[0].mxu0
      %v465 = vadd.f32 0.0, %v464
      %v466 = vpop.f32.mrb[0].mxu0
      %467 = vmatprep.mubr.f32.mxu0 0.0
      %468 = vmatmul.mubr.f32.gmra.mrb[0].mxu0 %v374
      %v469 = vpop.f32.mrb[0].mxu0
      %v470 = vadd.f32 0.0, %v469
      %v471 = vpop.f32.mrb[0].mxu0
      %472 = vmatprep.mubr.f32.mxu0 0.0
      %473 = vmatmul.mubr.f32.gmra.mrb[0].mxu0 %v377
      %v474 = vpop.f32.mrb[0].mxu0
      %v475 = vadd.f32 0.0, %v474
      %v476 = vpop.f32.mrb[0].mxu0
      %477 = vmatprep.mubr.f32.mxu0 0.0
      %478 = vmatmul.mubr.f32.gmra.mrb[0].mxu0 %v380
      %v479 = vpop.f32.mrb[0].mxu0
      %v480 = vadd.f32 0.0, %v479
      %v481 = vpop.f32.mrb[0].mxu0
      %482 = vmatprep.mubr.f32.mxu0 0.0
      %483 = vmatmul.mubr.f32.gmra.mrb[0].mxu0 %v383
      %v484 = vpop.f32.mrb[0].mxu0
      %v485 = vadd.f32 0.0, %v484
      %v486 = vpop.f32.mrb[0].mxu0
      %487 = vmatprep.mubr.f32.mxu0 0.0
      %488 = vmatmul.mubr.f32.gmra.mrb[0].mxu0 %v386
      %v489 = vpop.f32.mrb[0].mxu0
      %v490 = vadd.f32 0.0, %v489
      %v491 = vpop.f32.mrb[0].mxu0
      %492 = vdwg.mxu0
      %v493 = vld [vmem:[%s3] sm:$0xf]
      %v494 = vld [vmem:[%s3 + $0x4] sm:$0xf]
      %s495 = scalar_lea.vmem %s3, 8
      %v496 = vld [vmem:[%s495] sm:$0xf]
      %v497 = vld [vmem:[%s495 + $0x4] sm:$0xf]
      %s498 = scalar_lea.vmem %s3, 16
      %v499 = vld [vmem:[%s498] sm:$0xf]
      %v500 = vld [vmem:[%s498 + $0x4] sm:$0xf]
      %v501 = vpack.c.bf16 %v460, %v455
      %v502 = vpack.c.bf16 %v470, %v465
      %v503 = vpack.c.bf16 %v480, %v475
      %v504 = vpack.c.bf16 %v490, %v485
      %v505 = vmax.f32 %v455, 0.0
      %v506 = vmax.f32 %v460, 0.0
      %v507 = vmax.f32 %v465, 0.0
      %v508 = vmax.f32 %v470, 0.0
      %v509 = vmax.f32 %v475, 0.0
      %v510 = vmax.f32 %v480, 0.0
      %v511 = vmax.f32 %v485, 0.0
      %v512 = vmax.f32 %v490, 0.0
      %v513 = vpack.c.bf16 %v506, %v505
      %v514 = vpack.c.bf16 %v508, %v507
      %v515 = vpack.c.bf16 %v510, %v509
      %v516 = vpack.c.bf16 %v512, %v511
      %v519 = vunpack.c.l.b16 %v496
      %v520 = vunpack.c.l.b16 %v497
      %v521 = vpack.c.b16 %v520, %v519
      %vm523 = vcmask 130048
      %v525 = vsel %vm523, %v513, 0
      %v528 = vsel %vm523, %v514, 0
      %v531 = vsel %vm523, %v515, 0
      %v534 = vsel %vm523, %v516, 0
      %536 = vmatprep.subr.bf16.mxu0 0
      %537 = vmatpush1.bf16.msra.mxu0 %v521
      %538 = vmatprep.subr.bf16.mxu0 0
      %539 = vmatpush1.bf16.msra.mxu0 0
      %540 = vmatprep.subr.bf16.mxu0 0
      %541 = vmatpush1.bf16.msra.mxu0 0
      %542 = vmatprep.subr.bf16.mxu0 0
      %543 = vmatpush1.bf16.msra.mxu0 0
      %544 = vmatprep.subr.bf16.mxu0 0
      %545 = vmatpush1.bf16.msra.mxu0 0
      %546 = vmatprep.subr.bf16.mxu0 0
      %547 = vmatpush1.bf16.msra.mxu0 0
      %548 = vmatprep.subr.bf16.mxu0 0
      %549 = vmatpush1.bf16.msra.mxu0 0
      %550 = vmatprep.subr.bf16.mxu0 0
      %551 = vmatpush1.bf16.msra.mxu0 0
      %552 = vmatprep.subr.bf16.mxu0 0
      %553 = vmatpush1.bf16.msra.mxu0 0
      %554 = vmatprep.subr.bf16.mxu0 0
      %555 = vmatpush1.bf16.msra.mxu0 0
      %556 = vmatprep.subr.bf16.mxu0 0
      %557 = vmatpush1.bf16.msra.mxu0 0
      %558 = vmatprep.subr.bf16.mxu0 0
      %559 = vmatpush1.bf16.msra.mxu0 0
      %560 = vmatprep.subr.bf16.mxu0 0
      %561 = vmatpush1.bf16.msra.mxu0 0
      %562 = vmatprep.subr.bf16.mxu0 0
      %563 = vmatpush1.bf16.msra.mxu0 0
      %564 = vmatprep.subr.bf16.mxu0 0
      %565 = vmatpush1.bf16.msra.mxu0 0
      %566 = vmatprep.subr.bf16.mxu0 0
      %567 = vmatpush1.bf16.msra.mxu0 0
      %568 = vmatprep.mubr.bf16.mxu0 0
      %569 = vmatmul.mubr.bf16.gmra.mrb[0].mxu0 %v525
      %v570 = vpop.f32.mrb[0].mxu0
      %v571 = vadd.f32 0.0, %v570
      %v572 = vpop.f32.mrb[0].mxu0
      %v573 = vpop.f32.mrb[0].mxu0
      %v574 = vadd.f32 0.0, %v573
      %v575 = vpop.f32.mrb[0].mxu0
      %576 = vmatprep.mubr.bf16.mxu0 0
      %577 = vmatmul.mubr.bf16.gmra.mrb[0].mxu0 %v528
      %v578 = vpop.f32.mrb[0].mxu0
      %v579 = vadd.f32 0.0, %v578
      %v580 = vpop.f32.mrb[0].mxu0
      %v581 = vpop.f32.mrb[0].mxu0
      %v582 = vadd.f32 0.0, %v581
      %v583 = vpop.f32.mrb[0].mxu0
      %584 = vmatprep.mubr.bf16.mxu0 0
      %585 = vmatmul.mubr.bf16.gmra.mrb[0].mxu0 %v531
      %v586 = vpop.f32.mrb[0].mxu0
      %v587 = vadd.f32 0.0, %v586
      %v588 = vpop.f32.mrb[0].mxu0
      %v589 = vpop.f32.mrb[0].mxu0
      %v590 = vadd.f32 0.0, %v589
      %v591 = vpop.f32.mrb[0].mxu0
      %592 = vmatprep.mubr.bf16.mxu0 0
      %593 = vmatmul.mubr.bf16.gmra.mrb[0].mxu0 %v534
      %v594 = vpop.f32.mrb[0].mxu0
      %v595 = vadd.f32 0.0, %v594
      %v596 = vpop.f32.mrb[0].mxu0
      %v597 = vpop.f32.mrb[0].mxu0
      %v598 = vadd.f32 0.0, %v597
      %v599 = vpop.f32.mrb[0].mxu0
      %600 = vdwg.mxu0
      %v601 = vmax.f32 %v571, 0.0
      %v602 = vmax.f32 %v574, 0.0
      %v603 = vmax.f32 %v579, 0.0
      %v604 = vmax.f32 %v582, 0.0
      %v605 = vmax.f32 %v587, 0.0
      %v606 = vmax.f32 %v590, 0.0
      %v607 = vmax.f32 %v595, 0.0
      %v608 = vmax.f32 %v598, 0.0
      %v609 = vpack.c.bf16 %v602, %v601
      %v610 = vpack.c.bf16 %v604, %v603
      %v611 = vpack.c.bf16 %v606, %v605
      %v612 = vpack.c.bf16 %v608, %v607
      %v615 = vunpack.c.l.b16 %v499
      %v616 = vunpack.c.l.b16 %v500
      %v617 = vpack.c.b16 %v616, %v615
      %v620 = vsel %vm523, %v609, 0
      %v623 = vsel %vm523, %v610, 0
      %v626 = vsel %vm523, %v611, 0
      %v629 = vsel %vm523, %v612, 0
      %631 = vmatprep.subr.bf16.mxu0 0
      %632 = vmatpush1.bf16.msra.mxu0 %v617
      %633 = vmatprep.subr.bf16.mxu0 0
      %634 = vmatpush1.bf16.msra.mxu0 0
      %635 = vmatprep.subr.bf16.mxu0 0
      %636 = vmatpush1.bf16.msra.mxu0 0
      %637 = vmatprep.subr.bf16.mxu0 0
      %638 = vmatpush1.bf16.msra.mxu0 0
      %639 = vmatprep.subr.bf16.mxu0 0
      %640 = vmatpush1.bf16.msra.mxu0 0
      %641 = vmatprep.subr.bf16.mxu0 0
      %642 = vmatpush1.bf16.msra.mxu0 0
      %643 = vmatprep.subr.bf16.mxu0 0
      %644 = vmatpush1.bf16.msra.mxu0 0
      %645 = vmatprep.subr.bf16.mxu0 0
      %646 = vmatpush1.bf16.msra.mxu0 0
      %647 = vmatprep.subr.bf16.mxu0 0
      %648 = vmatpush1.bf16.msra.mxu0 0
      %649 = vmatprep.subr.bf16.mxu0 0
      %650 = vmatpush1.bf16.msra.mxu0 0
      %651 = vmatprep.subr.bf16.mxu0 0
      %652 = vmatpush1.bf16.msra.mxu0 0
      %653 = vmatprep.subr.bf16.mxu0 0
      %654 = vmatpush1.bf16.msra.mxu0 0
      %655 = vmatprep.subr.bf16.mxu0 0
      %656 = vmatpush1.bf16.msra.mxu0 0
      %657 = vmatprep.subr.bf16.mxu0 0
      %658 = vmatpush1.bf16.msra.mxu0 0
      %659 = vmatprep.subr.bf16.mxu0 0
      %660 = vmatpush1.bf16.msra.mxu0 0
      %661 = vmatprep.subr.bf16.mxu0 0
      %662 = vmatpush1.bf16.msra.mxu0 0
      %663 = vmatprep.mubr.bf16.mxu0 0
      %664 = vmatmul.mubr.bf16.gmra.mrb[0].mxu0 %v620
      %v665 = vpop.f32.mrb[0].mxu0
      %v666 = vadd.f32 0.0, %v665
      %v667 = vpop.f32.mrb[0].mxu0
      %v668 = vpop.f32.mrb[0].mxu0
      %v669 = vadd.f32 0.0, %v668
      %v670 = vpop.f32.mrb[0].mxu0
      %671 = vmatprep.mubr.bf16.mxu0 0
      %672 = vmatmul.mubr.bf16.gmra.mrb[0].mxu0 %v623
      %v673 = vpop.f32.mrb[0].mxu0
      %v674 = vadd.f32 0.0, %v673
      %v675 = vpop.f32.mrb[0].mxu0
      %v676 = vpop.f32.mrb[0].mxu0
      %v677 = vadd.f32 0.0, %v676
      %v678 = vpop.f32.mrb[0].mxu0
      %679 = vmatprep.mubr.bf16.mxu0 0
      %680 = vmatmul.mubr.bf16.gmra.mrb[0].mxu0 %v626
      %v681 = vpop.f32.mrb[0].mxu0
      %v682 = vadd.f32 0.0, %v681
      %v683 = vpop.f32.mrb[0].mxu0
      %v684 = vpop.f32.mrb[0].mxu0
      %v685 = vadd.f32 0.0, %v684
      %v686 = vpop.f32.mrb[0].mxu0
      %687 = vmatprep.mubr.bf16.mxu0 0
      %688 = vmatmul.mubr.bf16.gmra.mrb[0].mxu0 %v629
      %v689 = vpop.f32.mrb[0].mxu0
      %v690 = vadd.f32 0.0, %v689
      %v691 = vpop.f32.mrb[0].mxu0
      %v692 = vpop.f32.mrb[0].mxu0
      %v693 = vadd.f32 0.0, %v692
      %v694 = vpop.f32.mrb[0].mxu0
      %695 = vdwg.mxu0
      %v698 = vunpack.c.l.b16 %v493
      %v699 = vunpack.c.l.b16 %v494
      %v700 = vpack.c.b16 %v699, %v698
      %v703 = vsel %vm523, %v501, 0
      %v706 = vsel %vm523, %v502, 0
      %v709 = vsel %vm523, %v503, 0
      %v712 = vsel %vm523, %v504, 0
      %714 = vmatprep.subr.bf16.mxu0 0
      %715 = vmatpush1.bf16.msra.mxu0 %v700
      %716 = vmatprep.subr.bf16.mxu0 0
      %717 = vmatpush1.bf16.msra.mxu0 0
      %718 = vmatprep.subr.bf16.mxu0 0
      %719 = vmatpush1.bf16.msra.mxu0 0
      %720 = vmatprep.subr.bf16.mxu0 0
      %721 = vmatpush1.bf16.msra.mxu0 0
      %722 = vmatprep.subr.bf16.mxu0 0
      %723 = vmatpush1.bf16.msra.mxu0 0
      %724 = vmatprep.subr.bf16.mxu0 0
      %725 = vmatpush1.bf16.msra.mxu0 0
      %726 = vmatprep.subr.bf16.mxu0 0
      %727 = vmatpush1.bf16.msra.mxu0 0
      %728 = vmatprep.subr.bf16.mxu0 0
      %729 = vmatpush1.bf16.msra.mxu0 0
      %730 = vmatprep.subr.bf16.mxu0 0
      %731 = vmatpush1.bf16.msra.mxu0 0
      %732 = vmatprep.subr.bf16.mxu0 0
      %733 = vmatpush1.bf16.msra.mxu0 0
      %734 = vmatprep.subr.bf16.mxu0 0
      %735 = vmatpush1.bf16.msra.mxu0 0
      %736 = vmatprep.subr.bf16.mxu0 0
      %737 = vmatpush1.bf16.msra.mxu0 0
      %738 = vmatprep.subr.bf16.mxu0 0
      %739 = vmatpush1.bf16.msra.mxu0 0
      %740 = vmatprep.subr.bf16.mxu0 0
      %741 = vmatpush1.bf16.msra.mxu0 0
      %742 = vmatprep.subr.bf16.mxu0 0
      %743 = vmatpush1.bf16.msra.mxu0 0
      %744 = vmatprep.subr.bf16.mxu0 0
      %745 = vmatpush1.bf16.msra.mxu0 0
      %746 = vmatprep.mubr.bf16.mxu0 0
      %747 = vmatmul.mubr.bf16.gmra.mrb[0].mxu0 %v703
      %v748 = vpop.f32.mrb[0].mxu0
      %v749 = vadd.f32 %v666, %v748
      %v750 = vpop.f32.mrb[0].mxu0
      %v751 = vpop.f32.mrb[0].mxu0
      %v752 = vadd.f32 %v669, %v751
      %v753 = vpop.f32.mrb[0].mxu0
      %754 = vmatprep.mubr.bf16.mxu0 0
      %755 = vmatmul.mubr.bf16.gmra.mrb[0].mxu0 %v706
      %v756 = vpop.f32.mrb[0].mxu0
      %v757 = vadd.f32 %v674, %v756
      %v758 = vpop.f32.mrb[0].mxu0
      %v759 = vpop.f32.mrb[0].mxu0
      %v760 = vadd.f32 %v677, %v759
      %v761 = vpop.f32.mrb[0].mxu0
      %762 = vmatprep.mubr.bf16.mxu0 0
      %763 = vmatmul.mubr.bf16.gmra.mrb[0].mxu0 %v709
      %v764 = vpop.f32.mrb[0].mxu0
      %v765 = vadd.f32 %v682, %v764
      %v766 = vpop.f32.mrb[0].mxu0
      %v767 = vpop.f32.mrb[0].mxu0
      %v768 = vadd.f32 %v685, %v767
      %v769 = vpop.f32.mrb[0].mxu0
      %770 = vmatprep.mubr.bf16.mxu0 0
      %771 = vmatmul.mubr.bf16.gmra.mrb[0].mxu0 %v712
      %v772 = vpop.f32.mrb[0].mxu0
      %v773 = vadd.f32 %v690, %v772
      %v774 = vpop.f32.mrb[0].mxu0
      %v775 = vpop.f32.mrb[0].mxu0
      %v776 = vadd.f32 %v693, %v775
      %v777 = vpop.f32.mrb[0].mxu0
      %778 = vdwg.mxu0
      %v779 = vmax.f32 %v749, 0.0
      %v780 = vmax.f32 %v752, 0.0
      %v781 = vmax.f32 %v757, 0.0
      %v782 = vmax.f32 %v760, 0.0
      %v783 = vmax.f32 %v765, 0.0
      %v784 = vmax.f32 %v768, 0.0
      %v785 = vmax.f32 %v773, 0.0
      %v786 = vmax.f32 %v776, 0.0
      %787 = vst.msk [vmem:[#allocation2] sm:$0xff] %vm523, %v779
      %788 = vst.msk [vmem:[#allocation2 + $0x8] sm:$0xff] %vm523, %v780
      %789 = vst.msk [vmem:[#allocation2 + $0x10] sm:$0xff] %vm523, %v781
      %790 = vst.msk [vmem:[#allocation2 + $0x18] sm:$0xff] %vm523, %v782
      %791 = vst.msk [vmem:[#allocation2 + $0x20] sm:$0xff] %vm523, %v783
      %792 = vst.msk [vmem:[#allocation2 + $0x28] sm:$0xff] %vm523, %v784
      %793 = vst.msk [vmem:[#allocation2 + $0x30] sm:$0xff] %vm523, %v785
      %794 = vst.msk [vmem:[#allocation2 + $0x38] sm:$0xff] %vm523, %v786
      %v795 = vld [vmem:[%s4] sm:$0xf]
      %v796 = vld [vmem:[%s4 + $0x4] sm:$0xf]
      %v797 = vld [vmem:[%s4 + $0x8] sm:$0xf]
      %v798 = vld [vmem:[%s4 + $0xc] sm:$0xf]
      %v799 = vld [vmem:[%s4 + $0x10] sm:$0xf]
      %v800 = vld [vmem:[%s4 + $0x14] sm:$0xf]
      %v801 = vld [vmem:[%s4 + $0x18] sm:$0xf]
      %v802 = vld [vmem:[%s4 + $0x1c] sm:$0xf]
      %v803 = vld [vmem:[%s4 + $0x20] sm:$0xf]
      %v804 = vld [vmem:[%s4 + $0x24] sm:$0xf]
      %v805 = vld [vmem:[%s4 + $0x28] sm:$0xf]
      %v806 = vld [vmem:[%s4 + $0x2c] sm:$0xf]
      %v807 = vld [vmem:[%s4 + $0x30] sm:$0xf]
      %v808 = vld [vmem:[%s4 + $0x34] sm:$0xf]
      %v809 = vld [vmem:[%s4 + $0x38] sm:$0xf]
      %v810 = vld [vmem:[%s4 + $0x3c] sm:$0xf]
      %v811 = vld [vmem:[#allocation2] ss:$8 sm:$0xf]
      %v812 = vld [vmem:[#allocation2] ss:$8 sm:$0xf0]
      %v813 = vor.u32 %v811, %v812
      %v814 = vpack.c.bf16 %v813, %v813
      %s815 = scalar_lea.vmem [#allocation2], 1
      %v816 = vld [vmem:[%s815] ss:$8 sm:$0xf]
      %v817 = vld [vmem:[%s815] ss:$8 sm:$0xf0]
      %v818 = vor.u32 %v816, %v817
      %v819 = vpack.c.bf16 %v818, %v818
      %v822 = vunpack.c.l.b16 %v797
      %v823 = vunpack.c.l.b16 %v798
      %v824 = vpack.c.b16 %v823, %v822
      %v827 = vsel %vm523, %v819, 0
      %829 = vmatprep.subr.bf16.mxu0 0
      %830 = vmatpush1.bf16.msra.mxu0 %v824
      %831 = vmatprep.subr.bf16.mxu0 0
      %832 = vmatpush1.bf16.msra.mxu0 0
      %833 = vmatprep.subr.bf16.mxu0 0
      %834 = vmatpush1.bf16.msra.mxu0 0
      %835 = vmatprep.subr.bf16.mxu0 0
      %836 = vmatpush1.bf16.msra.mxu0 0
      %837 = vmatprep.subr.bf16.mxu0 0
      %838 = vmatpush1.bf16.msra.mxu0 0
      %839 = vmatprep.subr.bf16.mxu0 0
      %840 = vmatpush1.bf16.msra.mxu0 0
      %841 = vmatprep.subr.bf16.mxu0 0
      %842 = vmatpush1.bf16.msra.mxu0 0
      %843 = vmatprep.subr.bf16.mxu0 0
      %844 = vmatpush1.bf16.msra.mxu0 0
      %845 = vmatprep.subr.bf16.mxu0 0
      %846 = vmatpush1.bf16.msra.mxu0 0
      %847 = vmatprep.subr.bf16.mxu0 0
      %848 = vmatpush1.bf16.msra.mxu0 0
      %849 = vmatprep.subr.bf16.mxu0 0
      %850 = vmatpush1.bf16.msra.mxu0 0
      %851 = vmatprep.subr.bf16.mxu0 0
      %852 = vmatpush1.bf16.msra.mxu0 0
      %853 = vmatprep.subr.bf16.mxu0 0
      %854 = vmatpush1.bf16.msra.mxu0 0
      %855 = vmatprep.subr.bf16.mxu0 0
      %856 = vmatpush1.bf16.msra.mxu0 0
      %857 = vmatprep.subr.bf16.mxu0 0
      %858 = vmatpush1.bf16.msra.mxu0 0
      %859 = vmatprep.subr.bf16.mxu0 0
      %860 = vmatpush1.bf16.msra.mxu0 0
      %861 = vmatprep.mubr.bf16.mxu0 0
      %862 = vmatmul.mubr.bf16.gmra.mrb[0].mxu0 %v827
      %v863 = vpop.f32.mrb[0].mxu0
      %v864 = vadd.f32 0.0, %v863
      %v865 = vpop.f32.mrb[0].mxu0
      %v866 = vpop.f32.mrb[0].mxu0
      %v867 = vpop.f32.mrb[0].mxu0
      %868 = vdwg.mxu0
      %v871 = vunpack.c.l.b16 %v795
      %v872 = vunpack.c.l.b16 %v796
      %v873 = vpack.c.b16 %v872, %v871
      %v876 = vsel %vm523, %v814, 0
      %878 = vmatprep.subr.bf16.mxu0 0
      %879 = vmatpush1.bf16.msra.mxu0 %v873
      %880 = vmatprep.subr.bf16.mxu0 0
      %881 = vmatpush1.bf16.msra.mxu0 0
      %882 = vmatprep.subr.bf16.mxu0 0
      %883 = vmatpush1.bf16.msra.mxu0 0
      %884 = vmatprep.subr.bf16.mxu0 0
      %885 = vmatpush1.bf16.msra.mxu0 0
      %886 = vmatprep.subr.bf16.mxu0 0
      %887 = vmatpush1.bf16.msra.mxu0 0
      %888 = vmatprep.subr.bf16.mxu0 0
      %889 = vmatpush1.bf16.msra.mxu0 0
      %890 = vmatprep.subr.bf16.mxu0 0
      %891 = vmatpush1.bf16.msra.mxu0 0
      %892 = vmatprep.subr.bf16.mxu0 0
      %893 = vmatpush1.bf16.msra.mxu0 0
      %894 = vmatprep.subr.bf16.mxu0 0
      %895 = vmatpush1.bf16.msra.mxu0 0
      %896 = vmatprep.subr.bf16.mxu0 0
      %897 = vmatpush1.bf16.msra.mxu0 0
      %898 = vmatprep.subr.bf16.mxu0 0
      %899 = vmatpush1.bf16.msra.mxu0 0
      %900 = vmatprep.subr.bf16.mxu0 0
      %901 = vmatpush1.bf16.msra.mxu0 0
      %902 = vmatprep.subr.bf16.mxu0 0
      %903 = vmatpush1.bf16.msra.mxu0 0
      %904 = vmatprep.subr.bf16.mxu0 0
      %905 = vmatpush1.bf16.msra.mxu0 0
      %906 = vmatprep.subr.bf16.mxu0 0
      %907 = vmatpush1.bf16.msra.mxu0 0
      %908 = vmatprep.subr.bf16.mxu0 0
      %909 = vmatpush1.bf16.msra.mxu0 0
      %910 = vmatprep.mubr.bf16.mxu0 0
      %911 = vmatmul.mubr.bf16.gmra.mrb[0].mxu0 %v876
      %v912 = vpop.f32.mrb[0].mxu0
      %v913 = vadd.f32 %v864, %v912
      %v914 = vpop.f32.mrb[0].mxu0
      %v915 = vpop.f32.mrb[0].mxu0
      %v916 = vpop.f32.mrb[0].mxu0
      %917 = vdwg.mxu0
      %s918 = scalar_lea.vmem [#allocation2], 2
      %v919 = vld [vmem:[%s918] ss:$8 sm:$0xf]
      %v920 = vld [vmem:[%s918] ss:$8 sm:$0xf0]
      %v921 = vor.u32 %v919, %v920
      %v922 = vpack.c.bf16 %v921, %v921
      %v925 = vunpack.c.l.b16 %v799
      %v926 = vunpack.c.l.b16 %v800
      %v927 = vpack.c.b16 %v926, %v925
      %v930 = vsel %vm523, %v922, 0
      %932 = vmatprep.subr.bf16.mxu0 0
      %933 = vmatpush1.bf16.msra.mxu0 %v927
      %934 = vmatprep.subr.bf16.mxu0 0
      %935 = vmatpush1.bf16.msra.mxu0 0
      %936 = vmatprep.subr.bf16.mxu0 0
      %937 = vmatpush1.bf16.msra.mxu0 0
      %938 = vmatprep.subr.bf16.mxu0 0
      %939 = vmatpush1.bf16.msra.mxu0 0
      %940 = vmatprep.subr.bf16.mxu0 0
      %941 = vmatpush1.bf16.msra.mxu0 0
      %942 = vmatprep.subr.bf16.mxu0 0
      %943 = vmatpush1.bf16.msra.mxu0 0
      %944 = vmatprep.subr.bf16.mxu0 0
      %945 = vmatpush1.bf16.msra.mxu0 0
      %946 = vmatprep.subr.bf16.mxu0 0
      %947 = vmatpush1.bf16.msra.mxu0 0
      %948 = vmatprep.subr.bf16.mxu0 0
      %949 = vmatpush1.bf16.msra.mxu0 0
      %950 = vmatprep.subr.bf16.mxu0 0
      %951 = vmatpush1.bf16.msra.mxu0 0
      %952 = vmatprep.subr.bf16.mxu0 0
      %953 = vmatpush1.bf16.msra.mxu0 0
      %954 = vmatprep.subr.bf16.mxu0 0
      %955 = vmatpush1.bf16.msra.mxu0 0
      %956 = vmatprep.subr.bf16.mxu0 0
      %957 = vmatpush1.bf16.msra.mxu0 0
      %958 = vmatprep.subr.bf16.mxu0 0
      %959 = vmatpush1.bf16.msra.mxu0 0
      %960 = vmatprep.subr.bf16.mxu0 0
      %961 = vmatpush1.bf16.msra.mxu0 0
      %962 = vmatprep.subr.bf16.mxu0 0
      %963 = vmatpush1.bf16.msra.mxu0 0
      %964 = vmatprep.mubr.bf16.mxu0 0
      %965 = vmatmul.mubr.bf16.gmra.mrb[0].mxu0 %v930
      %v966 = vpop.f32.mrb[0].mxu0
      %v967 = vadd.f32 0.0, %v966
      %v968 = vpop.f32.mrb[0].mxu0
      %v969 = vpop.f32.mrb[0].mxu0
      %v970 = vpop.f32.mrb[0].mxu0
      %971 = vdwg.mxu0
      %v972 = vadd.f32 %v913, %v967
      %s973 = scalar_lea.vmem [#allocation2], 3
      %v974 = vld [vmem:[%s973] ss:$8 sm:$0xf]
      %v975 = vld [vmem:[%s973] ss:$8 sm:$0xf0]
      %v976 = vor.u32 %v974, %v975
      %v977 = vpack.c.bf16 %v976, %v976
      %v980 = vunpack.c.l.b16 %v801
      %v981 = vunpack.c.l.b16 %v802
      %v982 = vpack.c.b16 %v981, %v980
      %v985 = vsel %vm523, %v977, 0
      %987 = vmatprep.subr.bf16.mxu0 0
      %988 = vmatpush1.bf16.msra.mxu0 %v982
      %989 = vmatprep.subr.bf16.mxu0 0
      %990 = vmatpush1.bf16.msra.mxu0 0
      %991 = vmatprep.subr.bf16.mxu0 0
      %992 = vmatpush1.bf16.msra.mxu0 0
      %993 = vmatprep.subr.bf16.mxu0 0
      %994 = vmatpush1.bf16.msra.mxu0 0
      %995 = vmatprep.subr.bf16.mxu0 0
      %996 = vmatpush1.bf16.msra.mxu0 0
      %997 = vmatprep.subr.bf16.mxu0 0
      %998 = vmatpush1.bf16.msra.mxu0 0
      %999 = vmatprep.subr.bf16.mxu0 0
      %1000 = vmatpush1.bf16.msra.mxu0 0
      %1001 = vmatprep.subr.bf16.mxu0 0
      %1002 = vmatpush1.bf16.msra.mxu0 0
      %1003 = vmatprep.subr.bf16.mxu0 0
      %1004 = vmatpush1.bf16.msra.mxu0 0
      %1005 = vmatprep.subr.bf16.mxu0 0
      %1006 = vmatpush1.bf16.msra.mxu0 0
      %1007 = vmatprep.subr.bf16.mxu0 0
      %1008 = vmatpush1.bf16.msra.mxu0 0
      %1009 = vmatprep.subr.bf16.mxu0 0
      %1010 = vmatpush1.bf16.msra.mxu0 0
      %1011 = vmatprep.subr.bf16.mxu0 0
      %1012 = vmatpush1.bf16.msra.mxu0 0
      %1013 = vmatprep.subr.bf16.mxu0 0
      %1014 = vmatpush1.bf16.msra.mxu0 0
      %1015 = vmatprep.subr.bf16.mxu0 0
      %1016 = vmatpush1.bf16.msra.mxu0 0
      %1017 = vmatprep.subr.bf16.mxu0 0
      %1018 = vmatpush1.bf16.msra.mxu0 0
      %1019 = vmatprep.mubr.bf16.mxu0 0
      %1020 = vmatmul.mubr.bf16.gmra.mrb[0].mxu0 %v985
      %v1021 = vpop.f32.mrb[0].mxu0
      %v1022 = vadd.f32 0.0, %v1021
      %v1023 = vpop.f32.mrb[0].mxu0
      %v1024 = vpop.f32.mrb[0].mxu0
      %v1025 = vpop.f32.mrb[0].mxu0
      %1026 = vdwg.mxu0
      %v1027 = vadd.f32 %v972, %v1022
      %s1028 = scalar_lea.vmem [#allocation2], 4
      %v1029 = vld [vmem:[%s1028] ss:$8 sm:$0xf]
      %v1030 = vld [vmem:[%s1028] ss:$8 sm:$0xf0]
      %v1031 = vor.u32 %v1029, %v1030
      %v1032 = vpack.c.bf16 %v1031, %v1031
      %v1035 = vunpack.c.l.b16 %v803
      %v1036 = vunpack.c.l.b16 %v804
      %v1037 = vpack.c.b16 %v1036, %v1035
      %v1040 = vsel %vm523, %v1032, 0
      %1042 = vmatprep.subr.bf16.mxu0 0
      %1043 = vmatpush1.bf16.msra.mxu0 %v1037
      %1044 = vmatprep.subr.bf16.mxu0 0
      %1045 = vmatpush1.bf16.msra.mxu0 0
      %1046 = vmatprep.subr.bf16.mxu0 0
      %1047 = vmatpush1.bf16.msra.mxu0 0
      %1048 = vmatprep.subr.bf16.mxu0 0
      %1049 = vmatpush1.bf16.msra.mxu0 0
      %1050 = vmatprep.subr.bf16.mxu0 0
      %1051 = vmatpush1.bf16.msra.mxu0 0
      %1052 = vmatprep.subr.bf16.mxu0 0
      %1053 = vmatpush1.bf16.msra.mxu0 0
      %1054 = vmatprep.subr.bf16.mxu0 0
      %1055 = vmatpush1.bf16.msra.mxu0 0
      %1056 = vmatprep.subr.bf16.mxu0 0
      %1057 = vmatpush1.bf16.msra.mxu0 0
      %1058 = vmatprep.subr.bf16.mxu0 0
      %1059 = vmatpush1.bf16.msra.mxu0 0
      %1060 = vmatprep.subr.bf16.mxu0 0
      %1061 = vmatpush1.bf16.msra.mxu0 0
      %1062 = vmatprep.subr.bf16.mxu0 0
      %1063 = vmatpush1.bf16.msra.mxu0 0
      %1064 = vmatprep.subr.bf16.mxu0 0
      %1065 = vmatpush1.bf16.msra.mxu0 0
      %1066 = vmatprep.subr.bf16.mxu0 0
      %1067 = vmatpush1.bf16.msra.mxu0 0
      %1068 = vmatprep.subr.bf16.mxu0 0
      %1069 = vmatpush1.bf16.msra.mxu0 0
      %1070 = vmatprep.subr.bf16.mxu0 0
      %1071 = vmatpush1.bf16.msra.mxu0 0
      %1072 = vmatprep.subr.bf16.mxu0 0
      %1073 = vmatpush1.bf16.msra.mxu0 0
      %1074 = vmatprep.mubr.bf16.mxu0 0
      %1075 = vmatmul.mubr.bf16.gmra.mrb[0].mxu0 %v1040
      %v1076 = vpop.f32.mrb[0].mxu0
      %v1077 = vadd.f32 0.0, %v1076
      %v1078 = vpop.f32.mrb[0].mxu0
      %v1079 = vpop.f32.mrb[0].mxu0
      %v1080 = vpop.f32.mrb[0].mxu0
      %1081 = vdwg.mxu0
      %v1082 = vadd.f32 %v1027, %v1077
      %s1083 = scalar_lea.vmem [#allocation2], 5
      %v1084 = vld [vmem:[%s1083] ss:$8 sm:$0xf]
      %v1085 = vld [vmem:[%s1083] ss:$8 sm:$0xf0]
      %v1086 = vor.u32 %v1084, %v1085
      %v1087 = vpack.c.bf16 %v1086, %v1086
      %v1090 = vunpack.c.l.b16 %v805
      %v1091 = vunpack.c.l.b16 %v806
      %v1092 = vpack.c.b16 %v1091, %v1090
      %v1095 = vsel %vm523, %v1087, 0
      %1097 = vmatprep.subr.bf16.mxu0 0
      %1098 = vmatpush1.bf16.msra.mxu0 %v1092
      %1099 = vmatprep.subr.bf16.mxu0 0
      %1100 = vmatpush1.bf16.msra.mxu0 0
      %1101 = vmatprep.subr.bf16.mxu0 0
      %1102 = vmatpush1.bf16.msra.mxu0 0
      %1103 = vmatprep.subr.bf16.mxu0 0
      %1104 = vmatpush1.bf16.msra.mxu0 0
      %1105 = vmatprep.subr.bf16.mxu0 0
      %1106 = vmatpush1.bf16.msra.mxu0 0
      %1107 = vmatprep.subr.bf16.mxu0 0
      %1108 = vmatpush1.bf16.msra.mxu0 0
      %1109 = vmatprep.subr.bf16.mxu0 0
      %1110 = vmatpush1.bf16.msra.mxu0 0
      %1111 = vmatprep.subr.bf16.mxu0 0
      %1112 = vmatpush1.bf16.msra.mxu0 0
      %1113 = vmatprep.subr.bf16.mxu0 0
      %1114 = vmatpush1.bf16.msra.mxu0 0
      %1115 = vmatprep.subr.bf16.mxu0 0
      %1116 = vmatpush1.bf16.msra.mxu0 0
      %1117 = vmatprep.subr.bf16.mxu0 0
      %1118 = vmatpush1.bf16.msra.mxu0 0
      %1119 = vmatprep.subr.bf16.mxu0 0
      %1120 = vmatpush1.bf16.msra.mxu0 0
      %1121 = vmatprep.subr.bf16.mxu0 0
      %1122 = vmatpush1.bf16.msra.mxu0 0
      %1123 = vmatprep.subr.bf16.mxu0 0
      %1124 = vmatpush1.bf16.msra.mxu0 0
      %1125 = vmatprep.subr.bf16.mxu0 0
      %1126 = vmatpush1.bf16.msra.mxu0 0
      %1127 = vmatprep.subr.bf16.mxu0 0
      %1128 = vmatpush1.bf16.msra.mxu0 0
      %1129 = vmatprep.mubr.bf16.mxu0 0
      %1130 = vmatmul.mubr.bf16.gmra.mrb[0].mxu0 %v1095
      %v1131 = vpop.f32.mrb[0].mxu0
      %v1132 = vadd.f32 0.0, %v1131
      %v1133 = vpop.f32.mrb[0].mxu0
      %v1134 = vpop.f32.mrb[0].mxu0
      %v1135 = vpop.f32.mrb[0].mxu0
      %1136 = vdwg.mxu0
      %v1137 = vadd.f32 %v1082, %v1132
      %s1138 = scalar_lea.vmem [#allocation2], 6
      %v1139 = vld [vmem:[%s1138] ss:$8 sm:$0xf]
      %v1140 = vld [vmem:[%s1138] ss:$8 sm:$0xf0]
      %v1141 = vor.u32 %v1139, %v1140
      %v1142 = vpack.c.bf16 %v1141, %v1141
      %v1145 = vunpack.c.l.b16 %v807
      %v1146 = vunpack.c.l.b16 %v808
      %v1147 = vpack.c.b16 %v1146, %v1145
      %v1150 = vsel %vm523, %v1142, 0
      %1152 = vmatprep.subr.bf16.mxu0 0
      %1153 = vmatpush1.bf16.msra.mxu0 %v1147
      %1154 = vmatprep.subr.bf16.mxu0 0
      %1155 = vmatpush1.bf16.msra.mxu0 0
      %1156 = vmatprep.subr.bf16.mxu0 0
      %1157 = vmatpush1.bf16.msra.mxu0 0
      %1158 = vmatprep.subr.bf16.mxu0 0
      %1159 = vmatpush1.bf16.msra.mxu0 0
      %1160 = vmatprep.subr.bf16.mxu0 0
      %1161 = vmatpush1.bf16.msra.mxu0 0
      %1162 = vmatprep.subr.bf16.mxu0 0
      %1163 = vmatpush1.bf16.msra.mxu0 0
      %1164 = vmatprep.subr.bf16.mxu0 0
      %1165 = vmatpush1.bf16.msra.mxu0 0
      %1166 = vmatprep.subr.bf16.mxu0 0
      %1167 = vmatpush1.bf16.msra.mxu0 0
      %1168 = vmatprep.subr.bf16.mxu0 0
      %1169 = vmatpush1.bf16.msra.mxu0 0
      %1170 = vmatprep.subr.bf16.mxu0 0
      %1171 = vmatpush1.bf16.msra.mxu0 0
      %1172 = vmatprep.subr.bf16.mxu0 0
      %1173 = vmatpush1.bf16.msra.mxu0 0
      %1174 = vmatprep.subr.bf16.mxu0 0
      %1175 = vmatpush1.bf16.msra.mxu0 0
      %1176 = vmatprep.subr.bf16.mxu0 0
      %1177 = vmatpush1.bf16.msra.mxu0 0
      %1178 = vmatprep.subr.bf16.mxu0 0
      %1179 = vmatpush1.bf16.msra.mxu0 0
      %1180 = vmatprep.subr.bf16.mxu0 0
      %1181 = vmatpush1.bf16.msra.mxu0 0
      %1182 = vmatprep.subr.bf16.mxu0 0
      %1183 = vmatpush1.bf16.msra.mxu0 0
      %1184 = vmatprep.mubr.bf16.mxu0 0
      %1185 = vmatmul.mubr.bf16.gmra.mrb[0].mxu0 %v1150
      %v1186 = vpop.f32.mrb[0].mxu0
      %v1187 = vadd.f32 0.0, %v1186
      %v1188 = vpop.f32.mrb[0].mxu0
      %v1189 = vpop.f32.mrb[0].mxu0
      %v1190 = vpop.f32.mrb[0].mxu0
      %1191 = vdwg.mxu0
      %v1192 = vadd.f32 %v1137, %v1187
      %s1193 = scalar_lea.vmem [#allocation2], 7
      %v1194 = vld [vmem:[%s1193] ss:$8 sm:$0xf]
      %v1195 = vld [vmem:[%s1193] ss:$8 sm:$0xf0]
      %v1196 = vor.u32 %v1194, %v1195
      %v1197 = vpack.c.bf16 %v1196, %v1196
      %v1200 = vunpack.c.l.b16 %v809
      %v1201 = vunpack.c.l.b16 %v810
      %v1202 = vpack.c.b16 %v1201, %v1200
      %v1205 = vsel %vm523, %v1197, 0
      %1207 = vmatprep.subr.bf16.mxu0 0
      %1208 = vmatpush1.bf16.msra.mxu0 %v1202
      %1209 = vmatprep.subr.bf16.mxu0 0
      %1210 = vmatpush1.bf16.msra.mxu0 0
      %1211 = vmatprep.subr.bf16.mxu0 0
      %1212 = vmatpush1.bf16.msra.mxu0 0
      %1213 = vmatprep.subr.bf16.mxu0 0
      %1214 = vmatpush1.bf16.msra.mxu0 0
      %1215 = vmatprep.subr.bf16.mxu0 0
      %1216 = vmatpush1.bf16.msra.mxu0 0
      %1217 = vmatprep.subr.bf16.mxu0 0
      %1218 = vmatpush1.bf16.msra.mxu0 0
      %1219 = vmatprep.subr.bf16.mxu0 0
      %1220 = vmatpush1.bf16.msra.mxu0 0
      %1221 = vmatprep.subr.bf16.mxu0 0
      %1222 = vmatpush1.bf16.msra.mxu0 0
      %1223 = vmatprep.subr.bf16.mxu0 0
      %1224 = vmatpush1.bf16.msra.mxu0 0
      %1225 = vmatprep.subr.bf16.mxu0 0
      %1226 = vmatpush1.bf16.msra.mxu0 0
      %1227 = vmatprep.subr.bf16.mxu0 0
      %1228 = vmatpush1.bf16.msra.mxu0 0
      %1229 = vmatprep.subr.bf16.mxu0 0
      %1230 = vmatpush1.bf16.msra.mxu0 0
      %1231 = vmatprep.subr.bf16.mxu0 0
      %1232 = vmatpush1.bf16.msra.mxu0 0
      %1233 = vmatprep.subr.bf16.mxu0 0
      %1234 = vmatpush1.bf16.msra.mxu0 0
      %1235 = vmatprep.subr.bf16.mxu0 0
      %1236 = vmatpush1.bf16.msra.mxu0 0
      %1237 = vmatprep.subr.bf16.mxu0 0
      %1238 = vmatpush1.bf16.msra.mxu0 0
      %1239 = vmatprep.mubr.bf16.mxu0 0
      %1240 = vmatmul.mubr.bf16.gmra.mrb[0].mxu0 %v1205
      %v1241 = vpop.f32.mrb[0].mxu0
      %v1242 = vadd.f32 0.0, %v1241
      %v1243 = vpop.f32.mrb[0].mxu0
      %v1244 = vpop.f32.mrb[0].mxu0
      %v1245 = vpop.f32.mrb[0].mxu0
      %1246 = vdwg.mxu0
      %v1247 = vadd.f32 %v1192, %v1242
      %s1248 = scalar_lea.vmem %s3, 24
      %v1249 = vld [vmem:[%s1248] sm:$0xf]
      %v1250 = vld [vmem:[%s1248 + $0x4] sm:$0xf]
      %s1251 = scalar_lea.vmem %s3, 32
      %v1252 = vld [vmem:[%s1251] sm:$0xf]
      %v1253 = vld [vmem:[%s1251 + $0x4] sm:$0xf]
      %s1254 = scalar_lea.vmem %s3, 40
      %v1255 = vld [vmem:[%s1254] sm:$0xf]
      %v1256 = vld [vmem:[%s1254 + $0x4] sm:$0xf]
      %v1257 = vpack.c.bf16 %v1247, %v1247
      %v1258 = vmax.f32 %v1247, 0.0
      %v1259 = vpack.c.bf16 %v1258, %v1258
      %v1262 = vunpack.c.l.b16 %v1252
      %v1263 = vunpack.c.l.b16 %v1253
      %v1264 = vpack.c.b16 %v1263, %v1262
      %v1267 = vsel %vm523, %v1259, 0
      %1269 = vmatprep.subr.bf16.mxu0 0
      %1270 = vmatpush1.bf16.msra.mxu0 %v1264
      %1271 = vmatprep.subr.bf16.mxu0 0
      %1272 = vmatpush1.bf16.msra.mxu0 0
      %1273 = vmatprep.subr.bf16.mxu0 0
      %1274 = vmatpush1.bf16.msra.mxu0 0
      %1275 = vmatprep.subr.bf16.mxu0 0
      %1276 = vmatpush1.bf16.msra.mxu0 0
      %1277 = vmatprep.subr.bf16.mxu0 0
      %1278 = vmatpush1.bf16.msra.mxu0 0
      %1279 = vmatprep.subr.bf16.mxu0 0
      %1280 = vmatpush1.bf16.msra.mxu0 0
      %1281 = vmatprep.subr.bf16.mxu0 0
      %1282 = vmatpush1.bf16.msra.mxu0 0
      %1283 = vmatprep.subr.bf16.mxu0 0
      %1284 = vmatpush1.bf16.msra.mxu0 0
      %1285 = vmatprep.subr.bf16.mxu0 0
      %1286 = vmatpush1.bf16.msra.mxu0 0
      %1287 = vmatprep.subr.bf16.mxu0 0
      %1288 = vmatpush1.bf16.msra.mxu0 0
      %1289 = vmatprep.subr.bf16.mxu0 0
      %1290 = vmatpush1.bf16.msra.mxu0 0
      %1291 = vmatprep.subr.bf16.mxu0 0
      %1292 = vmatpush1.bf16.msra.mxu0 0
      %1293 = vmatprep.subr.bf16.mxu0 0
      %1294 = vmatpush1.bf16.msra.mxu0 0
      %1295 = vmatprep.subr.bf16.mxu0 0
      %1296 = vmatpush1.bf16.msra.mxu0 0
      %1297 = vmatprep.subr.bf16.mxu0 0
      %1298 = vmatpush1.bf16.msra.mxu0 0
      %1299 = vmatprep.subr.bf16.mxu0 0
      %1300 = vmatpush1.bf16.msra.mxu0 0
      %1301 = vmatprep.mubr.bf16.mxu0 0
      %1302 = vmatmul.mubr.bf16.gmra.mrb[0].mxu0 %v1267
      %v1303 = vpop.f32.mrb[0].mxu0
      %v1304 = vadd.f32 0.0, %v1303
      %v1305 = vpop.f32.mrb[0].mxu0
      %v1306 = vpop.f32.mrb[0].mxu0
      %v1307 = vpop.f32.mrb[0].mxu0
      %1308 = vdwg.mxu0
      %v1309 = vmax.f32 %v1304, 0.0
      %v1310 = vpack.c.bf16 %v1309, %v1309
      %v1313 = vunpack.c.l.b16 %v1255
      %v1314 = vunpack.c.l.b16 %v1256
      %v1315 = vpack.c.b16 %v1314, %v1313
      %v1318 = vsel %vm523, %v1310, 0
      %1320 = vmatprep.subr.bf16.mxu0 0
      %1321 = vmatpush1.bf16.msra.mxu0 %v1315
      %1322 = vmatprep.subr.bf16.mxu0 0
      %1323 = vmatpush1.bf16.msra.mxu0 0
      %1324 = vmatprep.subr.bf16.mxu0 0
      %1325 = vmatpush1.bf16.msra.mxu0 0
      %1326 = vmatprep.subr.bf16.mxu0 0
      %1327 = vmatpush1.bf16.msra.mxu0 0
      %1328 = vmatprep.subr.bf16.mxu0 0
      %1329 = vmatpush1.bf16.msra.mxu0 0
      %1330 = vmatprep.subr.bf16.mxu0 0
      %1331 = vmatpush1.bf16.msra.mxu0 0
      %1332 = vmatprep.subr.bf16.mxu0 0
      %1333 = vmatpush1.bf16.msra.mxu0 0
      %1334 = vmatprep.subr.bf16.mxu0 0
      %1335 = vmatpush1.bf16.msra.mxu0 0
      %1336 = vmatprep.subr.bf16.mxu0 0
      %1337 = vmatpush1.bf16.msra.mxu0 0
      %1338 = vmatprep.subr.bf16.mxu0 0
      %1339 = vmatpush1.bf16.msra.mxu0 0
      %1340 = vmatprep.subr.bf16.mxu0 0
      %1341 = vmatpush1.bf16.msra.mxu0 0
      %1342 = vmatprep.subr.bf16.mxu0 0
      %1343 = vmatpush1.bf16.msra.mxu0 0
      %1344 = vmatprep.subr.bf16.mxu0 0
      %1345 = vmatpush1.bf16.msra.mxu0 0
      %1346 = vmatprep.subr.bf16.mxu0 0
      %1347 = vmatpush1.bf16.msra.mxu0 0
      %1348 = vmatprep.subr.bf16.mxu0 0
      %1349 = vmatpush1.bf16.msra.mxu0 0
      %1350 = vmatprep.subr.bf16.mxu0 0
      %1351 = vmatpush1.bf16.msra.mxu0 0
      %1352 = vmatprep.mubr.bf16.mxu0 0
      %1353 = vmatmul.mubr.bf16.gmra.mrb[0].mxu0 %v1318
      %v1354 = vpop.f32.mrb[0].mxu0
      %v1355 = vadd.f32 0.0, %v1354
      %v1356 = vpop.f32.mrb[0].mxu0
      %v1357 = vpop.f32.mrb[0].mxu0
      %v1358 = vpop.f32.mrb[0].mxu0
      %1359 = vdwg.mxu0
      %v1362 = vunpack.c.l.b16 %v1249
      %v1363 = vunpack.c.l.b16 %v1250
      %v1364 = vpack.c.b16 %v1363, %v1362
      %v1367 = vsel %vm523, %v1257, 0
      %1369 = vmatprep.subr.bf16.mxu0 0
      %1370 = vmatpush1.bf16.msra.mxu0 %v1364
      %1371 = vmatprep.subr.bf16.mxu0 0
      %1372 = vmatpush1.bf16.msra.mxu0 0
      %1373 = vmatprep.subr.bf16.mxu0 0
      %1374 = vmatpush1.bf16.msra.mxu0 0
      %1375 = vmatprep.subr.bf16.mxu0 0
      %1376 = vmatpush1.bf16.msra.mxu0 0
      %1377 = vmatprep.subr.bf16.mxu0 0
      %1378 = vmatpush1.bf16.msra.mxu0 0
      %1379 = vmatprep.subr.bf16.mxu0 0
      %1380 = vmatpush1.bf16.msra.mxu0 0
      %1381 = vmatprep.subr.bf16.mxu0 0
      %1382 = vmatpush1.bf16.msra.mxu0 0
      %1383 = vmatprep.subr.bf16.mxu0 0
      %1384 = vmatpush1.bf16.msra.mxu0 0
      %1385 = vmatprep.subr.bf16.mxu0 0
      %1386 = vmatpush1.bf16.msra.mxu0 0
      %1387 = vmatprep.subr.bf16.mxu0 0
      %1388 = vmatpush1.bf16.msra.mxu0 0
      %1389 = vmatprep.subr.bf16.mxu0 0
      %1390 = vmatpush1.bf16.msra.mxu0 0
      %1391 = vmatprep.subr.bf16.mxu0 0
      %1392 = vmatpush1.bf16.msra.mxu0 0
      %1393 = vmatprep.subr.bf16.mxu0 0
      %1394 = vmatpush1.bf16.msra.mxu0 0
      %1395 = vmatprep.subr.bf16.mxu0 0
      %1396 = vmatpush1.bf16.msra.mxu0 0
      %1397 = vmatprep.subr.bf16.mxu0 0
      %1398 = vmatpush1.bf16.msra.mxu0 0
      %1399 = vmatprep.subr.bf16.mxu0 0
      %1400 = vmatpush1.bf16.msra.mxu0 0
      %1401 = vmatprep.mubr.bf16.mxu0 0
      %1402 = vmatmul.mubr.bf16.gmra.mrb[0].mxu0 %v1367
      %v1403 = vpop.f32.mrb[0].mxu0
      %v1404 = vadd.f32 %v1355, %v1403
      %v1405 = vpop.f32.mrb[0].mxu0
      %v1406 = vpop.f32.mrb[0].mxu0
      %v1407 = vpop.f32.mrb[0].mxu0
      %1408 = vdwg.mxu0
      %v1409 = vmax.f32 %v1404, 0.0
      %1410 = vst.msk [vmem:[#allocation3] sm:$0xff] %vm523, %v1409
      %s1411 = scalar_lea.vmem %s4, 64
      %v1412 = vld [vmem:[%s1411] sm:$0xf]
      %v1413 = vld [vmem:[%s1411 + $0x4] sm:$0xf]
      %v1414 = vld [vmem:[%s1411 + $0x8] sm:$0xf]
      %v1415 = vld [vmem:[%s1411 + $0xc] sm:$0xf]
      %v1416 = vld [vmem:[%s1411 + $0x10] sm:$0xf]
      %v1417 = vld [vmem:[%s1411 + $0x14] sm:$0xf]
      %v1418 = vld [vmem:[%s1411 + $0x18] sm:$0xf]
      %v1419 = vld [vmem:[%s1411 + $0x1c] sm:$0xf]
      %v1420 = vld [vmem:[%s1411 + $0x20] sm:$0xf]
      %v1421 = vld [vmem:[%s1411 + $0x24] sm:$0xf]
      %v1422 = vld [vmem:[%s1411 + $0x28] sm:$0xf]
      %v1423 = vld [vmem:[%s1411 + $0x2c] sm:$0xf]
      %v1424 = vld [vmem:[%s1411 + $0x30] sm:$0xf]
      %v1425 = vld [vmem:[%s1411 + $0x34] sm:$0xf]
      %v1426 = vld [vmem:[%s1411 + $0x38] sm:$0xf]
      %v1427 = vld [vmem:[%s1411 + $0x3c] sm:$0xf]
      %v1428 = vld [vmem:[#allocation3] sm:$0x1]
      %v1429 = vpack.c.bf16 %v1428, %v1428
      %v1430 = vld [vmem:[#allocation3 + $0x1] sm:$0x1]
      %v1431 = vpack.c.bf16 %v1430, %v1430
      %v1434 = vunpack.c.l.b16 %v1414
      %v1435 = vunpack.c.l.b16 %v1415
      %v1436 = vpack.c.b16 %v1435, %v1434
      %v1439 = vsel %vm523, %v1431, 0
      %1441 = vmatprep.subr.bf16.mxu0 0
      %1442 = vmatpush1.bf16.msra.mxu0 %v1436
      %1443 = vmatprep.subr.bf16.mxu0 0
      %1444 = vmatpush1.bf16.msra.mxu0 0
      %1445 = vmatprep.subr.bf16.mxu0 0
      %1446 = vmatpush1.bf16.msra.mxu0 0
      %1447 = vmatprep.subr.bf16.mxu0 0
      %1448 = vmatpush1.bf16.msra.mxu0 0
      %1449 = vmatprep.subr.bf16.mxu0 0
      %1450 = vmatpush1.bf16.msra.mxu0 0
      %1451 = vmatprep.subr.bf16.mxu0 0
      %1452 = vmatpush1.bf16.msra.mxu0 0
      %1453 = vmatprep.subr.bf16.mxu0 0
      %1454 = vmatpush1.bf16.msra.mxu0 0
      %1455 = vmatprep.subr.bf16.mxu0 0
      %1456 = vmatpush1.bf16.msra.mxu0 0
      %1457 = vmatprep.subr.bf16.mxu0 0
      %1458 = vmatpush1.bf16.msra.mxu0 0
      %1459 = vmatprep.subr.bf16.mxu0 0
      %1460 = vmatpush1.bf16.msra.mxu0 0
      %1461 = vmatprep.subr.bf16.mxu0 0
      %1462 = vmatpush1.bf16.msra.mxu0 0
      %1463 = vmatprep.subr.bf16.mxu0 0
      %1464 = vmatpush1.bf16.msra.mxu0 0
      %1465 = vmatprep.subr.bf16.mxu0 0
      %1466 = vmatpush1.bf16.msra.mxu0 0
      %1467 = vmatprep.subr.bf16.mxu0 0
      %1468 = vmatpush1.bf16.msra.mxu0 0
      %1469 = vmatprep.subr.bf16.mxu0 0
      %1470 = vmatpush1.bf16.msra.mxu0 0
      %1471 = vmatprep.subr.bf16.mxu0 0
      %1472 = vmatpush1.bf16.msra.mxu0 0
      %1473 = vmatprep.mubr.bf16.mxu0 0
      %1474 = vmatmul.mubr.bf16.gmra.mrb[0].mxu0 %v1439
      %v1475 = vpop.f32.mrb[0].mxu0
      %v1476 = vadd.f32 0.0, %v1475
      %v1477 = vpop.f32.mrb[0].mxu0
      %v1478 = vpop.f32.mrb[0].mxu0
      %v1479 = vpop.f32.mrb[0].mxu0
      %1480 = vdwg.mxu0
      %v1483 = vunpack.c.l.b16 %v1412
      %v1484 = vunpack.c.l.b16 %v1413
      %v1485 = vpack.c.b16 %v1484, %v1483
      %v1488 = vsel %vm523, %v1429, 0
      %1490 = vmatprep.subr.bf16.mxu0 0
      %1491 = vmatpush1.bf16.msra.mxu0 %v1485
      %1492 = vmatprep.subr.bf16.mxu0 0
      %1493 = vmatpush1.bf16.msra.mxu0 0
      %1494 = vmatprep.subr.bf16.mxu0 0
      %1495 = vmatpush1.bf16.msra.mxu0 0
      %1496 = vmatprep.subr.bf16.mxu0 0
      %1497 = vmatpush1.bf16.msra.mxu0 0
      %1498 = vmatprep.subr.bf16.mxu0 0
      %1499 = vmatpush1.bf16.msra.mxu0 0
      %1500 = vmatprep.subr.bf16.mxu0 0
      %1501 = vmatpush1.bf16.msra.mxu0 0
      %1502 = vmatprep.subr.bf16.mxu0 0
      %1503 = vmatpush1.bf16.msra.mxu0 0
      %1504 = vmatprep.subr.bf16.mxu0 0
      %1505 = vmatpush1.bf16.msra.mxu0 0
      %1506 = vmatprep.subr.bf16.mxu0 0
      %1507 = vmatpush1.bf16.msra.mxu0 0
      %1508 = vmatprep.subr.bf16.mxu0 0
      %1509 = vmatpush1.bf16.msra.mxu0 0
      %1510 = vmatprep.subr.bf16.mxu0 0
      %1511 = vmatpush1.bf16.msra.mxu0 0
      %1512 = vmatprep.subr.bf16.mxu0 0
      %1513 = vmatpush1.bf16.msra.mxu0 0
      %1514 = vmatprep.subr.bf16.mxu0 0
      %1515 = vmatpush1.bf16.msra.mxu0 0
      %1516 = vmatprep.subr.bf16.mxu0 0
      %1517 = vmatpush1.bf16.msra.mxu0 0
      %1518 = vmatprep.subr.bf16.mxu0 0
      %1519 = vmatpush1.bf16.msra.mxu0 0
      %1520 = vmatprep.subr.bf16.mxu0 0
      %1521 = vmatpush1.bf16.msra.mxu0 0
      %1522 = vmatprep.mubr.bf16.mxu0 0
      %1523 = vmatmul.mubr.bf16.gmra.mrb[0].mxu0 %v1488
      %v1524 = vpop.f32.mrb[0].mxu0
      %v1525 = vadd.f32 %v1476, %v1524
      %v1526 = vpop.f32.mrb[0].mxu0
      %v1527 = vpop.f32.mrb[0].mxu0
      %v1528 = vpop.f32.mrb[0].mxu0
      %1529 = vdwg.mxu0
      %v1530 = vld [vmem:[#allocation3 + $0x2] sm:$0x1]
      %v1531 = vpack.c.bf16 %v1530, %v1530
      %v1534 = vunpack.c.l.b16 %v1416
      %v1535 = vunpack.c.l.b16 %v1417
      %v1536 = vpack.c.b16 %v1535, %v1534
      %v1539 = vsel %vm523, %v1531, 0
      %1541 = vmatprep.subr.bf16.mxu0 0
      %1542 = vmatpush1.bf16.msra.mxu0 %v1536
      %1543 = vmatprep.subr.bf16.mxu0 0
      %1544 = vmatpush1.bf16.msra.mxu0 0
      %1545 = vmatprep.subr.bf16.mxu0 0
      %1546 = vmatpush1.bf16.msra.mxu0 0
      %1547 = vmatprep.subr.bf16.mxu0 0
      %1548 = vmatpush1.bf16.msra.mxu0 0
      %1549 = vmatprep.subr.bf16.mxu0 0
      %1550 = vmatpush1.bf16.msra.mxu0 0
      %1551 = vmatprep.subr.bf16.mxu0 0
      %1552 = vmatpush1.bf16.msra.mxu0 0
      %1553 = vmatprep.subr.bf16.mxu0 0
      %1554 = vmatpush1.bf16.msra.mxu0 0
      %1555 = vmatprep.subr.bf16.mxu0 0
      %1556 = vmatpush1.bf16.msra.mxu0 0
      %1557 = vmatprep.subr.bf16.mxu0 0
      %1558 = vmatpush1.bf16.msra.mxu0 0
      %1559 = vmatprep.subr.bf16.mxu0 0
      %1560 = vmatpush1.bf16.msra.mxu0 0
      %1561 = vmatprep.subr.bf16.mxu0 0
      %1562 = vmatpush1.bf16.msra.mxu0 0
      %1563 = vmatprep.subr.bf16.mxu0 0
      %1564 = vmatpush1.bf16.msra.mxu0 0
      %1565 = vmatprep.subr.bf16.mxu0 0
      %1566 = vmatpush1.bf16.msra.mxu0 0
      %1567 = vmatprep.subr.bf16.mxu0 0
      %1568 = vmatpush1.bf16.msra.mxu0 0
      %1569 = vmatprep.subr.bf16.mxu0 0
      %1570 = vmatpush1.bf16.msra.mxu0 0
      %1571 = vmatprep.subr.bf16.mxu0 0
      %1572 = vmatpush1.bf16.msra.mxu0 0
      %1573 = vmatprep.mubr.bf16.mxu0 0
      %1574 = vmatmul.mubr.bf16.gmra.mrb[0].mxu0 %v1539
      %v1575 = vpop.f32.mrb[0].mxu0
      %v1576 = vadd.f32 0.0, %v1575
      %v1577 = vpop.f32.mrb[0].mxu0
      %v1578 = vpop.f32.mrb[0].mxu0
      %v1579 = vpop.f32.mrb[0].mxu0
      %1580 = vdwg.mxu0
      %v1581 = vadd.f32 %v1525, %v1576
      %v1582 = vld [vmem:[#allocation3 + $0x3] sm:$0x1]
      %v1583 = vpack.c.bf16 %v1582, %v1582
      %v1586 = vunpack.c.l.b16 %v1418
      %v1587 = vunpack.c.l.b16 %v1419
      %v1588 = vpack.c.b16 %v1587, %v1586
      %v1591 = vsel %vm523, %v1583, 0
      %1593 = vmatprep.subr.bf16.mxu0 0
      %1594 = vmatpush1.bf16.msra.mxu0 %v1588
      %1595 = vmatprep.subr.bf16.mxu0 0
      %1596 = vmatpush1.bf16.msra.mxu0 0
      %1597 = vmatprep.subr.bf16.mxu0 0
      %1598 = vmatpush1.bf16.msra.mxu0 0
      %1599 = vmatprep.subr.bf16.mxu0 0
      %1600 = vmatpush1.bf16.msra.mxu0 0
      %1601 = vmatprep.subr.bf16.mxu0 0
      %1602 = vmatpush1.bf16.msra.mxu0 0
      %1603 = vmatprep.subr.bf16.mxu0 0
      %1604 = vmatpush1.bf16.msra.mxu0 0
      %1605 = vmatprep.subr.bf16.mxu0 0
      %1606 = vmatpush1.bf16.msra.mxu0 0
      %1607 = vmatprep.subr.bf16.mxu0 0
      %1608 = vmatpush1.bf16.msra.mxu0 0
      %1609 = vmatprep.subr.bf16.mxu0 0
      %1610 = vmatpush1.bf16.msra.mxu0 0
      %1611 = vmatprep.subr.bf16.mxu0 0
      %1612 = vmatpush1.bf16.msra.mxu0 0
      %1613 = vmatprep.subr.bf16.mxu0 0
      %1614 = vmatpush1.bf16.msra.mxu0 0
      %1615 = vmatprep.subr.bf16.mxu0 0
      %1616 = vmatpush1.bf16.msra.mxu0 0
      %1617 = vmatprep.subr.bf16.mxu0 0
      %1618 = vmatpush1.bf16.msra.mxu0 0
      %1619 = vmatprep.subr.bf16.mxu0 0
      %1620 = vmatpush1.bf16.msra.mxu0 0
      %1621 = vmatprep.subr.bf16.mxu0 0
      %1622 = vmatpush1.bf16.msra.mxu0 0
      %1623 = vmatprep.subr.bf16.mxu0 0
      %1624 = vmatpush1.bf16.msra.mxu0 0
      %1625 = vmatprep.mubr.bf16.mxu0 0
      %1626 = vmatmul.mubr.bf16.gmra.mrb[0].mxu0 %v1591
      %v1627 = vpop.f32.mrb[0].mxu0
      %v1628 = vadd.f32 0.0, %v1627
      %v1629 = vpop.f32.mrb[0].mxu0
      %v1630 = vpop.f32.mrb[0].mxu0
      %v1631 = vpop.f32.mrb[0].mxu0
      %1632 = vdwg.mxu0
      %v1633 = vadd.f32 %v1581, %v1628
      %v1634 = vld [vmem:[#allocation3 + $0x4] sm:$0x1]
      %v1635 = vpack.c.bf16 %v1634, %v1634
      %v1638 = vunpack.c.l.b16 %v1420
      %v1639 = vunpack.c.l.b16 %v1421
      %v1640 = vpack.c.b16 %v1639, %v1638
      %v1643 = vsel %vm523, %v1635, 0
      %1645 = vmatprep.subr.bf16.mxu0 0
      %1646 = vmatpush1.bf16.msra.mxu0 %v1640
      %1647 = vmatprep.subr.bf16.mxu0 0
      %1648 = vmatpush1.bf16.msra.mxu0 0
      %1649 = vmatprep.subr.bf16.mxu0 0
      %1650 = vmatpush1.bf16.msra.mxu0 0
      %1651 = vmatprep.subr.bf16.mxu0 0
      %1652 = vmatpush1.bf16.msra.mxu0 0
      %1653 = vmatprep.subr.bf16.mxu0 0
      %1654 = vmatpush1.bf16.msra.mxu0 0
      %1655 = vmatprep.subr.bf16.mxu0 0
      %1656 = vmatpush1.bf16.msra.mxu0 0
      %1657 = vmatprep.subr.bf16.mxu0 0
      %1658 = vmatpush1.bf16.msra.mxu0 0
      %1659 = vmatprep.subr.bf16.mxu0 0
      %1660 = vmatpush1.bf16.msra.mxu0 0
      %1661 = vmatprep.subr.bf16.mxu0 0
      %1662 = vmatpush1.bf16.msra.mxu0 0
      %1663 = vmatprep.subr.bf16.mxu0 0
      %1664 = vmatpush1.bf16.msra.mxu0 0
      %1665 = vmatprep.subr.bf16.mxu0 0
      %1666 = vmatpush1.bf16.msra.mxu0 0
      %1667 = vmatprep.subr.bf16.mxu0 0
      %1668 = vmatpush1.bf16.msra.mxu0 0
      %1669 = vmatprep.subr.bf16.mxu0 0
      %1670 = vmatpush1.bf16.msra.mxu0 0
      %1671 = vmatprep.subr.bf16.mxu0 0
      %1672 = vmatpush1.bf16.msra.mxu0 0
      %1673 = vmatprep.subr.bf16.mxu0 0
      %1674 = vmatpush1.bf16.msra.mxu0 0
      %1675 = vmatprep.subr.bf16.mxu0 0
      %1676 = vmatpush1.bf16.msra.mxu0 0
      %1677 = vmatprep.mubr.bf16.mxu0 0
      %1678 = vmatmul.mubr.bf16.gmra.mrb[0].mxu0 %v1643
      %v1679 = vpop.f32.mrb[0].mxu0
      %v1680 = vadd.f32 0.0, %v1679
      %v1681 = vpop.f32.mrb[0].mxu0
      %v1682 = vpop.f32.mrb[0].mxu0
      %v1683 = vpop.f32.mrb[0].mxu0
      %1684 = vdwg.mxu0
      %v1685 = vadd.f32 %v1633, %v1680
      %v1686 = vld [vmem:[#allocation3 + $0x5] sm:$0x1]
      %v1687 = vpack.c.bf16 %v1686, %v1686
      %v1690 = vunpack.c.l.b16 %v1422
      %v1691 = vunpack.c.l.b16 %v1423
      %v1692 = vpack.c.b16 %v1691, %v1690
      %v1695 = vsel %vm523, %v1687, 0
      %1697 = vmatprep.subr.bf16.mxu0 0
      %1698 = vmatpush1.bf16.msra.mxu0 %v1692
      %1699 = vmatprep.subr.bf16.mxu0 0
      %1700 = vmatpush1.bf16.msra.mxu0 0
      %1701 = vmatprep.subr.bf16.mxu0 0
      %1702 = vmatpush1.bf16.msra.mxu0 0
      %1703 = vmatprep.subr.bf16.mxu0 0
      %1704 = vmatpush1.bf16.msra.mxu0 0
      %1705 = vmatprep.subr.bf16.mxu0 0
      %1706 = vmatpush1.bf16.msra.mxu0 0
      %1707 = vmatprep.subr.bf16.mxu0 0
      %1708 = vmatpush1.bf16.msra.mxu0 0
      %1709 = vmatprep.subr.bf16.mxu0 0
      %1710 = vmatpush1.bf16.msra.mxu0 0
      %1711 = vmatprep.subr.bf16.mxu0 0
      %1712 = vmatpush1.bf16.msra.mxu0 0
      %1713 = vmatprep.subr.bf16.mxu0 0
      %1714 = vmatpush1.bf16.msra.mxu0 0
      %1715 = vmatprep.subr.bf16.mxu0 0
      %1716 = vmatpush1.bf16.msra.mxu0 0
      %1717 = vmatprep.subr.bf16.mxu0 0
      %1718 = vmatpush1.bf16.msra.mxu0 0
      %1719 = vmatprep.subr.bf16.mxu0 0
      %1720 = vmatpush1.bf16.msra.mxu0 0
      %1721 = vmatprep.subr.bf16.mxu0 0
      %1722 = vmatpush1.bf16.msra.mxu0 0
      %1723 = vmatprep.subr.bf16.mxu0 0
      %1724 = vmatpush1.bf16.msra.mxu0 0
      %1725 = vmatprep.subr.bf16.mxu0 0
      %1726 = vmatpush1.bf16.msra.mxu0 0
      %1727 = vmatprep.subr.bf16.mxu0 0
      %1728 = vmatpush1.bf16.msra.mxu0 0
      %1729 = vmatprep.mubr.bf16.mxu0 0
      %1730 = vmatmul.mubr.bf16.gmra.mrb[0].mxu0 %v1695
      %v1731 = vpop.f32.mrb[0].mxu0
      %v1732 = vadd.f32 0.0, %v1731
      %v1733 = vpop.f32.mrb[0].mxu0
      %v1734 = vpop.f32.mrb[0].mxu0
      %v1735 = vpop.f32.mrb[0].mxu0
      %1736 = vdwg.mxu0
      %v1737 = vadd.f32 %v1685, %v1732
      %v1738 = vld [vmem:[#allocation3 + $0x6] sm:$0x1]
      %v1739 = vpack.c.bf16 %v1738, %v1738
      %v1742 = vunpack.c.l.b16 %v1424
      %v1743 = vunpack.c.l.b16 %v1425
      %v1744 = vpack.c.b16 %v1743, %v1742
      %v1747 = vsel %vm523, %v1739, 0
      %1749 = vmatprep.subr.bf16.mxu0 0
      %1750 = vmatpush1.bf16.msra.mxu0 %v1744
      %1751 = vmatprep.subr.bf16.mxu0 0
      %1752 = vmatpush1.bf16.msra.mxu0 0
      %1753 = vmatprep.subr.bf16.mxu0 0
      %1754 = vmatpush1.bf16.msra.mxu0 0
      %1755 = vmatprep.subr.bf16.mxu0 0
      %1756 = vmatpush1.bf16.msra.mxu0 0
      %1757 = vmatprep.subr.bf16.mxu0 0
      %1758 = vmatpush1.bf16.msra.mxu0 0
      %1759 = vmatprep.subr.bf16.mxu0 0
      %1760 = vmatpush1.bf16.msra.mxu0 0
      %1761 = vmatprep.subr.bf16.mxu0 0
      %1762 = vmatpush1.bf16.msra.mxu0 0
      %1763 = vmatprep.subr.bf16.mxu0 0
      %1764 = vmatpush1.bf16.msra.mxu0 0
      %1765 = vmatprep.subr.bf16.mxu0 0
      %1766 = vmatpush1.bf16.msra.mxu0 0
      %1767 = vmatprep.subr.bf16.mxu0 0
      %1768 = vmatpush1.bf16.msra.mxu0 0
      %1769 = vmatprep.subr.bf16.mxu0 0
      %1770 = vmatpush1.bf16.msra.mxu0 0
      %1771 = vmatprep.subr.bf16.mxu0 0
      %1772 = vmatpush1.bf16.msra.mxu0 0
      %1773 = vmatprep.subr.bf16.mxu0 0
      %1774 = vmatpush1.bf16.msra.mxu0 0
      %1775 = vmatprep.subr.bf16.mxu0 0
      %1776 = vmatpush1.bf16.msra.mxu0 0
      %1777 = vmatprep.subr.bf16.mxu0 0
      %1778 = vmatpush1.bf16.msra.mxu0 0
      %1779 = vmatprep.subr.bf16.mxu0 0
      %1780 = vmatpush1.bf16.msra.mxu0 0
      %1781 = vmatprep.mubr.bf16.mxu0 0
      %1782 = vmatmul.mubr.bf16.gmra.mrb[0].mxu0 %v1747
      %v1783 = vpop.f32.mrb[0].mxu0
      %v1784 = vadd.f32 0.0, %v1783
      %v1785 = vpop.f32.mrb[0].mxu0
      %v1786 = vpop.f32.mrb[0].mxu0
      %v1787 = vpop.f32.mrb[0].mxu0
      %1788 = vdwg.mxu0
      %v1789 = vadd.f32 %v1737, %v1784
      %v1790 = vld [vmem:[#allocation3 + $0x7] sm:$0x1]
      %v1791 = vpack.c.bf16 %v1790, %v1790
      %v1794 = vunpack.c.l.b16 %v1426
      %v1795 = vunpack.c.l.b16 %v1427
      %v1796 = vpack.c.b16 %v1795, %v1794
      %v1799 = vsel %vm523, %v1791, 0
      %1801 = vmatprep.subr.bf16.mxu0 0
      %1802 = vmatpush1.bf16.msra.mxu0 %v1796
      %1803 = vmatprep.subr.bf16.mxu0 0
      %1804 = vmatpush1.bf16.msra.mxu0 0
      %1805 = vmatprep.subr.bf16.mxu0 0
      %1806 = vmatpush1.bf16.msra.mxu0 0
      %1807 = vmatprep.subr.bf16.mxu0 0
      %1808 = vmatpush1.bf16.msra.mxu0 0
      %1809 = vmatprep.subr.bf16.mxu0 0
      %1810 = vmatpush1.bf16.msra.mxu0 0
      %1811 = vmatprep.subr.bf16.mxu0 0
      %1812 = vmatpush1.bf16.msra.mxu0 0
      %1813 = vmatprep.subr.bf16.mxu0 0
      %1814 = vmatpush1.bf16.msra.mxu0 0
      %1815 = vmatprep.subr.bf16.mxu0 0
      %1816 = vmatpush1.bf16.msra.mxu0 0
      %1817 = vmatprep.subr.bf16.mxu0 0
      %1818 = vmatpush1.bf16.msra.mxu0 0
      %1819 = vmatprep.subr.bf16.mxu0 0
      %1820 = vmatpush1.bf16.msra.mxu0 0
      %1821 = vmatprep.subr.bf16.mxu0 0
      %1822 = vmatpush1.bf16.msra.mxu0 0
      %1823 = vmatprep.subr.bf16.mxu0 0
      %1824 = vmatpush1.bf16.msra.mxu0 0
      %1825 = vmatprep.subr.bf16.mxu0 0
      %1826 = vmatpush1.bf16.msra.mxu0 0
      %1827 = vmatprep.subr.bf16.mxu0 0
      %1828 = vmatpush1.bf16.msra.mxu0 0
      %1829 = vmatprep.subr.bf16.mxu0 0
      %1830 = vmatpush1.bf16.msra.mxu0 0
      %1831 = vmatprep.subr.bf16.mxu0 0
      %1832 = vmatpush1.bf16.msra.mxu0 0
      %1833 = vmatprep.mubr.bf16.mxu0 0
      %1834 = vmatmul.mubr.bf16.gmra.mrb[0].mxu0 %v1799
      %v1835 = vpop.f32.mrb[0].mxu0
      %v1836 = vadd.f32 0.0, %v1835
      %v1837 = vpop.f32.mrb[0].mxu0
      %v1838 = vpop.f32.mrb[0].mxu0
      %v1839 = vpop.f32.mrb[0].mxu0
      %1840 = vdwg.mxu0
      %v1841 = vadd.f32 %v1789, %v1836
      %v1842 = vld [vmem:[%s5] sm:$0xf]
      %v1843 = vld [vmem:[%s5 + $0x4] sm:$0xf]
      %s1844 = scalar_lea.vmem %s5, 8
      %v1845 = vld [vmem:[%s1844] sm:$0xf]
      %v1846 = vld [vmem:[%s1844 + $0x4] sm:$0xf]
      %v1847 = vmax.f32 %v1841, 0.0
      %v1848 = vpack.c.bf16 %v1847, %v1847
      %v1851 = vunpack.c.l.b16 %v1845
      %v1852 = vunpack.c.l.b16 %v1846
      %v1853 = vpack.c.b16 %v1852, %v1851
      %v1856 = vsel %vm523, %v1848, 0
      %1858 = vmatprep.subr.bf16.mxu0 0
      %1859 = vmatpush1.bf16.msra.mxu0 %v1853
      %1860 = vmatprep.subr.bf16.mxu0 0
      %1861 = vmatpush1.bf16.msra.mxu0 0
      %1862 = vmatprep.subr.bf16.mxu0 0
      %1863 = vmatpush1.bf16.msra.mxu0 0
      %1864 = vmatprep.subr.bf16.mxu0 0
      %1865 = vmatpush1.bf16.msra.mxu0 0
      %1866 = vmatprep.subr.bf16.mxu0 0
      %1867 = vmatpush1.bf16.msra.mxu0 0
      %1868 = vmatprep.subr.bf16.mxu0 0
      %1869 = vmatpush1.bf16.msra.mxu0 0
      %1870 = vmatprep.subr.bf16.mxu0 0
      %1871 = vmatpush1.bf16.msra.mxu0 0
      %1872 = vmatprep.subr.bf16.mxu0 0
      %1873 = vmatpush1.bf16.msra.mxu0 0
      %1874 = vmatprep.subr.bf16.mxu0 0
      %1875 = vmatpush1.bf16.msra.mxu0 0
      %1876 = vmatprep.subr.bf16.mxu0 0
      %1877 = vmatpush1.bf16.msra.mxu0 0
      %1878 = vmatprep.subr.bf16.mxu0 0
      %1879 = vmatpush1.bf16.msra.mxu0 0
      %1880 = vmatprep.subr.bf16.mxu0 0
      %1881 = vmatpush1.bf16.msra.mxu0 0
      %1882 = vmatprep.subr.bf16.mxu0 0
      %1883 = vmatpush1.bf16.msra.mxu0 0
      %1884 = vmatprep.subr.bf16.mxu0 0
      %1885 = vmatpush1.bf16.msra.mxu0 0
      %1886 = vmatprep.subr.bf16.mxu0 0
      %1887 = vmatpush1.bf16.msra.mxu0 0
      %1888 = vmatprep.subr.bf16.mxu0 0
      %1889 = vmatpush1.bf16.msra.mxu0 0
      %1890 = vmatprep.mubr.bf16.mxu0 0
      %1891 = vmatmul.mubr.bf16.gmra.mrb[0].mxu0 %v1856
      %v1892 = vpop.f32.mrb[0].mxu0
      %v1893 = vadd.f32 0.0, %v1892
      %v1894 = vpop.f32.mrb[0].mxu0
      %v1895 = vpop.f32.mrb[0].mxu0
      %v1896 = vpop.f32.mrb[0].mxu0
      %1897 = vdwg.mxu0
      %v1900 = vunpack.c.l.b16 %v1842
      %v1901 = vunpack.c.l.b16 %v1843
      %v1902 = vpack.c.b16 %v1901, %v1900
      %1904 = vmatprep.subr.bf16.mxu0 0
      %1905 = vmatpush1.bf16.msra.mxu0 %v1902
      %1906 = vmatprep.subr.bf16.mxu0 0
      %1907 = vmatpush1.bf16.msra.mxu0 0
      %1908 = vmatprep.subr.bf16.mxu0 0
      %1909 = vmatpush1.bf16.msra.mxu0 0
      %1910 = vmatprep.subr.bf16.mxu0 0
      %1911 = vmatpush1.bf16.msra.mxu0 0
      %1912 = vmatprep.subr.bf16.mxu0 0
      %1913 = vmatpush1.bf16.msra.mxu0 0
      %1914 = vmatprep.subr.bf16.mxu0 0
      %1915 = vmatpush1.bf16.msra.mxu0 0
      %1916 = vmatprep.subr.bf16.mxu0 0
      %1917 = vmatpush1.bf16.msra.mxu0 0
      %1918 = vmatprep.subr.bf16.mxu0 0
      %1919 = vmatpush1.bf16.msra.mxu0 0
      %1920 = vmatprep.subr.bf16.mxu0 0
      %1921 = vmatpush1.bf16.msra.mxu0 0
      %1922 = vmatprep.subr.bf16.mxu0 0
      %1923 = vmatpush1.bf16.msra.mxu0 0
      %1924 = vmatprep.subr.bf16.mxu0 0
      %1925 = vmatpush1.bf16.msra.mxu0 0
      %1926 = vmatprep.subr.bf16.mxu0 0
      %1927 = vmatpush1.bf16.msra.mxu0 0
      %1928 = vmatprep.subr.bf16.mxu0 0
      %1929 = vmatpush1.bf16.msra.mxu0 0
      %1930 = vmatprep.subr.bf16.mxu0 0
      %1931 = vmatpush1.bf16.msra.mxu0 0
      %1932 = vmatprep.subr.bf16.mxu0 0
      %1933 = vmatpush1.bf16.msra.mxu0 0
      %1934 = vmatprep.subr.bf16.mxu0 0
      %1935 = vmatpush1.bf16.msra.mxu0 0
      %1936 = vmatprep.mubr.bf16.mxu0 0
      %1937 = vmatmul.mubr.bf16.gmra.mrb[0].mxu0 %v1856
      %v1938 = vpop.f32.mrb[0].mxu0
      %v1939 = vadd.f32 %v1893, %v1938
      %v1940 = vpop.f32.mrb[0].mxu0
      %v1941 = vpop.f32.mrb[0].mxu0
      %v1942 = vpop.f32.mrb[0].mxu0
      %1943 = vdwg.mxu0
      %vm1944 = vcmask 122880
      %1945 = vst.msk [vmem:[#allocation4] sm:$0x1] %vm1944, %v1939
      %1947 = vrot.lane.b32.xlu0 %v1939, 112
      %v1948 = vpop.permute.xlu0 %1947
      %1950 = vst.msk [vmem:[#allocation4 + $0x1] sm:$0x1] %vm1944, %v1948
      %1951 = vrot.lane.b32.xlu0 %v1939, 96
      %v1952 = vpop.permute.xlu0 %1951
      %1954 = vst.msk [vmem:[#allocation4 + $0x2] sm:$0x1] %vm1944, %v1952
      %1955 = vrot.lane.b32.xlu0 %v1939, 80
      %v1956 = vpop.permute.xlu0 %1955
      %1958 = vst.msk [vmem:[#allocation4 + $0x3] sm:$0x1] %vm1944, %v1956
      %1959 = vrot.lane.b32.xlu0 %v1939, 64
      %v1960 = vpop.permute.xlu0 %1959
      %1962 = vst.msk [vmem:[#allocation4 + $0x4] sm:$0x1] %vm1944, %v1960
      %1963 = vrot.lane.b32.xlu0 %v1939, 48
      %v1964 = vpop.permute.xlu0 %1963
      %1966 = vst.msk [vmem:[#allocation4 + $0x5] sm:$0x1] %vm1944, %v1964
      %1967 = vrot.lane.b32.xlu0 %v1939, 32
      %v1968 = vpop.permute.xlu0 %1967
      %1970 = vst.msk [vmem:[#allocation4 + $0x6] sm:$0x1] %vm1944, %v1968
      %1971 = vrot.lane.b32.xlu0 %v1939, 16
      %v1972 = vpop.permute.xlu0 %1971
      %1974 = vst.msk [vmem:[#allocation4 + $0x7] sm:$0x1] %vm1944, %v1972
      %v1975 = vld [vmem:[#allocation4] sm:$0xff]
      %s1976 = scalar_lea.vmem %s5, 16
      %v1977 = vld [vmem:[%s1976] sm:$0xf]
      %v1978 = vld [vmem:[%s1976 + $0x4] sm:$0xf]
      %s1979 = scalar_lea.vmem %s5, 24
      %v1980 = vld [vmem:[%s1979] sm:$0xf]
      %v1981 = vld [vmem:[%s1979 + $0x4] sm:$0xf]
      %v1982 = vmax.f32 %v1975, 0.0
      %v1983 = vpack.c.bf16 %v1982, %v1982
      %v1986 = vunpack.c.l.b16 %v1980
      %v1987 = vunpack.c.l.b16 %v1981
      %v1988 = vpack.c.b16 %v1987, %v1986
      %1990 = vmatprep.subr.bf16.mxu0 0
      %1991 = vmatpush1.bf16.msra.mxu0 %v1988
      %1992 = vmatprep.subr.bf16.mxu0 0
      %1993 = vmatpush1.bf16.msra.mxu0 0
      %1994 = vmatprep.subr.bf16.mxu0 0
      %1995 = vmatpush1.bf16.msra.mxu0 0
      %1996 = vmatprep.subr.bf16.mxu0 0
      %1997 = vmatpush1.bf16.msra.mxu0 0
      %1998 = vmatprep.subr.bf16.mxu0 0
      %1999 = vmatpush1.bf16.msra.mxu0 0
      %2000 = vmatprep.subr.bf16.mxu0 0
      %2001 = vmatpush1.bf16.msra.mxu0 0
      %2002 = vmatprep.subr.bf16.mxu0 0
      %2003 = vmatpush1.bf16.msra.mxu0 0
      %2004 = vmatprep.subr.bf16.mxu0 0
      %2005 = vmatpush1.bf16.msra.mxu0 0
      %2006 = vmatprep.subr.bf16.mxu0 0
      %2007 = vmatpush1.bf16.msra.mxu0 0
      %2008 = vmatprep.subr.bf16.mxu0 0
      %2009 = vmatpush1.bf16.msra.mxu0 0
      %2010 = vmatprep.subr.bf16.mxu0 0
      %2011 = vmatpush1.bf16.msra.mxu0 0
      %2012 = vmatprep.subr.bf16.mxu0 0
      %2013 = vmatpush1.bf16.msra.mxu0 0
      %2014 = vmatprep.subr.bf16.mxu0 0
      %2015 = vmatpush1.bf16.msra.mxu0 0
      %2016 = vmatprep.subr.bf16.mxu0 0
      %2017 = vmatpush1.bf16.msra.mxu0 0
      %2018 = vmatprep.subr.bf16.mxu0 0
      %2019 = vmatpush1.bf16.msra.mxu0 0
      %2020 = vmatprep.subr.bf16.mxu0 0
      %2021 = vmatpush1.bf16.msra.mxu0 0
      %2022 = vmatprep.mubr.bf16.mxu0 0
      %2023 = vmatmul.mubr.bf16.gmra.mrb[0].mxu0 %v1267
      %v2024 = vpop.f32.mrb[0].mxu0
      %v2025 = vadd.f32 0.0, %v2024
      %v2026 = vpop.f32.mrb[0].mxu0
      %v2027 = vpop.f32.mrb[0].mxu0
      %v2028 = vpop.f32.mrb[0].mxu0
      %2029 = vdwg.mxu0
      %v2032 = vunpack.c.l.b16 %v1977
      %v2033 = vunpack.c.l.b16 %v1978
      %v2034 = vpack.c.b16 %v2033, %v2032
      %v2037 = vsel %vm523, %v1983, 0
      %2039 = vmatprep.subr.bf16.mxu0 0
      %2040 = vmatpush1.bf16.msra.mxu0 %v2034
      %2041 = vmatprep.subr.bf16.mxu0 0
      %2042 = vmatpush1.bf16.msra.mxu0 0
      %2043 = vmatprep.subr.bf16.mxu0 0
      %2044 = vmatpush1.bf16.msra.mxu0 0
      %2045 = vmatprep.subr.bf16.mxu0 0
      %2046 = vmatpush1.bf16.msra.mxu0 0
      %2047 = vmatprep.subr.bf16.mxu0 0
      %2048 = vmatpush1.bf16.msra.mxu0 0
      %2049 = vmatprep.subr.bf16.mxu0 0
      %2050 = vmatpush1.bf16.msra.mxu0 0
      %2051 = vmatprep.subr.bf16.mxu0 0
      %2052 = vmatpush1.bf16.msra.mxu0 0
      %2053 = vmatprep.subr.bf16.mxu0 0
      %2054 = vmatpush1.bf16.msra.mxu0 0
      %2055 = vmatprep.subr.bf16.mxu0 0
      %2056 = vmatpush1.bf16.msra.mxu0 0
      %2057 = vmatprep.subr.bf16.mxu0 0
      %2058 = vmatpush1.bf16.msra.mxu0 0
      %2059 = vmatprep.subr.bf16.mxu0 0
      %2060 = vmatpush1.bf16.msra.mxu0 0
      %2061 = vmatprep.subr.bf16.mxu0 0
      %2062 = vmatpush1.bf16.msra.mxu0 0
      %2063 = vmatprep.subr.bf16.mxu0 0
      %2064 = vmatpush1.bf16.msra.mxu0 0
      %2065 = vmatprep.subr.bf16.mxu0 0
      %2066 = vmatpush1.bf16.msra.mxu0 0
      %2067 = vmatprep.subr.bf16.mxu0 0
      %2068 = vmatpush1.bf16.msra.mxu0 0
      %2069 = vmatprep.subr.bf16.mxu0 0
      %2070 = vmatpush1.bf16.msra.mxu0 0
      %2071 = vmatprep.mubr.bf16.mxu0 0
      %2072 = vmatmul.mubr.bf16.gmra.mrb[0].mxu0 %v2037
      %v2073 = vpop.f32.mrb[0].mxu0
      %v2074 = vadd.f32 %v2025, %v2073
      %v2075 = vpop.f32.mrb[0].mxu0
      %v2076 = vpop.f32.mrb[0].mxu0
      %v2077 = vpop.f32.mrb[0].mxu0
      %2078 = vdwg.mxu0
      %2079 = vst [vmem:[#allocation5] ss:$8 sm:$0xf] %v2074
      %2080 = vst [vmem:[#allocation5] ss:$8 sm:$0xf0] %v2074
      %2082 = vrot.lane.b32.xlu0 %v2074, 112
      %v2083 = vpop.permute.xlu0 %2082
      %s2085 = scalar_lea.vmem [#allocation5], 1
      %2086 = vst [vmem:[%s2085] ss:$8 sm:$0xf] %v2083
      %2087 = vst [vmem:[%s2085] ss:$8 sm:$0xf0] %v2083
      %2088 = vrot.lane.b32.xlu0 %v2074, 96
      %v2089 = vpop.permute.xlu0 %2088
      %s2091 = scalar_lea.vmem [#allocation5], 2
      %2092 = vst [vmem:[%s2091] ss:$8 sm:$0xf] %v2089
      %2093 = vst [vmem:[%s2091] ss:$8 sm:$0xf0] %v2089
      %2094 = vrot.lane.b32.xlu0 %v2074, 80
      %v2095 = vpop.permute.xlu0 %2094
      %s2097 = scalar_lea.vmem [#allocation5], 3
      %2098 = vst [vmem:[%s2097] ss:$8 sm:$0xf] %v2095
      %2099 = vst [vmem:[%s2097] ss:$8 sm:$0xf0] %v2095
      %2100 = vrot.lane.b32.xlu0 %v2074, 64
      %v2101 = vpop.permute.xlu0 %2100
      %s2103 = scalar_lea.vmem [#allocation5], 4
      %2104 = vst [vmem:[%s2103] ss:$8 sm:$0xf] %v2101
      %2105 = vst [vmem:[%s2103] ss:$8 sm:$0xf0] %v2101
      %2106 = vrot.lane.b32.xlu0 %v2074, 48
      %v2107 = vpop.permute.xlu0 %2106
      %s2109 = scalar_lea.vmem [#allocation5], 5
      %2110 = vst [vmem:[%s2109] ss:$8 sm:$0xf] %v2107
      %2111 = vst [vmem:[%s2109] ss:$8 sm:$0xf0] %v2107
      %2112 = vrot.lane.b32.xlu0 %v2074, 32
      %v2113 = vpop.permute.xlu0 %2112
      %s2115 = scalar_lea.vmem [#allocation5], 6
      %2116 = vst [vmem:[%s2115] ss:$8 sm:$0xf] %v2113
      %2117 = vst [vmem:[%s2115] ss:$8 sm:$0xf0] %v2113
      %2118 = vrot.lane.b32.xlu0 %v2074, 16
      %v2119 = vpop.permute.xlu0 %2118
      %s2121 = scalar_lea.vmem [#allocation5], 7
      %2122 = vst [vmem:[%s2121] ss:$8 sm:$0xf] %v2119
      %2123 = vst [vmem:[%s2121] ss:$8 sm:$0xf0] %v2119
      %v2124 = vld [vmem:[#allocation5] sm:$0xff]
      %v2125 = vld [vmem:[#allocation5 + $0x8] sm:$0xff]
      %v2126 = vld [vmem:[#allocation5 + $0x10] sm:$0xff]
      %v2127 = vld [vmem:[#allocation5 + $0x18] sm:$0xff]
      %v2128 = vld [vmem:[#allocation5 + $0x20] sm:$0xff]
      %v2129 = vld [vmem:[#allocation5 + $0x28] sm:$0xff]
      %v2130 = vld [vmem:[#allocation5 + $0x30] sm:$0xff]
      %v2131 = vld [vmem:[#allocation5 + $0x38] sm:$0xff]
      %v2132 = vld [vmem:[%s6] sm:$0xf]
      %v2133 = vld [vmem:[%s6 + $0x4] sm:$0xf]
      %s2134 = scalar_lea.vmem %s6, 8
      %v2135 = vld [vmem:[%s2134] sm:$0xf]
      %v2136 = vld [vmem:[%s2134 + $0x4] sm:$0xf]
      %v2137 = vmax.f32 %v2124, 0.0
      %v2138 = vmax.f32 %v2125, 0.0
      %v2139 = vmax.f32 %v2126, 0.0
      %v2140 = vmax.f32 %v2127, 0.0
      %v2141 = vmax.f32 %v2128, 0.0
      %v2142 = vmax.f32 %v2129, 0.0
      %v2143 = vmax.f32 %v2130, 0.0
      %v2144 = vmax.f32 %v2131, 0.0
      %v2145 = vpack.c.bf16 %v2138, %v2137
      %v2146 = vpack.c.bf16 %v2140, %v2139
      %v2147 = vpack.c.bf16 %v2142, %v2141
      %v2148 = vpack.c.bf16 %v2144, %v2143
      %v2151 = vunpack.c.l.b16 %v2135
      %v2152 = vunpack.c.l.b16 %v2136
      %v2153 = vpack.c.b16 %v2152, %v2151
      %2155 = vmatprep.subr.bf16.mxu0 0
      %2156 = vmatpush1.bf16.msra.mxu0 %v2153
      %2157 = vmatprep.subr.bf16.mxu0 0
      %2158 = vmatpush1.bf16.msra.mxu0 0
      %2159 = vmatprep.subr.bf16.mxu0 0
      %2160 = vmatpush1.bf16.msra.mxu0 0
      %2161 = vmatprep.subr.bf16.mxu0 0
      %2162 = vmatpush1.bf16.msra.mxu0 0
      %2163 = vmatprep.subr.bf16.mxu0 0
      %2164 = vmatpush1.bf16.msra.mxu0 0
      %2165 = vmatprep.subr.bf16.mxu0 0
      %2166 = vmatpush1.bf16.msra.mxu0 0
      %2167 = vmatprep.subr.bf16.mxu0 0
      %2168 = vmatpush1.bf16.msra.mxu0 0
      %2169 = vmatprep.subr.bf16.mxu0 0
      %2170 = vmatpush1.bf16.msra.mxu0 0
      %2171 = vmatprep.subr.bf16.mxu0 0
      %2172 = vmatpush1.bf16.msra.mxu0 0
      %2173 = vmatprep.subr.bf16.mxu0 0
      %2174 = vmatpush1.bf16.msra.mxu0 0
      %2175 = vmatprep.subr.bf16.mxu0 0
      %2176 = vmatpush1.bf16.msra.mxu0 0
      %2177 = vmatprep.subr.bf16.mxu0 0
      %2178 = vmatpush1.bf16.msra.mxu0 0
      %2179 = vmatprep.subr.bf16.mxu0 0
      %2180 = vmatpush1.bf16.msra.mxu0 0
      %2181 = vmatprep.subr.bf16.mxu0 0
      %2182 = vmatpush1.bf16.msra.mxu0 0
      %2183 = vmatprep.subr.bf16.mxu0 0
      %2184 = vmatpush1.bf16.msra.mxu0 0
      %2185 = vmatprep.subr.bf16.mxu0 0
      %2186 = vmatpush1.bf16.msra.mxu0 0
      %2187 = vmatprep.mubr.bf16.mxu0 0
      %2188 = vmatmul.mubr.bf16.gmra.mrb[0].mxu0 %v525
      %v2189 = vpop.f32.mrb[0].mxu0
      %v2190 = vadd.f32 0.0, %v2189
      %v2191 = vpop.f32.mrb[0].mxu0
      %v2192 = vpop.f32.mrb[0].mxu0
      %v2193 = vadd.f32 0.0, %v2192
      %v2194 = vpop.f32.mrb[0].mxu0
      %2195 = vmatprep.mubr.bf16.mxu0 0
      %2196 = vmatmul.mubr.bf16.gmra.mrb[0].mxu0 %v528
      %v2197 = vpop.f32.mrb[0].mxu0
      %v2198 = vadd.f32 0.0, %v2197
      %v2199 = vpop.f32.mrb[0].mxu0
      %v2200 = vpop.f32.mrb[0].mxu0
      %v2201 = vadd.f32 0.0, %v2200
      %v2202 = vpop.f32.mrb[0].mxu0
      %2203 = vmatprep.mubr.bf16.mxu0 0
      %2204 = vmatmul.mubr.bf16.gmra.mrb[0].mxu0 %v531
      %v2205 = vpop.f32.mrb[0].mxu0
      %v2206 = vadd.f32 0.0, %v2205
      %v2207 = vpop.f32.mrb[0].mxu0
      %v2208 = vpop.f32.mrb[0].mxu0
      %v2209 = vadd.f32 0.0, %v2208
      %v2210 = vpop.f32.mrb[0].mxu0
      %2211 = vmatprep.mubr.bf16.mxu0 0
      %2212 = vmatmul.mubr.bf16.gmra.mrb[0].mxu0 %v534
      %v2213 = vpop.f32.mrb[0].mxu0
      %v2214 = vadd.f32 0.0, %v2213
      %v2215 = vpop.f32.mrb[0].mxu0
      %v2216 = vpop.f32.mrb[0].mxu0
      %v2217 = vadd.f32 0.0, %v2216
      %v2218 = vpop.f32.mrb[0].mxu0
      %2219 = vdwg.mxu0
      %v2222 = vunpack.c.l.b16 %v2132
      %v2223 = vunpack.c.l.b16 %v2133
      %v2224 = vpack.c.b16 %v2223, %v2222
      %v2227 = vsel %vm523, %v2145, 0
      %v2230 = vsel %vm523, %v2146, 0
      %v2233 = vsel %vm523, %v2147, 0
      %v2236 = vsel %vm523, %v2148, 0
      %2238 = vmatprep.subr.bf16.mxu0 0
      %2239 = vmatpush1.bf16.msra.mxu0 %v2224
      %2240 = vmatprep.subr.bf16.mxu0 0
      %2241 = vmatpush1.bf16.msra.mxu0 0
      %2242 = vmatprep.subr.bf16.mxu0 0
      %2243 = vmatpush1.bf16.msra.mxu0 0
      %2244 = vmatprep.subr.bf16.mxu0 0
      %2245 = vmatpush1.bf16.msra.mxu0 0
      %2246 = vmatprep.subr.bf16.mxu0 0
      %2247 = vmatpush1.bf16.msra.mxu0 0
      %2248 = vmatprep.subr.bf16.mxu0 0
      %2249 = vmatpush1.bf16.msra.mxu0 0
      %2250 = vmatprep.subr.bf16.mxu0 0
      %2251 = vmatpush1.bf16.msra.mxu0 0
      %2252 = vmatprep.subr.bf16.mxu0 0
      %2253 = vmatpush1.bf16.msra.mxu0 0
      %2254 = vmatprep.subr.bf16.mxu0 0
      %2255 = vmatpush1.bf16.msra.mxu0 0
      %2256 = vmatprep.subr.bf16.mxu0 0
      %2257 = vmatpush1.bf16.msra.mxu0 0
      %2258 = vmatprep.subr.bf16.mxu0 0
      %2259 = vmatpush1.bf16.msra.mxu0 0
      %2260 = vmatprep.subr.bf16.mxu0 0
      %2261 = vmatpush1.bf16.msra.mxu0 0
      %2262 = vmatprep.subr.bf16.mxu0 0
      %2263 = vmatpush1.bf16.msra.mxu0 0
      %2264 = vmatprep.subr.bf16.mxu0 0
      %2265 = vmatpush1.bf16.msra.mxu0 0
      %2266 = vmatprep.subr.bf16.mxu0 0
      %2267 = vmatpush1.bf16.msra.mxu0 0
      %2268 = vmatprep.subr.bf16.mxu0 0
      %2269 = vmatpush1.bf16.msra.mxu0 0
      %2270 = vmatprep.mubr.bf16.mxu0 0
      %2271 = vmatmul.mubr.bf16.gmra.mrb[0].mxu0 %v2227
      %v2272 = vpop.f32.mrb[0].mxu0
      %v2273 = vadd.f32 %v2190, %v2272
      %v2274 = vpop.f32.mrb[0].mxu0
      %v2275 = vpop.f32.mrb[0].mxu0
      %v2276 = vadd.f32 %v2193, %v2275
      %v2277 = vpop.f32.mrb[0].mxu0
      %2278 = vmatprep.mubr.bf16.mxu0 0
      %2279 = vmatmul.mubr.bf16.gmra.mrb[0].mxu0 %v2230
      %v2280 = vpop.f32.mrb[0].mxu0
      %v2281 = vadd.f32 %v2198, %v2280
      %v2282 = vpop.f32.mrb[0].mxu0
      %v2283 = vpop.f32.mrb[0].mxu0
      %v2284 = vadd.f32 %v2201, %v2283
      %v2285 = vpop.f32.mrb[0].mxu0
      %2286 = vmatprep.mubr.bf16.mxu0 0
      %2287 = vmatmul.mubr.bf16.gmra.mrb[0].mxu0 %v2233
      %v2288 = vpop.f32.mrb[0].mxu0
      %v2289 = vadd.f32 %v2206, %v2288
      %v2290 = vpop.f32.mrb[0].mxu0
      %v2291 = vpop.f32.mrb[0].mxu0
      %v2292 = vadd.f32 %v2209, %v2291
      %v2293 = vpop.f32.mrb[0].mxu0
      %2294 = vmatprep.mubr.bf16.mxu0 0
      %2295 = vmatmul.mubr.bf16.gmra.mrb[0].mxu0 %v2236
      %v2296 = vpop.f32.mrb[0].mxu0
      %v2297 = vadd.f32 %v2214, %v2296
      %v2298 = vpop.f32.mrb[0].mxu0
      %v2299 = vpop.f32.mrb[0].mxu0
      %v2300 = vadd.f32 %v2217, %v2299
      %v2301 = vpop.f32.mrb[0].mxu0
      %2302 = vdwg.mxu0
      %v2303 = vxor.u32 %v2273, 2147483648
      %v2304 = vxor.u32 %v2276, 2147483648
      %v2305 = vxor.u32 %v2281, 2147483648
      %v2306 = vxor.u32 %v2284, 2147483648
      %v2307 = vxor.u32 %v2289, 2147483648
      %v2308 = vxor.u32 %v2292, 2147483648
      %v2309 = vxor.u32 %v2297, 2147483648
      %v2310 = vxor.u32 %v2300, 2147483648
      %v2311 = vmul.f32 %v2303, 1.442695
      %v2312 = vpow.pop %v2311
      %v2313 = vmul.f32 %v2304, 1.442695
      %v2314 = vpow.pop %v2313
      %v2315 = vmul.f32 %v2305, 1.442695
      %v2316 = vpow.pop %v2315
      %v2317 = vmul.f32 %v2306, 1.442695
      %v2318 = vpow.pop %v2317
      %v2319 = vmul.f32 %v2307, 1.442695
      %v2320 = vpow.pop %v2319
      %v2321 = vmul.f32 %v2308, 1.442695
      %v2322 = vpow.pop %v2321
      %v2323 = vmul.f32 %v2309, 1.442695
      %v2324 = vpow.pop %v2323
      %v2325 = vmul.f32 %v2310, 1.442695
      %v2326 = vpow.pop %v2325
      %v2327 = vadd.f32 %v2312, 1.0
      %v2328 = vadd.f32 %v2314, 1.0
      %v2329 = vadd.f32 %v2316, 1.0
      %v2330 = vadd.f32 %v2318, 1.0
      %v2331 = vadd.f32 %v2320, 1.0
      %v2332 = vadd.f32 %v2322, 1.0
      %v2333 = vadd.f32 %v2324, 1.0
      %v2334 = vadd.f32 %v2326, 1.0
      %v2335 = vrcp.pop %v2327
      %v2336 = vmul.f32 1.0, %v2335
      %v2337 = vrcp.pop %v2328
      %v2338 = vmul.f32 1.0, %v2337
      %v2339 = vrcp.pop %v2329
      %v2340 = vmul.f32 1.0, %v2339
      %v2341 = vrcp.pop %v2330
      %v2342 = vmul.f32 1.0, %v2341
      %v2343 = vrcp.pop %v2331
      %v2344 = vmul.f32 1.0, %v2343
      %v2345 = vrcp.pop %v2332
      %v2346 = vmul.f32 1.0, %v2345
      %v2347 = vrcp.pop %v2333
      %v2348 = vmul.f32 1.0, %v2347
      %v2349 = vrcp.pop %v2334
      %v2350 = vmul.f32 1.0, %v2349
      %2351 = vst.msk [vmem:[%s278] sm:$0xff] %vm363, %v2336
      %2352 = vst.msk [vmem:[%s278 + $0x8] sm:$0xff] %vm363, %v2338
      %2353 = vst.msk [vmem:[%s278 + $0x10] sm:$0xff] %vm363, %v2340
      %2354 = vst.msk [vmem:[%s278 + $0x18] sm:$0xff] %vm363, %v2342
      %2355 = vst.msk [vmem:[%s278 + $0x20] sm:$0xff] %vm363, %v2344
      %2356 = vst.msk [vmem:[%s278 + $0x28] sm:$0xff] %vm363, %v2346
      %2357 = vst.msk [vmem:[%s278 + $0x30] sm:$0xff] %vm363, %v2348
      %2358 = vst.msk [vmem:[%s278 + $0x38] sm:$0xff] %vm363, %v2350
      %p2359 = scmp.lt.s32.totalorder %s18, 1
      %s2360 = scalar_select %p2359, %s18, 1
      %s2361 = smul.addr %s2360, 8
      %s2362 = smul.addr %s2361, 8
      %s2363 = scalar_lea.vmem %s7, %s2362
      // Predicated region
      $region49: #{autoencoder_forward.1} parent=47 // pred_check
        %p2364 = pneg %p188
      $region50: #{autoencoder_forward.1} parent=47 // pred_check_branch
        %2366 = sbr.rel (%p2364) target = $region52
      $region51: #{autoencoder_forward.1} parent=47 // pred_region
        _
      $region52: #{autoencoder_forward.1} parent=47 // pred_fallthru
        _
    $region48: #{autoencoder_forward.1} parent=5 // pred_fallthru
      _
    %p2367 = scmp.le.s32.totalorder 2, %s13
    // Predicated region
    $region53: #{autoencoder_forward.1} parent=5 // pred_check
      %p2368 = pneg %p2367
    $region54: #{autoencoder_forward.1} parent=5 // pred_check_branch
      %2370 = sbr.rel (%p2368) target = $region56
    $region55: #{autoencoder_forward.1} parent=5 // pred_region
      %s2371 = ssub.s32 %s13, 2
      // Predicated region
      $region57: #{autoencoder_forward.1} parent=55 // pred_check
        %p2372 = pneg %p194
      $region58: #{autoencoder_forward.1} parent=55 // pred_check_branch
        %2374 = sbr.rel (%p2372) target = $region60
      $region59: #{autoencoder_forward.1} parent=55 // pred_region
        %p2375 = scmp.lt.s32.totalorder %s19, 1
        %s2376 = scalar_select %p2375, %s19, 1
        %s2377 = smul.addr %s2376, 8
        %s2378 = smul.addr %s2377, 8
        %s2379 = scalar_lea.vmem %s7, %s2378
      $region60: #{autoencoder_forward.1} parent=55 // pred_fallthru
        _
    $region56: #{autoencoder_forward.1} parent=5 // pred_fallthru
      _
  $region6: #{autoencoder_forward.1} parent=0 // loop_footer
    %s17 = sadd.s32 1, %s13
  $region7: #{autoencoder_forward.1} parent=0 // loop_footer_branch
    %12 = sbr.rel target = $region3
  $region8: #{autoencoder_forward.1} parent=0 // loop_exit
    _

</llo_original>
